<compile_context>
chip_gen: v6e
topology: v6e:2x2x1
jax: 0.10.0
libtpu: 0.0.40
codegen_flags: <defaults>
</compile_context>

<pallas_src>
import functools

import jax
import jax.numpy as jnp
from jax.experimental import pallas as pl
from jax.experimental.pallas import tpu as pltpu

_MIB = 1024 * 1024


def _vmem_limit(footprint_bytes):
    # Size the scoped-VMEM request to the actual footprint plus headroom,
    # never the whole chip (v7x has only 64 MiB per TensorCore).
    return int(min(128 * _MIB, max(16 * _MIB, footprint_bytes + 4 * _MIB)))


# ----------------------------------------------------------------------------
# Linear (y = x @ W + b), tiled over the token axis.
# ----------------------------------------------------------------------------
def _linear_kernel(x_ref, w_ref, b_ref, o_ref):
    acc = jnp.dot(x_ref[...], w_ref[...], preferred_element_type=jnp.float32)
    acc = acc + b_ref[...].astype(jnp.float32)
    o_ref[...] = acc.astype(o_ref.dtype)


def _linear(x2, w, b, *, tm_max=512):
    """x2: (M, D_in), w: (D_in, D_out), b: (D_out,) -> (M, D_out)."""
    M, D_in = x2.shape
    D_out = w.shape[1]

    tm = min(tm_max, M)
    if tm < M:
        tm = max(8, (tm // 8) * 8)  # multiple-of-8 sublanes when tiling
    grid = (pl.cdiv(M, tm),)

    itemsize = x2.dtype.itemsize
    flops = 2 * M * D_in * D_out
    bytes_accessed = itemsize * (M * D_in + D_in * D_out + D_out + M * D_out)
    block_bytes = itemsize * (tm * D_in + D_in * D_out + D_out + tm * D_out)

    return pl.pallas_call(
        _linear_kernel,
        out_shape=jax.ShapeDtypeStruct((M, D_out), x2.dtype),
        grid_spec=pltpu.PrefetchScalarGridSpec(
            num_scalar_prefetch=0,
            grid=grid,
            in_specs=[
                pl.BlockSpec((tm, D_in), lambda i: (i, 0)),     # x tile (pipelined)
                pl.BlockSpec((D_in, D_out), lambda i: (0, 0)),  # W resident
                pl.BlockSpec((1, D_out), lambda i: (0, 0)),     # b resident
            ],
            out_specs=pl.BlockSpec((tm, D_out), lambda i: (i, 0)),
        ),
        compiler_params=pltpu.CompilerParams(
            dimension_semantics=("parallel",),
            vmem_limit_bytes=_vmem_limit(2 * block_bytes),
        ),
        cost_estimate=pl.CostEstimate(
            flops=flops, transcendentals=0, bytes_accessed=bytes_accessed),
    )(x2, w, b.reshape(1, D_out))


# ----------------------------------------------------------------------------
# Flash attention, all heads per grid step, reading straight from the qkv slab.
# ----------------------------------------------------------------------------
def _flash_attn_kernel(q_ref, k_ref, v_ref, o_ref, m_sc, l_sc, acc_sc, *,
                       scale, num_heads, head_dim, seq_len, mask_kv_tail):
    ki = pl.program_id(2)

    @pl.when(ki == 0)
    def _():
        m_sc[...] = jnp.full_like(m_sc, -jnp.inf)
        l_sc[...] = jnp.zeros_like(l_sc)
        acc_sc[...] = jnp.zeros_like(acc_sc)

    q = q_ref[0]   # (tq, C) == (tq, H*Dh)
    k = k_ref[0]   # (tk, C)
    v = v_ref[0]   # (tk, C)
    tq = q.shape[0]
    tk = k.shape[0]

    if mask_kv_tail:
        # Padded kv rows hold stale VMEM: mask scores to -inf and zero the
        # padded V rows so they cannot inject inf/NaN into the PV matmul.
        kv_col = jax.lax.broadcasted_iota(jnp.int32, (tq, tk), 1) + ki * tk
        score_mask = kv_col < seq_len                               # (tq, tk)
        kv_row = jax.lax.broadcasted_iota(jnp.int32, v.shape, 0) + ki * tk
        v = jnp.where(kv_row < seq_len, v, jnp.zeros_like(v))

    for h in range(num_heads):
        cols = slice(h * head_dim, (h + 1) * head_dim)
        qh = q[:, cols]                       # (tq, Dh)
        kh = k[:, cols]                       # (tk, Dh)
        s = jax.lax.dot_general(
            qh, kh, (((1,), (1,)), ((), ())),
            preferred_element_type=jnp.float32) * scale            # (tq, tk)
        if mask_kv_tail:
            s = jnp.where(score_mask, s, -jnp.inf)

        m_prev = m_sc[:, h:h + 1]                                   # (tq, 1)
        m_new = jnp.maximum(m_prev, s.max(axis=-1, keepdims=True))
        alpha = jnp.exp(m_prev - m_new)
        p = jnp.exp(s - m_new)                                      # (tq, tk)

        l_sc[:, h:h + 1] = alpha * l_sc[:, h:h + 1] + p.sum(axis=-1, keepdims=True)
        acc_sc[:, cols] = alpha * acc_sc[:, cols] + jnp.dot(
            p.astype(v.dtype), v[:, cols], preferred_element_type=jnp.float32)
        m_sc[:, h:h + 1] = m_new

    @pl.when(ki == pl.num_programs(2) - 1)
    def _():
        for h in range(num_heads):
            cols = slice(h * head_dim, (h + 1) * head_dim)
            inv_l = pl.reciprocal(l_sc[:, h:h + 1], approx=True)   # EUP slot
            acc_sc[:, cols] = acc_sc[:, cols] * inv_l
        # Single lane-dense (tq, C) store of the merged-head output block.
        o_ref[0] = acc_sc[...].astype(o_ref.dtype)


def _flash_attention(qkv3, scale, *, num_heads, tq_max=128, tk_max=128):
    """qkv3: (B, N, 3C) fused qkv activations -> (B, N, C) attention output."""
    B, N, C3 = qkv3.shape
    C = C3 // 3
    Dh = C // num_heads

    # Tiles are either the full N (small N) or 128 (multiple of 8) — both
    # satisfy the (8, 128) layout rule; partial tail tiles are masked.
    tq = min(tq_max, N)
    tk = min(tk_max, N)
    grid = (B, pl.cdiv(N, tq), pl.cdiv(N, tk))
    mask_kv_tail = (N % tk) != 0

    kernel = functools.partial(
        _flash_attn_kernel, scale=scale, num_heads=num_heads, head_dim=Dh,
        seq_len=N, mask_kv_tail=mask_kv_tail)

    if C % 128 == 0:
        # Read q/k/v straight from the (B, N, 3C) slab via column block index
        # 0/1/2 — no head-split transpose, no extra HBM pass.
        args = (qkv3, qkv3, qkv3)
        q_col, k_col, v_col = 0, 1, 2
    else:
        # Lane-alignment fallback (still no transposes, only column splits).
        q3, k3, v3 = jnp.split(qkv3, 3, axis=-1)
        args = (q3, k3, v3)
        q_col = k_col = v_col = 0

    def _q_map(c):
        return lambda b, qi, ki: (b, qi, c)

    def _kv_map(c):
        return lambda b, qi, ki: (b, ki, c)

    itemsize = qkv3.dtype.itemsize
    q_tiles = pl.cdiv(N, tq)
    flops = 4 * B * N * N * C
    transcendentals = B * num_heads * N * N
    bytes_accessed = itemsize * (2 * B * N * C + 2 * B * N * C * q_tiles)
    block_bytes = itemsize * (2 * tq * C + 2 * tk * C)
    scratch_bytes = 4 * (tq * C + 2 * tq * num_heads)

    return pl.pallas_call(
        kernel,
        out_shape=jax.ShapeDtypeStruct((B, N, C), qkv3.dtype),
        grid_spec=pltpu.PrefetchScalarGridSpec(
            num_scalar_prefetch=0,
            grid=grid,
            in_specs=[
                pl.BlockSpec((1, tq, C), _q_map(q_col)),    # q: all heads
                pl.BlockSpec((1, tk, C), _kv_map(k_col)),   # k: all heads
                pl.BlockSpec((1, tk, C), _kv_map(v_col)),   # v: all heads
            ],
            out_specs=pl.BlockSpec((1, tq, C), lambda b, qi, ki: (b, qi, 0)),
            scratch_shapes=[
                pltpu.VMEM((tq, num_heads), jnp.float32),   # running max per head
                pltpu.VMEM((tq, num_heads), jnp.float32),   # running denom per head
                pltpu.VMEM((tq, C), jnp.float32),           # merged output accumulator
            ],
        ),
        compiler_params=pltpu.CompilerParams(
            dimension_semantics=("parallel", "parallel", "arbitrary"),
            vmem_limit_bytes=_vmem_limit(2 * block_bytes + scratch_bytes),
        ),
        cost_estimate=pl.CostEstimate(
            flops=flops, transcendentals=transcendentals,
            bytes_accessed=bytes_accessed),
    )(*args)


# ----------------------------------------------------------------------------
# Full Attention forward.
# ----------------------------------------------------------------------------
@functools.partial(jax.jit, static_argnames=("num_heads",))
def attention_pallas(x, w_qkv, b_qkv, w_proj, b_proj, *, num_heads):
    """x: (B, N, C). Weights stored as (in, out). Returns (B, N, C)."""
    B, N, C = x.shape
    Dh = C // num_heads
    scale = Dh ** (-0.5)
    M = B * N

    x2 = x.reshape(M, C)

    # qkv projection (qkv_bias=False -> zero bias passed in, identical math).
    qkv2 = _linear(x2, w_qkv, b_qkv)                # (M, 3C)
    qkv3 = qkv2.reshape(B, N, 3 * C)                # metadata-only reshape

    # attn_drop(p=0.0) is the identity. Heads are split/merged inside the
    # flash kernel via BlockSpec column offsets — no XLA transposes.
    o3 = _flash_attention(qkv3, scale, num_heads=num_heads)   # (B, N, C)

    # Output projection; proj_drop(p=0.0) is the identity -> no-op.
    out2 = _linear(o3.reshape(M, C), w_proj, b_proj)           # (M, C)
    return out2.reshape(B, N, C)


def attention_reference(x, w_qkv, b_qkv, w_proj, b_proj, num_heads):
    B, N, C = x.shape
    Dh = C // num_heads
    scale = Dh ** (-0.5)
    hi = jax.lax.Precision.HIGHEST
    qkv = jnp.einsum("bnc,cd->bnd", x, w_qkv, precision=hi) + b_qkv
    qkv = qkv.reshape(B, N, 3, num_heads, Dh)
    qkv = jnp.transpose(qkv, (2, 0, 3, 1, 4))
    q, k, v = qkv[0], qkv[1], qkv[2]
    attn = jnp.einsum("bhnd,bhmd->bhnm", q, k, precision=hi) * scale
    attn = jax.nn.softmax(attn, axis=-1)
    out = jnp.einsum("bhnm,bhmd->bhnd", attn, v, precision=hi)
    out = jnp.transpose(out, (0, 2, 1, 3)).reshape(B, N, C)
    return jnp.einsum("bnc,cd->bnd", out, w_proj, precision=hi) + b_proj


if __name__ == "__main__":
    # Small shapes consistent with the module; C=128 keeps all blocks lane-dense.
    B, N = 2, 8
    C = 128
    num_heads = 8          # head_dim = 16

    key = jax.random.PRNGKey(0)
    kx, kqkv, kproj, kbp = jax.random.split(key, 4)

    x = jax.random.normal(kx, (B, N, C), dtype=jnp.float32)
    w_qkv = jax.random.normal(kqkv, (C, 3 * C), dtype=jnp.float32) * 0.02
    b_qkv = jnp.zeros((3 * C,), dtype=jnp.float32)  # qkv_bias=False
    w_proj = jax.random.normal(kproj, (C, C), dtype=jnp.float32) * 0.02
    b_proj = jax.random.normal(kbp, (C,), dtype=jnp.float32) * 0.02

    out = attention_pallas(x, w_qkv, b_qkv, w_proj, b_proj, num_heads=num_heads)
    out = jax.block_until_ready(out)

    ref = attention_reference(x, w_qkv, b_qkv, w_proj, b_proj, num_heads)
    assert out.shape == (B, N, C), out.shape
    max_err = float(jnp.max(jnp.abs(out - ref)))
    assert jnp.allclose(out, ref, atol=2e-3, rtol=2e-3), max_err

    print("KERNEL_OK")
</pallas_src>

<mosaic_0001>
module attributes {stable_mosaic.version = 11 : i64} {
  func.func @_linear_kernel(%arg0: i32, %arg1: memref<16x128xf32, #tpu.memory_space<vmem>>, %arg2: memref<128x128xf32, #tpu.memory_space<vmem>>, %arg3: memref<1x128xf32, #tpu.memory_space<vmem>>, %arg4: memref<16x128xf32, #tpu.memory_space<vmem>>) attributes {dimension_semantics = [#tpu.dimension_semantics<parallel>], iteration_bounds = array<i64: 1>, scalar_prefetch = 0 : i64, scratch_operands = 0 : i64, tpu.core_type = #tpu.core_type<tc>, window_params = [{transform_indices = @transform_0, window_bounds = array<i64: 16, 128>}, {pipeline_mode = #tpu.pipeline_mode<synchronous>, transform_indices = @transform_1, window_bounds = array<i64: 128, 128>}, {pipeline_mode = #tpu.pipeline_mode<synchronous>, transform_indices = @transform_2, window_bounds = array<i64: 1, 128>}, {transform_indices = @transform_3, window_bounds = array<i64: 16, 128>}]} {
    %c0 = arith.constant 0 : index
    %c0_0 = arith.constant 0 : index
    %0 = vector.load %arg1[%c0, %c0_0] : memref<16x128xf32, #tpu.memory_space<vmem>>, vector<16x128xf32>
    %c0_1 = arith.constant 0 : index
    %c0_2 = arith.constant 0 : index
    %1 = vector.load %arg2[%c0_1, %c0_2] : memref<128x128xf32, #tpu.memory_space<vmem>>, vector<128x128xf32>
    %cst = arith.constant dense<0.000000e+00> : vector<16x128xf32>
    %2 = tpu.matmul %0, %1, %cst {dimension_numbers = #tpu.dot_dimension_numbers<[1], [0], [0], [1], [0, 0, 1, 1], [], []>} : vector<16x128xf32>, vector<128x128xf32>, vector<16x128xf32> -> vector<16x128xf32>
    %c0_3 = arith.constant 0 : index
    %c0_4 = arith.constant 0 : index
    %3 = vector.load %arg3[%c0_3, %c0_4] : memref<1x128xf32, #tpu.memory_space<vmem>>, vector<1x128xf32>
    %4 = vector.broadcast %3 : vector<1x128xf32> to vector<16x128xf32>
    %5 = arith.addf %2, %4 : vector<16x128xf32>
    %c0_5 = arith.constant 0 : index
    %c0_6 = arith.constant 0 : index
    %6 = vector.load %arg4[%c0_5, %c0_6] : memref<16x128xf32, #tpu.memory_space<vmem>>, vector<16x128xf32>
    tpu.vector_store %arg4[%c0_5, %c0_6], %5 {strides = array<i32>} : memref<16x128xf32, #tpu.memory_space<vmem>>, vector<16x128xf32>,
    return
  }
  func.func @transform_0(%arg0: i32) -> (i32, i32) {
    %c0_i32 = arith.constant 0 : i32
    %c0_i32_0 = arith.constant 0 : i32
    return %arg0, %c0_i32 : i32, i32
  }
  func.func @transform_1(%arg0: i32) -> (i32, i32) {
    %c0_i32 = arith.constant 0 : i32
    %c0_i32_0 = arith.constant 0 : i32
    %c0_i32_1 = arith.constant 0 : i32
    return %c0_i32, %c0_i32_0 : i32, i32
  }
  func.func @transform_2(%arg0: i32) -> (i32, i32) {
    %c0_i32 = arith.constant 0 : i32
    %c0_i32_0 = arith.constant 0 : i32
    %c0_i32_1 = arith.constant 0 : i32
    return %c0_i32, %c0_i32_0 : i32, i32
  }
  func.func @transform_3(%arg0: i32) -> (i32, i32) {
    %c0_i32 = arith.constant 0 : i32
    %c0_i32_0 = arith.constant 0 : i32
    return %arg0, %c0_i32 : i32, i32
  }
}

module attributes {stable_mosaic.version = 11 : i64} {
  func.func @_linear_kernel(%arg0: i32, %arg1: memref<16x128xf32, #tpu.memory_space<vmem>>, %arg2: memref<128x384xf32, #tpu.memory_space<vmem>>, %arg3: memref<1x384xf32, #tpu.memory_space<vmem>>, %arg4: memref<16x384xf32, #tpu.memory_space<vmem>>) attributes {dimension_semantics = [#tpu.dimension_semantics<parallel>], iteration_bounds = array<i64: 1>, scalar_prefetch = 0 : i64, scratch_operands = 0 : i64, tpu.core_type = #tpu.core_type<tc>, window_params = [{transform_indices = @transform_0, window_bounds = array<i64: 16, 128>}, {pipeline_mode = #tpu.pipeline_mode<synchronous>, transform_indices = @transform_1, window_bounds = array<i64: 128, 384>}, {pipeline_mode = #tpu.pipeline_mode<synchronous>, transform_indices = @transform_2, window_bounds = array<i64: 1, 384>}, {transform_indices = @transform_3, window_bounds = array<i64: 16, 384>}]} {
    %c0 = arith.constant 0 : index
    %c0_0 = arith.constant 0 : index
    %0 = vector.load %arg1[%c0, %c0_0] : memref<16x128xf32, #tpu.memory_space<vmem>>, vector<16x128xf32>
    %c0_1 = arith.constant 0 : index
    %c0_2 = arith.constant 0 : index
    %1 = vector.load %arg2[%c0_1, %c0_2] : memref<128x384xf32, #tpu.memory_space<vmem>>, vector<128x384xf32>
    %cst = arith.constant dense<0.000000e+00> : vector<16x384xf32>
    %2 = tpu.matmul %0, %1, %cst {dimension_numbers = #tpu.dot_dimension_numbers<[1], [0], [0], [1], [0, 0, 1, 1], [], []>} : vector<16x128xf32>, vector<128x384xf32>, vector<16x384xf32> -> vector<16x384xf32>
    %c0_3 = arith.constant 0 : index
    %c0_4 = arith.constant 0 : index
    %3 = vector.load %arg3[%c0_3, %c0_4] : memref<1x384xf32, #tpu.memory_space<vmem>>, vector<1x384xf32>
    %4 = vector.broadcast %3 : vector<1x384xf32> to vector<16x384xf32>
    %5 = arith.addf %2, %4 : vector<16x384xf32>
    %c0_5 = arith.constant 0 : index
    %c0_6 = arith.constant 0 : index
    %6 = vector.load %arg4[%c0_5, %c0_6] : memref<16x384xf32, #tpu.memory_space<vmem>>, vector<16x384xf32>
    tpu.vector_store %arg4[%c0_5, %c0_6], %5 {strides = array<i32>} : memref<16x384xf32, #tpu.memory_space<vmem>>, vector<16x384xf32>,
    return
  }
  func.func @transform_0(%arg0: i32) -> (i32, i32) {
    %c0_i32 = arith.constant 0 : i32
    %c0_i32_0 = arith.constant 0 : i32
    return %arg0, %c0_i32 : i32, i32
  }
  func.func @transform_1(%arg0: i32) -> (i32, i32) {
    %c0_i32 = arith.constant 0 : i32
    %c0_i32_0 = arith.constant 0 : i32
    %c0_i32_1 = arith.constant 0 : i32
    return %c0_i32, %c0_i32_0 : i32, i32
  }
  func.func @transform_2(%arg0: i32) -> (i32, i32) {
    %c0_i32 = arith.constant 0 : i32
    %c0_i32_0 = arith.constant 0 : i32
    %c0_i32_1 = arith.constant 0 : i32
    return %c0_i32, %c0_i32_0 : i32, i32
  }
  func.func @transform_3(%arg0: i32) -> (i32, i32) {
    %c0_i32 = arith.constant 0 : i32
    %c0_i32_0 = arith.constant 0 : i32
    return %arg0, %c0_i32 : i32, i32
  }
}

module attributes {stable_mosaic.version = 11 : i64} {
  func.func @_flash_attn_kernel(%arg0: i32, %arg1: i32, %arg2: i32, %arg3: memref<1x8x128xf32, #tpu.memory_space<vmem>>, %arg4: memref<1x8x128xf32, #tpu.memory_space<vmem>>, %arg5: memref<1x8x128xf32, #tpu.memory_space<vmem>>, %arg6: memref<1x8x128xf32, #tpu.memory_space<vmem>>, %arg7: memref<8x8xf32, #tpu.memory_space<vmem>>, %arg8: memref<8x8xf32, #tpu.memory_space<vmem>>, %arg9: memref<8x128xf32, #tpu.memory_space<vmem>>) attributes {dimension_semantics = [#tpu.dimension_semantics<parallel>, #tpu.dimension_semantics<parallel>, #tpu.dimension_semantics<arbitrary>], iteration_bounds = array<i64: 2, 1, 1>, scalar_prefetch = 0 : i64, scratch_operands = 3 : i64, tpu.core_type = #tpu.core_type<tc>, window_params = [{transform_indices = @transform_0, window_bounds = array<i64: 1, 8, 128>}, {transform_indices = @transform_1, window_bounds = array<i64: 1, 8, 128>}, {transform_indices = @transform_2, window_bounds = array<i64: 1, 8, 128>}, {transform_indices = @transform_3, window_bounds = array<i64: 1, 8, 128>}]} {
    %c0_i32 = arith.constant 0 : i32
    %0 = arith.cmpi eq, %arg2, %c0_i32 : i32
    %1 = arith.extui %0 : i1 to i32
    %c0_i32_0 = arith.constant 0 : i32
    %2 = arith.cmpi ne, %1, %c0_i32_0 : i32
    scf.if %2 {
      %cst_132 = arith.constant 0xFF800000 : f32
      %236 = vector.broadcast %cst_132 : f32 to vector<8x8xf32>
      %c0_133 = arith.constant 0 : index
      %c0_134 = arith.constant 0 : index
      %237 = vector.load %arg7[%c0_133, %c0_134] : memref<8x8xf32, #tpu.memory_space<vmem>>, vector<8x8xf32>
      tpu.vector_store %arg7[%c0_133, %c0_134], %236 {strides = array<i32>} : memref<8x8xf32, #tpu.memory_space<vmem>>, vector<8x8xf32>,
      %cst_135 = arith.constant 0.000000e+00 : f32
      %238 = vector.broadcast %cst_135 : f32 to vector<8x8xf32>
      %c0_136 = arith.constant 0 : index
      %c0_137 = arith.constant 0 : index
      %239 = vector.load %arg8[%c0_136, %c0_137] : memref<8x8xf32, #tpu.memory_space<vmem>>, vector<8x8xf32>
      tpu.vector_store %arg8[%c0_136, %c0_137], %238 {strides = array<i32>} : memref<8x8xf32, #tpu.memory_space<vmem>>, vector<8x8xf32>,
      %cst_138 = arith.constant 0.000000e+00 : f32
      %240 = vector.broadcast %cst_138 : f32 to vector<8x128xf32>
      %c0_139 = arith.constant 0 : index
      %c0_140 = arith.constant 0 : index
      %241 = vector.load %arg9[%c0_139, %c0_140] : memref<8x128xf32, #tpu.memory_space<vmem>>, vector<8x128xf32>
      tpu.vector_store %arg9[%c0_139, %c0_140], %240 {strides = array<i32>} : memref<8x128xf32, #tpu.memory_space<vmem>>, vector<8x128xf32>,
    } else {
    }
    %c0 = arith.constant 0 : index
    %c0_1 = arith.constant 0 : index
    %c0_2 = arith.constant 0 : index
    %3 = vector.load %arg3[%c0, %c0_1, %c0_2] : memref<1x8x128xf32, #tpu.memory_space<vmem>>, vector<1x8x128xf32>
    %4 = vector.shape_cast %3 : vector<1x8x128xf32> to vector<8x128xf32>
    %c0_3 = arith.constant 0 : index
    %c0_4 = arith.constant 0 : index
    %c0_5 = arith.constant 0 : index
    %5 = vector.load %arg4[%c0_3, %c0_4, %c0_5] : memref<1x8x128xf32, #tpu.memory_space<vmem>>, vector<1x8x128xf32>
    %6 = vector.shape_cast %5 : vector<1x8x128xf32> to vector<8x128xf32>
    %c0_6 = arith.constant 0 : index
    %c0_7 = arith.constant 0 : index
    %c0_8 = arith.constant 0 : index
    %7 = vector.load %arg5[%c0_6, %c0_7, %c0_8] : memref<1x8x128xf32, #tpu.memory_space<vmem>>, vector<1x8x128xf32>
    %8 = vector.shape_cast %7 : vector<1x8x128xf32> to vector<8x128xf32>
    %9 = vector.extract_strided_slice %4 {offsets = [0, 0], sizes = [8, 16], strides = [1, 1]} : vector<8x128xf32> to vector<8x16xf32>
    %10 = vector.extract_strided_slice %6 {offsets = [0, 0], sizes = [8, 16], strides = [1, 1]} : vector<8x128xf32> to vector<8x16xf32>
    %cst = arith.constant dense<0.000000e+00> : vector<8x8xf32>
    %11 = tpu.matmul %9, %10, %cst {dimension_numbers = #tpu.dot_dimension_numbers<[1], [1], [0], [0], [0, 0, 1, 0], [], []>} : vector<8x16xf32>, vector<8x16xf32>, vector<8x8xf32> -> vector<8x8xf32>
    %cst_9 = arith.constant 2.500000e-01 : f32
    %12 = vector.broadcast %cst_9 : f32 to vector<8x8xf32>
    %13 = arith.mulf %11, %12 : vector<8x8xf32>
    %c0_10 = arith.constant 0 : index
    %c0_11 = arith.constant 0 : index
    %14 = vector.load %arg7[%c0_10, %c0_11] : memref<8x8xf32, #tpu.memory_space<vmem>>, vector<8x1xf32>
    %cst_12 = arith.constant dense<0xFF800000> : vector<8xf32>
    %15 = vector.multi_reduction <maximumf>, %13, %cst_12 [1] : vector<8x8xf32> to vector<8xf32>
    %16 = vector.shape_cast %15 : vector<8xf32> to vector<8x1xf32>
    %17 = arith.maximumf %14, %16 : vector<8x1xf32>
    %18 = arith.subf %14, %17 : vector<8x1xf32>
    %19 = math.exp %18 : vector<8x1xf32>
    %20 = vector.broadcast %17 : vector<8x1xf32> to vector<8x8xf32>
    %21 = arith.subf %13, %20 : vector<8x8xf32>
    %22 = math.exp %21 : vector<8x8xf32>
    %c0_13 = arith.constant 0 : index
    %c0_14 = arith.constant 0 : index
    %23 = vector.load %arg8[%c0_13, %c0_14] : memref<8x8xf32, #tpu.memory_space<vmem>>, vector<8x1xf32>
    %24 = arith.mulf %19, %23 : vector<8x1xf32>
    %cst_15 = arith.constant dense<0.000000e+00> : vector<8xf32>
    %25 = vector.multi_reduction <add>, %22, %cst_15 [1] : vector<8x8xf32> to vector<8xf32>
    %26 = vector.shape_cast %25 : vector<8xf32> to vector<8x1xf32>
    %27 = arith.addf %24, %26 : vector<8x1xf32>
    %c0_16 = arith.constant 0 : index
    %c0_17 = arith.constant 0 : index
    %28 = vector.load %arg8[%c0_16, %c0_17] : memref<8x8xf32, #tpu.memory_space<vmem>>, vector<8x1xf32>
    tpu.vector_store %arg8[%c0_16, %c0_17], %27 {strides = array<i32>} : memref<8x8xf32, #tpu.memory_space<vmem>>, vector<8x1xf32>,
    %c0_18 = arith.constant 0 : index
    %c0_19 = arith.constant 0 : index
    %29 = vector.load %arg9[%c0_18, %c0_19] : memref<8x128xf32, #tpu.memory_space<vmem>>, vector<8x16xf32>
    %30 = vector.broadcast %19 : vector<8x1xf32> to vector<8x16xf32>
    %31 = arith.mulf %30, %29 : vector<8x16xf32>
    %32 = vector.extract_strided_slice %8 {offsets = [0, 0], sizes = [8, 16], strides = [1, 1]} : vector<8x128xf32> to vector<8x16xf32>
    %cst_20 = arith.constant dense<0.000000e+00> : vector<8x16xf32>
    %33 = tpu.matmul %22, %32, %cst_20 {dimension_numbers = #tpu.dot_dimension_numbers<[1], [0], [0], [1], [0, 0, 1, 1], [], []>} : vector<8x8xf32>, vector<8x16xf32>, vector<8x16xf32> -> vector<8x16xf32>
    %34 = arith.addf %31, %33 : vector<8x16xf32>
    %c0_21 = arith.constant 0 : index
    %c0_22 = arith.constant 0 : index
    %35 = vector.load %arg9[%c0_21, %c0_22] : memref<8x128xf32, #tpu.memory_space<vmem>>, vector<8x16xf32>
    tpu.vector_store %arg9[%c0_21, %c0_22], %34 {strides = array<i32>} : memref<8x128xf32, #tpu.memory_space<vmem>>, vector<8x16xf32>,
    %c0_23 = arith.constant 0 : index
    %c0_24 = arith.constant 0 : index
    %36 = vector.load %arg7[%c0_23, %c0_24] : memref<8x8xf32, #tpu.memory_space<vmem>>, vector<8x1xf32>
    tpu.vector_store %arg7[%c0_23, %c0_24], %17 {strides = array<i32>} : memref<8x8xf32, #tpu.memory_space<vmem>>, vector<8x1xf32>,
    %37 = vector.extract_strided_slice %4 {offsets = [0, 16], sizes = [8, 16], strides = [1, 1]} : vector<8x128xf32> to vector<8x16xf32>
    %38 = vector.extract_strided_slice %6 {offsets = [0, 16], sizes = [8, 16], strides = [1, 1]} : vector<8x128xf32> to vector<8x16xf32>
    %cst_25 = arith.constant dense<0.000000e+00> : vector<8x8xf32>
    %39 = tpu.matmul %37, %38, %cst_25 {dimension_numbers = #tpu.dot_dimension_numbers<[1], [1], [0], [0], [0, 0, 1, 0], [], []>} : vector<8x16xf32>, vector<8x16xf32>, vector<8x8xf32> -> vector<8x8xf32>
    %cst_26 = arith.constant 2.500000e-01 : f32
    %40 = vector.broadcast %cst_26 : f32 to vector<8x8xf32>
    %41 = arith.mulf %39, %40 : vector<8x8xf32>
    %c0_27 = arith.constant 0 : index
    %c1 = arith.constant 1 : index
    %42 = vector.load %arg7[%c0_27, %c1] : memref<8x8xf32, #tpu.memory_space<vmem>>, vector<8x1xf32>
    %cst_28 = arith.constant dense<0xFF800000> : vector<8xf32>
    %43 = vector.multi_reduction <maximumf>, %41, %cst_28 [1] : vector<8x8xf32> to vector<8xf32>
    %44 = vector.shape_cast %43 : vector<8xf32> to vector<8x1xf32>
    %45 = arith.maximumf %42, %44 : vector<8x1xf32>
    %46 = arith.subf %42, %45 : vector<8x1xf32>
    %47 = math.exp %46 : vector<8x1xf32>
    %48 = vector.broadcast %45 : vector<8x1xf32> to vector<8x8xf32>
    %49 = arith.subf %41, %48 : vector<8x8xf32>
    %50 = math.exp %49 : vector<8x8xf32>
    %c0_29 = arith.constant 0 : index
    %c1_30 = arith.constant 1 : index
    %51 = vector.load %arg8[%c0_29, %c1_30] : memref<8x8xf32, #tpu.memory_space<vmem>>, vector<8x1xf32>
    %52 = arith.mulf %47, %51 : vector<8x1xf32>
    %cst_31 = arith.constant dense<0.000000e+00> : vector<8xf32>
    %53 = vector.multi_reduction <add>, %50, %cst_31 [1] : vector<8x8xf32> to vector<8xf32>
    %54 = vector.shape_cast %53 : vector<8xf32> to vector<8x1xf32>
    %55 = arith.addf %52, %54 : vector<8x1xf32>
    %c0_32 = arith.constant 0 : index
    %c1_33 = arith.constant 1 : index
    %56 = vector.load %arg8[%c0_32, %c1_33] : memref<8x8xf32, #tpu.memory_space<vmem>>, vector<8x1xf32>
    tpu.vector_store %arg8[%c0_32, %c1_33], %55 {strides = array<i32>} : memref<8x8xf32, #tpu.memory_space<vmem>>, vector<8x1xf32>,
    %c0_34 = arith.constant 0 : index
    %c16 = arith.constant 16 : index
    %57 = vector.load %arg9[%c0_34, %c16] : memref<8x128xf32, #tpu.memory_space<vmem>>, vector<8x16xf32>
    %58 = vector.broadcast %47 : vector<8x1xf32> to vector<8x16xf32>
    %59 = arith.mulf %58, %57 : vector<8x16xf32>
    %60 = vector.extract_strided_slice %8 {offsets = [0, 16], sizes = [8, 16], strides = [1, 1]} : vector<8x128xf32> to vector<8x16xf32>
    %cst_35 = arith.constant dense<0.000000e+00> : vector<8x16xf32>
    %61 = tpu.matmul %50, %60, %cst_35 {dimension_numbers = #tpu.dot_dimension_numbers<[1], [0], [0], [1], [0, 0, 1, 1], [], []>} : vector<8x8xf32>, vector<8x16xf32>, vector<8x16xf32> -> vector<8x16xf32>
    %62 = arith.addf %59, %61 : vector<8x16xf32>
    %c0_36 = arith.constant 0 : index
    %c16_37 = arith.constant 16 : index
    %63 = vector.load %arg9[%c0_36, %c16_37] : memref<8x128xf32, #tpu.memory_space<vmem>>, vector<8x16xf32>
    tpu.vector_store %arg9[%c0_36, %c16_37], %62 {strides = array<i32>} : memref<8x128xf32, #tpu.memory_space<vmem>>, vector<8x16xf32>,
    %c0_38 = arith.constant 0 : index
    %c1_39 = arith.constant 1 : index
    %64 = vector.load %arg7[%c0_38, %c1_39] : memref<8x8xf32, #tpu.memory_space<vmem>>, vector<8x1xf32>
    tpu.vector_store %arg7[%c0_38, %c1_39], %45 {strides = array<i32>} : memref<8x8xf32, #tpu.memory_space<vmem>>, vector<8x1xf32>,
    %65 = vector.extract_strided_slice %4 {offsets = [0, 32], sizes = [8, 16], strides = [1, 1]} : vector<8x128xf32> to vector<8x16xf32>
    %66 = vector.extract_strided_slice %6 {offsets = [0, 32], sizes = [8, 16], strides = [1, 1]} : vector<8x128xf32> to vector<8x16xf32>
    %cst_40 = arith.constant dense<0.000000e+00> : vector<8x8xf32>
    %67 = tpu.matmul %65, %66, %cst_40 {dimension_numbers = #tpu.dot_dimension_numbers<[1], [1], [0], [0], [0, 0, 1, 0], [], []>} : vector<8x16xf32>, vector<8x16xf32>, vector<8x8xf32> -> vector<8x8xf32>
    %cst_41 = arith.constant 2.500000e-01 : f32
    %68 = vector.broadcast %cst_41 : f32 to vector<8x8xf32>
    %69 = arith.mulf %67, %68 : vector<8x8xf32>
    %c0_42 = arith.constant 0 : index
    %c2 = arith.constant 2 : index
    %70 = vector.load %arg7[%c0_42, %c2] : memref<8x8xf32, #tpu.memory_space<vmem>>, vector<8x1xf32>
    %cst_43 = arith.constant dense<0xFF800000> : vector<8xf32>
    %71 = vector.multi_reduction <maximumf>, %69, %cst_43 [1] : vector<8x8xf32> to vector<8xf32>
    %72 = vector.shape_cast %71 : vector<8xf32> to vector<8x1xf32>
    %73 = arith.maximumf %70, %72 : vector<8x1xf32>
    %74 = arith.subf %70, %73 : vector<8x1xf32>
    %75 = math.exp %74 : vector<8x1xf32>
    %76 = vector.broadcast %73 : vector<8x1xf32> to vector<8x8xf32>
    %77 = arith.subf %69, %76 : vector<8x8xf32>
    %78 = math.exp %77 : vector<8x8xf32>
    %c0_44 = arith.constant 0 : index
    %c2_45 = arith.constant 2 : index
    %79 = vector.load %arg8[%c0_44, %c2_45] : memref<8x8xf32, #tpu.memory_space<vmem>>, vector<8x1xf32>
    %80 = arith.mulf %75, %79 : vector<8x1xf32>
    %cst_46 = arith.constant dense<0.000000e+00> : vector<8xf32>
    %81 = vector.multi_reduction <add>, %78, %cst_46 [1] : vector<8x8xf32> to vector<8xf32>
    %82 = vector.shape_cast %81 : vector<8xf32> to vector<8x1xf32>
    %83 = arith.addf %80, %82 : vector<8x1xf32>
    %c0_47 = arith.constant 0 : index
    %c2_48 = arith.constant 2 : index
    %84 = vector.load %arg8[%c0_47, %c2_48] : memref<8x8xf32, #tpu.memory_space<vmem>>, vector<8x1xf32>
    tpu.vector_store %arg8[%c0_47, %c2_48], %83 {strides = array<i32>} : memref<8x8xf32, #tpu.memory_space<vmem>>, vector<8x1xf32>,
    %c0_49 = arith.constant 0 : index
    %c32 = arith.constant 32 : index
    %85 = vector.load %arg9[%c0_49, %c32] : memref<8x128xf32, #tpu.memory_space<vmem>>, vector<8x16xf32>
    %86 = vector.broadcast %75 : vector<8x1xf32> to vector<8x16xf32>
    %87 = arith.mulf %86, %85 : vector<8x16xf32>
    %88 = vector.extract_strided_slice %8 {offsets = [0, 32], sizes = [8, 16], strides = [1, 1]} : vector<8x128xf32> to vector<8x16xf32>
    %cst_50 = arith.constant dense<0.000000e+00> : vector<8x16xf32>
    %89 = tpu.matmul %78, %88, %cst_50 {dimension_numbers = #tpu.dot_dimension_numbers<[1], [0], [0], [1], [0, 0, 1, 1], [], []>} : vector<8x8xf32>, vector<8x16xf32>, vector<8x16xf32> -> vector<8x16xf32>
    %90 = arith.addf %87, %89 : vector<8x16xf32>
    %c0_51 = arith.constant 0 : index
    %c32_52 = arith.constant 32 : index
    %91 = vector.load %arg9[%c0_51, %c32_52] : memref<8x128xf32, #tpu.memory_space<vmem>>, vector<8x16xf32>
    tpu.vector_store %arg9[%c0_51, %c32_52], %90 {strides = array<i32>} : memref<8x128xf32, #tpu.memory_space<vmem>>, vector<8x16xf32>,
    %c0_53 = arith.constant 0 : index
    %c2_54 = arith.constant 2 : index
    %92 = vector.load %arg7[%c0_53, %c2_54] : memref<8x8xf32, #tpu.memory_space<vmem>>, vector<8x1xf32>
    tpu.vector_store %arg7[%c0_53, %c2_54], %73 {strides = array<i32>} : memref<8x8xf32, #tpu.memory_space<vmem>>, vector<8x1xf32>,
    %93 = vector.extract_strided_slice %4 {offsets = [0, 48], sizes = [8, 16], strides = [1, 1]} : vector<8x128xf32> to vector<8x16xf32>
    %94 = vector.extract_strided_slice %6 {offsets = [0, 48], sizes = [8, 16], strides = [1, 1]} : vector<8x128xf32> to vector<8x16xf32>
    %cst_55 = arith.constant dense<0.000000e+00> : vector<8x8xf32>
    %95 = tpu.matmul %93, %94, %cst_55 {dimension_numbers = #tpu.dot_dimension_numbers<[1], [1], [0], [0], [0, 0, 1, 0], [], []>} : vector<8x16xf32>, vector<8x16xf32>, vector<8x8xf32> -> vector<8x8xf32>
    %cst_56 = arith.constant 2.500000e-01 : f32
    %96 = vector.broadcast %cst_56 : f32 to vector<8x8xf32>
    %97 = arith.mulf %95, %96 : vector<8x8xf32>
    %c0_57 = arith.constant 0 : index
    %c3 = arith.constant 3 : index
    %98 = vector.load %arg7[%c0_57, %c3] : memref<8x8xf32, #tpu.memory_space<vmem>>, vector<8x1xf32>
    %cst_58 = arith.constant dense<0xFF800000> : vector<8xf32>
    %99 = vector.multi_reduction <maximumf>, %97, %cst_58 [1] : vector<8x8xf32> to vector<8xf32>
    %100 = vector.shape_cast %99 : vector<8xf32> to vector<8x1xf32>
    %101 = arith.maximumf %98, %100 : vector<8x1xf32>
    %102 = arith.subf %98, %101 : vector<8x1xf32>
    %103 = math.exp %102 : vector<8x1xf32>
    %104 = vector.broadcast %101 : vector<8x1xf32> to vector<8x8xf32>
    %105 = arith.subf %97, %104 : vector<8x8xf32>
    %106 = math.exp %105 : vector<8x8xf32>
    %c0_59 = arith.constant 0 : index
    %c3_60 = arith.constant 3 : index
    %107 = vector.load %arg8[%c0_59, %c3_60] : memref<8x8xf32, #tpu.memory_space<vmem>>, vector<8x1xf32>
    %108 = arith.mulf %103, %107 : vector<8x1xf32>
    %cst_61 = arith.constant dense<0.000000e+00> : vector<8xf32>
    %109 = vector.multi_reduction <add>, %106, %cst_61 [1] : vector<8x8xf32> to vector<8xf32>
    %110 = vector.shape_cast %109 : vector<8xf32> to vector<8x1xf32>
    %111 = arith.addf %108, %110 : vector<8x1xf32>
    %c0_62 = arith.constant 0 : index
    %c3_63 = arith.constant 3 : index
    %112 = vector.load %arg8[%c0_62, %c3_63] : memref<8x8xf32, #tpu.memory_space<vmem>>, vector<8x1xf32>
    tpu.vector_store %arg8[%c0_62, %c3_63], %111 {strides = array<i32>} : memref<8x8xf32, #tpu.memory_space<vmem>>, vector<8x1xf32>,
    %c0_64 = arith.constant 0 : index
    %c48 = arith.constant 48 : index
    %113 = vector.load %arg9[%c0_64, %c48] : memref<8x128xf32, #tpu.memory_space<vmem>>, vector<8x16xf32>
    %114 = vector.broadcast %103 : vector<8x1xf32> to vector<8x16xf32>
    %115 = arith.mulf %114, %113 : vector<8x16xf32>
    %116 = vector.extract_strided_slice %8 {offsets = [0, 48], sizes = [8, 16], strides = [1, 1]} : vector<8x128xf32> to vector<8x16xf32>
    %cst_65 = arith.constant dense<0.000000e+00> : vector<8x16xf32>
    %117 = tpu.matmul %106, %116, %cst_65 {dimension_numbers = #tpu.dot_dimension_numbers<[1], [0], [0], [1], [0, 0, 1, 1], [], []>} : vector<8x8xf32>, vector<8x16xf32>, vector<8x16xf32> -> vector<8x16xf32>
    %118 = arith.addf %115, %117 : vector<8x16xf32>
    %c0_66 = arith.constant 0 : index
    %c48_67 = arith.constant 48 : index
    %119 = vector.load %arg9[%c0_66, %c48_67] : memref<8x128xf32, #tpu.memory_space<vmem>>, vector<8x16xf32>
    tpu.vector_store %arg9[%c0_66, %c48_67], %118 {strides = array<i32>} : memref<8x128xf32, #tpu.memory_space<vmem>>, vector<8x16xf32>,
    %c0_68 = arith.constant 0 : index
    %c3_69 = arith.constant 3 : index
    %120 = vector.load %arg7[%c0_68, %c3_69] : memref<8x8xf32, #tpu.memory_space<vmem>>, vector<8x1xf32>
    tpu.vector_store %arg7[%c0_68, %c3_69], %101 {strides = array<i32>} : memref<8x8xf32, #tpu.memory_space<vmem>>, vector<8x1xf32>,
    %121 = vector.extract_strided_slice %4 {offsets = [0, 64], sizes = [8, 16], strides = [1, 1]} : vector<8x128xf32> to vector<8x16xf32>
    %122 = vector.extract_strided_slice %6 {offsets = [0, 64], sizes = [8, 16], strides = [1, 1]} : vector<8x128xf32> to vector<8x16xf32>
    %cst_70 = arith.constant dense<0.000000e+00> : vector<8x8xf32>
    %123 = tpu.matmul %121, %122, %cst_70 {dimension_numbers = #tpu.dot_dimension_numbers<[1], [1], [0], [0], [0, 0, 1, 0], [], []>} : vector<8x16xf32>, vector<8x16xf32>, vector<8x8xf32> -> vector<8x8xf32>
    %cst_71 = arith.constant 2.500000e-01 : f32
    %124 = vector.broadcast %cst_71 : f32 to vector<8x8xf32>
    %125 = arith.mulf %123, %124 : vector<8x8xf32>
    %c0_72 = arith.constant 0 : index
    %c4 = arith.constant 4 : index
    %126 = vector.load %arg7[%c0_72, %c4] : memref<8x8xf32, #tpu.memory_space<vmem>>, vector<8x1xf32>
    %cst_73 = arith.constant dense<0xFF800000> : vector<8xf32>
    %127 = vector.multi_reduction <maximumf>, %125, %cst_73 [1] : vector<8x8xf32> to vector<8xf32>
    %128 = vector.shape_cast %127 : vector<8xf32> to vector<8x1xf32>
    %129 = arith.maximumf %126, %128 : vector<8x1xf32>
    %130 = arith.subf %126, %129 : vector<8x1xf32>
    %131 = math.exp %130 : vector<8x1xf32>
    %132 = vector.broadcast %129 : vector<8x1xf32> to vector<8x8xf32>
    %133 = arith.subf %125, %132 : vector<8x8xf32>
    %134 = math.exp %133 : vector<8x8xf32>
    %c0_74 = arith.constant 0 : index
    %c4_75 = arith.constant 4 : index
    %135 = vector.load %arg8[%c0_74, %c4_75] : memref<8x8xf32, #tpu.memory_space<vmem>>, vector<8x1xf32>
    %136 = arith.mulf %131, %135 : vector<8x1xf32>
    %cst_76 = arith.constant dense<0.000000e+00> : vector<8xf32>
    %137 = vector.multi_reduction <add>, %134, %cst_76 [1] : vector<8x8xf32> to vector<8xf32>
    %138 = vector.shape_cast %137 : vector<8xf32> to vector<8x1xf32>
    %139 = arith.addf %136, %138 : vector<8x1xf32>
    %c0_77 = arith.constant 0 : index
    %c4_78 = arith.constant 4 : index
    %140 = vector.load %arg8[%c0_77, %c4_78] : memref<8x8xf32, #tpu.memory_space<vmem>>, vector<8x1xf32>
    tpu.vector_store %arg8[%c0_77, %c4_78], %139 {strides = array<i32>} : memref<8x8xf32, #tpu.memory_space<vmem>>, vector<8x1xf32>,
    %c0_79 = arith.constant 0 : index
    %c64 = arith.constant 64 : index
    %141 = vector.load %arg9[%c0_79, %c64] : memref<8x128xf32, #tpu.memory_space<vmem>>, vector<8x16xf32>
    %142 = vector.broadcast %131 : vector<8x1xf32> to vector<8x16xf32>
    %143 = arith.mulf %142, %141 : vector<8x16xf32>
    %144 = vector.extract_strided_slice %8 {offsets = [0, 64], sizes = [8, 16], strides = [1, 1]} : vector<8x128xf32> to vector<8x16xf32>
    %cst_80 = arith.constant dense<0.000000e+00> : vector<8x16xf32>
    %145 = tpu.matmul %134, %144, %cst_80 {dimension_numbers = #tpu.dot_dimension_numbers<[1], [0], [0], [1], [0, 0, 1, 1], [], []>} : vector<8x8xf32>, vector<8x16xf32>, vector<8x16xf32> -> vector<8x16xf32>
    %146 = arith.addf %143, %145 : vector<8x16xf32>
    %c0_81 = arith.constant 0 : index
    %c64_82 = arith.constant 64 : index
    %147 = vector.load %arg9[%c0_81, %c64_82] : memref<8x128xf32, #tpu.memory_space<vmem>>, vector<8x16xf32>
    tpu.vector_store %arg9[%c0_81, %c64_82], %146 {strides = array<i32>} : memref<8x128xf32, #tpu.memory_space<vmem>>, vector<8x16xf32>,
    %c0_83 = arith.constant 0 : index
    %c4_84 = arith.constant 4 : index
    %148 = vector.load %arg7[%c0_83, %c4_84] : memref<8x8xf32, #tpu.memory_space<vmem>>, vector<8x1xf32>
    tpu.vector_store %arg7[%c0_83, %c4_84], %129 {strides = array<i32>} : memref<8x8xf32, #tpu.memory_space<vmem>>, vector<8x1xf32>,
    %149 = vector.extract_strided_slice %4 {offsets = [0, 80], sizes = [8, 16], strides = [1, 1]} : vector<8x128xf32> to vector<8x16xf32>
    %150 = vector.extract_strided_slice %6 {offsets = [0, 80], sizes = [8, 16], strides = [1, 1]} : vector<8x128xf32> to vector<8x16xf32>
    %cst_85 = arith.constant dense<0.000000e+00> : vector<8x8xf32>
    %151 = tpu.matmul %149, %150, %cst_85 {dimension_numbers = #tpu.dot_dimension_numbers<[1], [1], [0], [0], [0, 0, 1, 0], [], []>} : vector<8x16xf32>, vector<8x16xf32>, vector<8x8xf32> -> vector<8x8xf32>
    %cst_86 = arith.constant 2.500000e-01 : f32
    %152 = vector.broadcast %cst_86 : f32 to vector<8x8xf32>
    %153 = arith.mulf %151, %152 : vector<8x8xf32>
    %c0_87 = arith.constant 0 : index
    %c5 = arith.constant 5 : index
    %154 = vector.load %arg7[%c0_87, %c5] : memref<8x8xf32, #tpu.memory_space<vmem>>, vector<8x1xf32>
    %cst_88 = arith.constant dense<0xFF800000> : vector<8xf32>
    %155 = vector.multi_reduction <maximumf>, %153, %cst_88 [1] : vector<8x8xf32> to vector<8xf32>
    %156 = vector.shape_cast %155 : vector<8xf32> to vector<8x1xf32>
    %157 = arith.maximumf %154, %156 : vector<8x1xf32>
    %158 = arith.subf %154, %157 : vector<8x1xf32>
    %159 = math.exp %158 : vector<8x1xf32>
    %160 = vector.broadcast %157 : vector<8x1xf32> to vector<8x8xf32>
    %161 = arith.subf %153, %160 : vector<8x8xf32>
    %162 = math.exp %161 : vector<8x8xf32>
    %c0_89 = arith.constant 0 : index
    %c5_90 = arith.constant 5 : index
    %163 = vector.load %arg8[%c0_89, %c5_90] : memref<8x8xf32, #tpu.memory_space<vmem>>, vector<8x1xf32>
    %164 = arith.mulf %159, %163 : vector<8x1xf32>
    %cst_91 = arith.constant dense<0.000000e+00> : vector<8xf32>
    %165 = vector.multi_reduction <add>, %162, %cst_91 [1] : vector<8x8xf32> to vector<8xf32>
    %166 = vector.shape_cast %165 : vector<8xf32> to vector<8x1xf32>
    %167 = arith.addf %164, %166 : vector<8x1xf32>
    %c0_92 = arith.constant 0 : index
    %c5_93 = arith.constant 5 : index
    %168 = vector.load %arg8[%c0_92, %c5_93] : memref<8x8xf32, #tpu.memory_space<vmem>>, vector<8x1xf32>
    tpu.vector_store %arg8[%c0_92, %c5_93], %167 {strides = array<i32>} : memref<8x8xf32, #tpu.memory_space<vmem>>, vector<8x1xf32>,
    %c0_94 = arith.constant 0 : index
    %c80 = arith.constant 80 : index
    %169 = vector.load %arg9[%c0_94, %c80] : memref<8x128xf32, #tpu.memory_space<vmem>>, vector<8x16xf32>
    %170 = vector.broadcast %159 : vector<8x1xf32> to vector<8x16xf32>
    %171 = arith.mulf %170, %169 : vector<8x16xf32>
    %172 = vector.extract_strided_slice %8 {offsets = [0, 80], sizes = [8, 16], strides = [1, 1]} : vector<8x128xf32> to vector<8x16xf32>
    %cst_95 = arith.constant dense<0.000000e+00> : vector<8x16xf32>
    %173 = tpu.matmul %162, %172, %cst_95 {dimension_numbers = #tpu.dot_dimension_numbers<[1], [0], [0], [1], [0, 0, 1, 1], [], []>} : vector<8x8xf32>, vector<8x16xf32>, vector<8x16xf32> -> vector<8x16xf32>
    %174 = arith.addf %171, %173 : vector<8x16xf32>
    %c0_96 = arith.constant 0 : index
    %c80_97 = arith.constant 80 : index
    %175 = vector.load %arg9[%c0_96, %c80_97] : memref<8x128xf32, #tpu.memory_space<vmem>>, vector<8x16xf32>
    tpu.vector_store %arg9[%c0_96, %c80_97], %174 {strides = array<i32>} : memref<8x128xf32, #tpu.memory_space<vmem>>, vector<8x16xf32>,
    %c0_98 = arith.constant 0 : index
    %c5_99 = arith.constant 5 : index
    %176 = vector.load %arg7[%c0_98, %c5_99] : memref<8x8xf32, #tpu.memory_space<vmem>>, vector<8x1xf32>
    tpu.vector_store %arg7[%c0_98, %c5_99], %157 {strides = array<i32>} : memref<8x8xf32, #tpu.memory_space<vmem>>, vector<8x1xf32>,
    %177 = vector.extract_strided_slice %4 {offsets = [0, 96], sizes = [8, 16], strides = [1, 1]} : vector<8x128xf32> to vector<8x16xf32>
    %178 = vector.extract_strided_slice %6 {offsets = [0, 96], sizes = [8, 16], strides = [1, 1]} : vector<8x128xf32> to vector<8x16xf32>
    %cst_100 = arith.constant dense<0.000000e+00> : vector<8x8xf32>
    %179 = tpu.matmul %177, %178, %cst_100 {dimension_numbers = #tpu.dot_dimension_numbers<[1], [1], [0], [0], [0, 0, 1, 0], [], []>} : vector<8x16xf32>, vector<8x16xf32>, vector<8x8xf32> -> vector<8x8xf32>
    %cst_101 = arith.constant 2.500000e-01 : f32
    %180 = vector.broadcast %cst_101 : f32 to vector<8x8xf32>
    %181 = arith.mulf %179, %180 : vector<8x8xf32>
    %c0_102 = arith.constant 0 : index
    %c6 = arith.constant 6 : index
    %182 = vector.load %arg7[%c0_102, %c6] : memref<8x8xf32, #tpu.memory_space<vmem>>, vector<8x1xf32>
    %cst_103 = arith.constant dense<0xFF800000> : vector<8xf32>
    %183 = vector.multi_reduction <maximumf>, %181, %cst_103 [1] : vector<8x8xf32> to vector<8xf32>
    %184 = vector.shape_cast %183 : vector<8xf32> to vector<8x1xf32>
    %185 = arith.maximumf %182, %184 : vector<8x1xf32>
    %186 = arith.subf %182, %185 : vector<8x1xf32>
    %187 = math.exp %186 : vector<8x1xf32>
    %188 = vector.broadcast %185 : vector<8x1xf32> to vector<8x8xf32>
    %189 = arith.subf %181, %188 : vector<8x8xf32>
    %190 = math.exp %189 : vector<8x8xf32>
    %c0_104 = arith.constant 0 : index
    %c6_105 = arith.constant 6 : index
    %191 = vector.load %arg8[%c0_104, %c6_105] : memref<8x8xf32, #tpu.memory_space<vmem>>, vector<8x1xf32>
    %192 = arith.mulf %187, %191 : vector<8x1xf32>
    %cst_106 = arith.constant dense<0.000000e+00> : vector<8xf32>
    %193 = vector.multi_reduction <add>, %190, %cst_106 [1] : vector<8x8xf32> to vector<8xf32>
    %194 = vector.shape_cast %193 : vector<8xf32> to vector<8x1xf32>
    %195 = arith.addf %192, %194 : vector<8x1xf32>
    %c0_107 = arith.constant 0 : index
    %c6_108 = arith.constant 6 : index
    %196 = vector.load %arg8[%c0_107, %c6_108] : memref<8x8xf32, #tpu.memory_space<vmem>>, vector<8x1xf32>
    tpu.vector_store %arg8[%c0_107, %c6_108], %195 {strides = array<i32>} : memref<8x8xf32, #tpu.memory_space<vmem>>, vector<8x1xf32>,
    %c0_109 = arith.constant 0 : index
    %c96 = arith.constant 96 : index
    %197 = vector.load %arg9[%c0_109, %c96] : memref<8x128xf32, #tpu.memory_space<vmem>>, vector<8x16xf32>
    %198 = vector.broadcast %187 : vector<8x1xf32> to vector<8x16xf32>
    %199 = arith.mulf %198, %197 : vector<8x16xf32>
    %200 = vector.extract_strided_slice %8 {offsets = [0, 96], sizes = [8, 16], strides = [1, 1]} : vector<8x128xf32> to vector<8x16xf32>
    %cst_110 = arith.constant dense<0.000000e+00> : vector<8x16xf32>
    %201 = tpu.matmul %190, %200, %cst_110 {dimension_numbers = #tpu.dot_dimension_numbers<[1], [0], [0], [1], [0, 0, 1, 1], [], []>} : vector<8x8xf32>, vector<8x16xf32>, vector<8x16xf32> -> vector<8x16xf32>
    %202 = arith.addf %199, %201 : vector<8x16xf32>
    %c0_111 = arith.constant 0 : index
    %c96_112 = arith.constant 96 : index
    %203 = vector.load %arg9[%c0_111, %c96_112] : memref<8x128xf32, #tpu.memory_space<vmem>>, vector<8x16xf32>
    tpu.vector_store %arg9[%c0_111, %c96_112], %202 {strides = array<i32>} : memref<8x128xf32, #tpu.memory_space<vmem>>, vector<8x16xf32>,
    %c0_113 = arith.constant 0 : index
    %c6_114 = arith.constant 6 : index
    %204 = vector.load %arg7[%c0_113, %c6_114] : memref<8x8xf32, #tpu.memory_space<vmem>>, vector<8x1xf32>
    tpu.vector_store %arg7[%c0_113, %c6_114], %185 {strides = array<i32>} : memref<8x8xf32, #tpu.memory_space<vmem>>, vector<8x1xf32>,
    %205 = vector.extract_strided_slice %4 {offsets = [0, 112], sizes = [8, 16], strides = [1, 1]} : vector<8x128xf32> to vector<8x16xf32>
    %206 = vector.extract_strided_slice %6 {offsets = [0, 112], sizes = [8, 16], strides = [1, 1]} : vector<8x128xf32> to vector<8x16xf32>
    %cst_115 = arith.constant dense<0.000000e+00> : vector<8x8xf32>
    %207 = tpu.matmul %205, %206, %cst_115 {dimension_numbers = #tpu.dot_dimension_numbers<[1], [1], [0], [0], [0, 0, 1, 0], [], []>} : vector<8x16xf32>, vector<8x16xf32>, vector<8x8xf32> -> vector<8x8xf32>
    %cst_116 = arith.constant 2.500000e-01 : f32
    %208 = vector.broadcast %cst_116 : f32 to vector<8x8xf32>
    %209 = arith.mulf %207, %208 : vector<8x8xf32>
    %c0_117 = arith.constant 0 : index
    %c7 = arith.constant 7 : index
    %210 = vector.load %arg7[%c0_117, %c7] : memref<8x8xf32, #tpu.memory_space<vmem>>, vector<8x1xf32>
    %cst_118 = arith.constant dense<0xFF800000> : vector<8xf32>
    %211 = vector.multi_reduction <maximumf>, %209, %cst_118 [1] : vector<8x8xf32> to vector<8xf32>
    %212 = vector.shape_cast %211 : vector<8xf32> to vector<8x1xf32>
    %213 = arith.maximumf %210, %212 : vector<8x1xf32>
    %214 = arith.subf %210, %213 : vector<8x1xf32>
    %215 = math.exp %214 : vector<8x1xf32>
    %216 = vector.broadcast %213 : vector<8x1xf32> to vector<8x8xf32>
    %217 = arith.subf %209, %216 : vector<8x8xf32>
    %218 = math.exp %217 : vector<8x8xf32>
    %c0_119 = arith.constant 0 : index
    %c7_120 = arith.constant 7 : index
    %219 = vector.load %arg8[%c0_119, %c7_120] : memref<8x8xf32, #tpu.memory_space<vmem>>, vector<8x1xf32>
    %220 = arith.mulf %215, %219 : vector<8x1xf32>
    %cst_121 = arith.constant dense<0.000000e+00> : vector<8xf32>
    %221 = vector.multi_reduction <add>, %218, %cst_121 [1] : vector<8x8xf32> to vector<8xf32>
    %222 = vector.shape_cast %221 : vector<8xf32> to vector<8x1xf32>
    %223 = arith.addf %220, %222 : vector<8x1xf32>
    %c0_122 = arith.constant 0 : index
    %c7_123 = arith.constant 7 : index
    %224 = vector.load %arg8[%c0_122, %c7_123] : memref<8x8xf32, #tpu.memory_space<vmem>>, vector<8x1xf32>
    tpu.vector_store %arg8[%c0_122, %c7_123], %223 {strides = array<i32>} : memref<8x8xf32, #tpu.memory_space<vmem>>, vector<8x1xf32>,
    %c0_124 = arith.constant 0 : index
    %c112 = arith.constant 112 : index
    %225 = vector.load %arg9[%c0_124, %c112] : memref<8x128xf32, #tpu.memory_space<vmem>>, vector<8x16xf32>
    %226 = vector.broadcast %215 : vector<8x1xf32> to vector<8x16xf32>
    %227 = arith.mulf %226, %225 : vector<8x16xf32>
    %228 = vector.extract_strided_slice %8 {offsets = [0, 112], sizes = [8, 16], strides = [1, 1]} : vector<8x128xf32> to vector<8x16xf32>
    %cst_125 = arith.constant dense<0.000000e+00> : vector<8x16xf32>
    %229 = tpu.matmul %218, %228, %cst_125 {dimension_numbers = #tpu.dot_dimension_numbers<[1], [0], [0], [1], [0, 0, 1, 1], [], []>} : vector<8x8xf32>, vector<8x16xf32>, vector<8x16xf32> -> vector<8x16xf32>
    %230 = arith.addf %227, %229 : vector<8x16xf32>
    %c0_126 = arith.constant 0 : index
    %c112_127 = arith.constant 112 : index
    %231 = vector.load %arg9[%c0_126, %c112_127] : memref<8x128xf32, #tpu.memory_space<vmem>>, vector<8x16xf32>
    tpu.vector_store %arg9[%c0_126, %c112_127], %230 {strides = array<i32>} : memref<8x128xf32, #tpu.memory_space<vmem>>, vector<8x16xf32>,
    %c0_128 = arith.constant 0 : index
    %c7_129 = arith.constant 7 : index
    %232 = vector.load %arg7[%c0_128, %c7_129] : memref<8x8xf32, #tpu.memory_space<vmem>>, vector<8x1xf32>
    tpu.vector_store %arg7[%c0_128, %c7_129], %213 {strides = array<i32>} : memref<8x8xf32, #tpu.memory_space<vmem>>, vector<8x1xf32>,
    %c0_i32_130 = arith.constant 0 : i32
    %233 = arith.cmpi eq, %arg2, %c0_i32_130 : i32
    %234 = arith.extui %233 : i1 to i32
    %c0_i32_131 = arith.constant 0 : i32
    %235 = arith.cmpi ne, %234, %c0_i32_131 : i32
    scf.if %235 {
      %c0_132 = arith.constant 0 : index
      %c0_133 = arith.constant 0 : index
      %236 = vector.load %arg8[%c0_132, %c0_133] : memref<8x8xf32, #tpu.memory_space<vmem>>, vector<8x1xf32>
      %237 = tpu.reciprocal %236 {approx = true} : vector<8x1xf32> -> vector<8x1xf32>
      %c0_134 = arith.constant 0 : index
      %c0_135 = arith.constant 0 : index
      %238 = vector.load %arg9[%c0_134, %c0_135] : memref<8x128xf32, #tpu.memory_space<vmem>>, vector<8x16xf32>
      %239 = vector.broadcast %237 : vector<8x1xf32> to vector<8x16xf32>
      %240 = arith.mulf %238, %239 : vector<8x16xf32>
      %c0_136 = arith.constant 0 : index
      %c0_137 = arith.constant 0 : index
      %241 = vector.load %arg9[%c0_136, %c0_137] : memref<8x128xf32, #tpu.memory_space<vmem>>, vector<8x16xf32>
      tpu.vector_store %arg9[%c0_136, %c0_137], %240 {strides = array<i32>} : memref<8x128xf32, #tpu.memory_space<vmem>>, vector<8x16xf32>,
      %c0_138 = arith.constant 0 : index
      %c1_139 = arith.constant 1 : index
      %242 = vector.load %arg8[%c0_138, %c1_139] : memref<8x8xf32, #tpu.memory_space<vmem>>, vector<8x1xf32>
      %243 = tpu.reciprocal %242 {approx = true} : vector<8x1xf32> -> vector<8x1xf32>
      %c0_140 = arith.constant 0 : index
      %c16_141 = arith.constant 16 : index
      %244 = vector.load %arg9[%c0_140, %c16_141] : memref<8x128xf32, #tpu.memory_space<vmem>>, vector<8x16xf32>
      %245 = vector.broadcast %243 : vector<8x1xf32> to vector<8x16xf32>
      %246 = arith.mulf %244, %245 : vector<8x16xf32>
      %c0_142 = arith.constant 0 : index
      %c16_143 = arith.constant 16 : index
      %247 = vector.load %arg9[%c0_142, %c16_143] : memref<8x128xf32, #tpu.memory_space<vmem>>, vector<8x16xf32>
      tpu.vector_store %arg9[%c0_142, %c16_143], %246 {strides = array<i32>} : memref<8x128xf32, #tpu.memory_space<vmem>>, vector<8x16xf32>,
      %c0_144 = arith.constant 0 : index
      %c2_145 = arith.constant 2 : index
      %248 = vector.load %arg8[%c0_144, %c2_145] : memref<8x8xf32, #tpu.memory_space<vmem>>, vector<8x1xf32>
      %249 = tpu.reciprocal %248 {approx = true} : vector<8x1xf32> -> vector<8x1xf32>
      %c0_146 = arith.constant 0 : index
      %c32_147 = arith.constant 32 : index
      %250 = vector.load %arg9[%c0_146, %c32_147] : memref<8x128xf32, #tpu.memory_space<vmem>>, vector<8x16xf32>
      %251 = vector.broadcast %249 : vector<8x1xf32> to vector<8x16xf32>
      %252 = arith.mulf %250, %251 : vector<8x16xf32>
      %c0_148 = arith.constant 0 : index
      %c32_149 = arith.constant 32 : index
      %253 = vector.load %arg9[%c0_148, %c32_149] : memref<8x128xf32, #tpu.memory_space<vmem>>, vector<8x16xf32>
      tpu.vector_store %arg9[%c0_148, %c32_149], %252 {strides = array<i32>} : memref<8x128xf32, #tpu.memory_space<vmem>>, vector<8x16xf32>,
      %c0_150 = arith.constant 0 : index
      %c3_151 = arith.constant 3 : index
      %254 = vector.load %arg8[%c0_150, %c3_151] : memref<8x8xf32, #tpu.memory_space<vmem>>, vector<8x1xf32>
      %255 = tpu.reciprocal %254 {approx = true} : vector<8x1xf32> -> vector<8x1xf32>
      %c0_152 = arith.constant 0 : index
      %c48_153 = arith.constant 48 : index
      %256 = vector.load %arg9[%c0_152, %c48_153] : memref<8x128xf32, #tpu.memory_space<vmem>>, vector<8x16xf32>
      %257 = vector.broadcast %255 : vector<8x1xf32> to vector<8x16xf32>
      %258 = arith.mulf %256, %257 : vector<8x16xf32>
      %c0_154 = arith.constant 0 : index
      %c48_155 = arith.constant 48 : index
      %259 = vector.load %arg9[%c0_154, %c48_155] : memref<8x128xf32, #tpu.memory_space<vmem>>, vector<8x16xf32>
      tpu.vector_store %arg9[%c0_154, %c48_155], %258 {strides = array<i32>} : memref<8x128xf32, #tpu.memory_space<vmem>>, vector<8x16xf32>,
      %c0_156 = arith.constant 0 : index
      %c4_157 = arith.constant 4 : index
      %260 = vector.load %arg8[%c0_156, %c4_157] : memref<8x8xf32, #tpu.memory_space<vmem>>, vector<8x1xf32>
      %261 = tpu.reciprocal %260 {approx = true} : vector<8x1xf32> -> vector<8x1xf32>
      %c0_158 = arith.constant 0 : index
      %c64_159 = arith.constant 64 : index
      %262 = vector.load %arg9[%c0_158, %c64_159] : memref<8x128xf32, #tpu.memory_space<vmem>>, vector<8x16xf32>
      %263 = vector.broadcast %261 : vector<8x1xf32> to vector<8x16xf32>
      %264 = arith.mulf %262, %263 : vector<8x16xf32>
      %c0_160 = arith.constant 0 : index
      %c64_161 = arith.constant 64 : index
      %265 = vector.load %arg9[%c0_160, %c64_161] : memref<8x128xf32, #tpu.memory_space<vmem>>, vector<8x16xf32>
      tpu.vector_store %arg9[%c0_160, %c64_161], %264 {strides = array<i32>} : memref<8x128xf32, #tpu.memory_space<vmem>>, vector<8x16xf32>,
      %c0_162 = arith.constant 0 : index
      %c5_163 = arith.constant 5 : index
      %266 = vector.load %arg8[%c0_162, %c5_163] : memref<8x8xf32, #tpu.memory_space<vmem>>, vector<8x1xf32>
      %267 = tpu.reciprocal %266 {approx = true} : vector<8x1xf32> -> vector<8x1xf32>
      %c0_164 = arith.constant 0 : index
      %c80_165 = arith.constant 80 : index
      %268 = vector.load %arg9[%c0_164, %c80_165] : memref<8x128xf32, #tpu.memory_space<vmem>>, vector<8x16xf32>
      %269 = vector.broadcast %267 : vector<8x1xf32> to vector<8x16xf32>
      %270 = arith.mulf %268, %269 : vector<8x16xf32>
      %c0_166 = arith.constant 0 : index
      %c80_167 = arith.constant 80 : index
      %271 = vector.load %arg9[%c0_166, %c80_167] : memref<8x128xf32, #tpu.memory_space<vmem>>, vector<8x16xf32>
      tpu.vector_store %arg9[%c0_166, %c80_167], %270 {strides = array<i32>} : memref<8x128xf32, #tpu.memory_space<vmem>>, vector<8x16xf32>,
      %c0_168 = arith.constant 0 : index
      %c6_169 = arith.constant 6 : index
      %272 = vector.load %arg8[%c0_168, %c6_169] : memref<8x8xf32, #tpu.memory_space<vmem>>, vector<8x1xf32>
      %273 = tpu.reciprocal %272 {approx = true} : vector<8x1xf32> -> vector<8x1xf32>
      %c0_170 = arith.constant 0 : index
      %c96_171 = arith.constant 96 : index
      %274 = vector.load %arg9[%c0_170, %c96_171] : memref<8x128xf32, #tpu.memory_space<vmem>>, vector<8x16xf32>
      %275 = vector.broadcast %273 : vector<8x1xf32> to vector<8x16xf32>
      %276 = arith.mulf %274, %275 : vector<8x16xf32>
      %c0_172 = arith.constant 0 : index
      %c96_173 = arith.constant 96 : index
      %277 = vector.load %arg9[%c0_172, %c96_173] : memref<8x128xf32, #tpu.memory_space<vmem>>, vector<8x16xf32>
      tpu.vector_store %arg9[%c0_172, %c96_173], %276 {strides = array<i32>} : memref<8x128xf32, #tpu.memory_space<vmem>>, vector<8x16xf32>,
      %c0_174 = arith.constant 0 : index
      %c7_175 = arith.constant 7 : index
      %278 = vector.load %arg8[%c0_174, %c7_175] : memref<8x8xf32, #tpu.memory_space<vmem>>, vector<8x1xf32>
      %279 = tpu.reciprocal %278 {approx = true} : vector<8x1xf32> -> vector<8x1xf32>
      %c0_176 = arith.constant 0 : index
      %c112_177 = arith.constant 112 : index
      %280 = vector.load %arg9[%c0_176, %c112_177] : memref<8x128xf32, #tpu.memory_space<vmem>>, vector<8x16xf32>
      %281 = vector.broadcast %279 : vector<8x1xf32> to vector<8x16xf32>
      %282 = arith.mulf %280, %281 : vector<8x16xf32>
      %c0_178 = arith.constant 0 : index
      %c112_179 = arith.constant 112 : index
      %283 = vector.load %arg9[%c0_178, %c112_179] : memref<8x128xf32, #tpu.memory_space<vmem>>, vector<8x16xf32>
      tpu.vector_store %arg9[%c0_178, %c112_179], %282 {strides = array<i32>} : memref<8x128xf32, #tpu.memory_space<vmem>>, vector<8x16xf32>,
      %c0_180 = arith.constant 0 : index
      %c0_181 = arith.constant 0 : index
      %284 = vector.load %arg9[%c0_180, %c0_181] : memref<8x128xf32, #tpu.memory_space<vmem>>, vector<8x128xf32>
      %c0_182 = arith.constant 0 : index
      %c0_183 = arith.constant 0 : index
      %c0_184 = arith.constant 0 : index
      %285 = vector.load %arg6[%c0_182, %c0_183, %c0_184] : memref<1x8x128xf32, #tpu.memory_space<vmem>>, vector<1x8x128xf32>
      %286 = vector.shape_cast %285 : vector<1x8x128xf32> to vector<8x128xf32>
      %287 = vector.shape_cast %284 : vector<8x128xf32> to vector<1x8x128xf32>
      tpu.vector_store %arg6[%c0_182, %c0_183, %c0_184], %287 {strides = array<i32>} : memref<1x8x128xf32, #tpu.memory_space<vmem>>, vector<1x8x128xf32>,
    } else {
    }
    return
  }
  func.func @transform_0(%arg0: i32, %arg1: i32, %arg2: i32) -> (i32, i32, i32) {
    %c0_i32 = arith.constant 0 : i32
    %c0_i32_0 = arith.constant 0 : i32
    return %arg0, %arg1, %c0_i32 : i32, i32, i32
  }
  func.func @transform_1(%arg0: i32, %arg1: i32, %arg2: i32) -> (i32, i32, i32) {
    %c1_i32 = arith.constant 1 : i32
    %c0_i32 = arith.constant 0 : i32
    return %arg0, %arg2, %c1_i32 : i32, i32, i32
  }
  func.func @transform_2(%arg0: i32, %arg1: i32, %arg2: i32) -> (i32, i32, i32) {
    %c2_i32 = arith.constant 2 : i32
    %c0_i32 = arith.constant 0 : i32
    return %arg0, %arg2, %c2_i32 : i32, i32, i32
  }
  func.func @transform_3(%arg0: i32, %arg1: i32, %arg2: i32) -> (i32, i32, i32) {
    %c0_i32 = arith.constant 0 : i32
    %c0_i32_0 = arith.constant 0 : i32
    return %arg0, %arg1, %c0_i32 : i32, i32, i32
  }
}

</mosaic_0001>

<llo_original>
// kernel: attention_pallas.5
$region0: #{attention_pallas.5}
  #allocation0 [shape = 'u32[]', space=smem, size = 0x4, offset = 0x4, fixed_abs, tag = 'smem constant byte address 0x4 - core index']
  #allocation1 [shape = 'u32[144,128]{1,0:T(1,128)}', space=vmem, size = 0x12000, scoped, tag = 'internal scratch']
  %s0 = inlined_call_operand.vmem [shape: f32[16,128], index: 0, kind: input, shape index: {}]
  %s1 = inlined_call_operand.vmem [shape: f32[128,128], index: 1, kind: input, shape index: {}]
  %s2 = inlined_call_operand.vmem [shape: f32[1,128], index: 2, kind: input, shape index: {}]
  %s3 = inlined_call_operand.hbm [shape: f32[16,128], index: 3, kind: output, shape index: {}]
  %s4 = sld [smem:[#allocation0]]
  $region22: #{attention_pallas.5} parent=0
    _
  %s6 = ssub.s32 1, %s4
  %s7 = scalar_select 0, %s6, %s4
  $region1: #{attention_pallas.5} parent=0
    #allocation2 [shape = 'u8[8192]{0}', space=vmem, size = 0x2000, scoped, tag = 'output window, operand 0, single buffered']
    #allocation3 [shape = 's32[1]{0}', space=sflag, size = 0x4, scoped, tag = 'scoped memory for attention_pallas.5']
    %8 = vsyncpa [#allocation3], 0
    // Predicated region
    $region2: #{attention_pallas.5} parent=1 // pred_check
      _
    $region3: #{attention_pallas.5} parent=1 // pred_check_branch
      %10 = sbr.rel (0) target = $region5
    $region4: #{attention_pallas.5} parent=1 // pred_region
      _
    $region5: #{attention_pallas.5} parent=1 // pred_fallthru
      _
    // Predicated region
    $region6: #{attention_pallas.5} parent=1 // pred_check
      _
    $region7: #{attention_pallas.5} parent=1 // pred_check_branch
      %12 = sbr.rel (0) target = $region9
    $region8: #{attention_pallas.5} parent=1 // pred_region
      _
    $region9: #{attention_pallas.5} parent=1 // pred_fallthru
      _
    // Predicated region
    $region10: #{attention_pallas.5} parent=1 // pred_check
      _
    $region11: #{attention_pallas.5} parent=1 // pred_check_branch
      %14 = sbr.rel (0) target = $region13
    $region12: #{attention_pallas.5} parent=1 // pred_region
      _
    $region13: #{attention_pallas.5} parent=1 // pred_fallthru
      _
    %v15 = vld [vmem:[%s0] sm:$0xff]
    %v16 = vld [vmem:[%s0 + $0x8] sm:$0xff]
    %v17 = vld [vmem:[%s1] sm:$0xff]
    %v18 = vld [vmem:[%s1 + $0x8] sm:$0xff]
    %v19 = vld [vmem:[%s1 + $0x10] sm:$0xff]
    %v20 = vld [vmem:[%s1 + $0x18] sm:$0xff]
    %v21 = vld [vmem:[%s1 + $0x20] sm:$0xff]
    %v22 = vld [vmem:[%s1 + $0x28] sm:$0xff]
    %v23 = vld [vmem:[%s1 + $0x30] sm:$0xff]
    %v24 = vld [vmem:[%s1 + $0x38] sm:$0xff]
    %v25 = vld [vmem:[%s1 + $0x40] sm:$0xff]
    %v26 = vld [vmem:[%s1 + $0x48] sm:$0xff]
    %v27 = vld [vmem:[%s1 + $0x50] sm:$0xff]
    %v28 = vld [vmem:[%s1 + $0x58] sm:$0xff]
    %v29 = vld [vmem:[%s1 + $0x60] sm:$0xff]
    %v30 = vld [vmem:[%s1 + $0x68] sm:$0xff]
    %v31 = vld [vmem:[%s1 + $0x70] sm:$0xff]
    %v32 = vld [vmem:[%s1 + $0x78] sm:$0xff]
    %v33 = vld [vmem:[%s2] sm:$0x1]
    %v35 = vlaneseq
    %v36 = vshrl.u32 %v35, 7
    %v37 = vsub.s32 0, %v36
    %v38 = vrot.slane %v33, %v37
    %40 = vmatprep.subr.mxu0 0.0
    %41 = vmatpush1.msra.mxu0 %v32
    %42 = vmatprep.subr.mxu0 0.0
    %43 = vmatpush1.msra.mxu0 %v31
    %44 = vmatprep.subr.mxu0 0.0
    %45 = vmatpush1.msra.mxu0 %v30
    %46 = vmatprep.subr.mxu0 0.0
    %47 = vmatpush1.msra.mxu0 %v29
    %48 = vmatprep.subr.mxu0 0.0
    %49 = vmatpush1.msra.mxu0 %v28
    %50 = vmatprep.subr.mxu0 0.0
    %51 = vmatpush1.msra.mxu0 %v27
    %52 = vmatprep.subr.mxu0 0.0
    %53 = vmatpush1.msra.mxu0 %v26
    %54 = vmatprep.subr.mxu0 0.0
    %55 = vmatpush1.msra.mxu0 %v25
    %56 = vmatprep.subr.mxu0 0.0
    %57 = vmatpush1.msra.mxu0 %v24
    %58 = vmatprep.subr.mxu0 0.0
    %59 = vmatpush1.msra.mxu0 %v23
    %60 = vmatprep.subr.mxu0 0.0
    %61 = vmatpush1.msra.mxu0 %v22
    %62 = vmatprep.subr.mxu0 0.0
    %63 = vmatpush1.msra.mxu0 %v21
    %64 = vmatprep.subr.mxu0 0.0
    %65 = vmatpush1.msra.mxu0 %v20
    %66 = vmatprep.subr.mxu0 0.0
    %67 = vmatpush1.msra.mxu0 %v19
    %68 = vmatprep.subr.mxu0 0.0
    %69 = vmatpush1.msra.mxu0 %v18
    %70 = vmatprep.subr.mxu0 0.0
    %71 = vmatpush1.msra.mxu0 %v17
    %72 = vmatprep.subr.mxu0 0.0
    %73 = vmatpush2.msra.mxu0 0.0
    %74 = vmatprep.subr.mxu0 0.0
    %75 = vmatpush2.msra.mxu0 0.0
    %76 = vmatprep.subr.mxu0 0.0
    %77 = vmatpush2.msra.mxu0 0.0
    %78 = vmatprep.subr.mxu0 0.0
    %79 = vmatpush2.msra.mxu0 0.0
    %80 = vmatprep.subr.mxu0 0.0
    %81 = vmatpush2.msra.mxu0 0.0
    %82 = vmatprep.subr.mxu0 0.0
    %83 = vmatpush2.msra.mxu0 0.0
    %84 = vmatprep.subr.mxu0 0.0
    %85 = vmatpush2.msra.mxu0 0.0
    %86 = vmatprep.subr.mxu0 0.0
    %87 = vmatpush2.msra.mxu0 0.0
    %88 = vmatprep.subr.mxu0 0.0
    %89 = vmatpush2.msra.mxu0 0.0
    %90 = vmatprep.subr.mxu0 0.0
    %91 = vmatpush2.msra.mxu0 0.0
    %92 = vmatprep.subr.mxu0 0.0
    %93 = vmatpush2.msra.mxu0 0.0
    %94 = vmatprep.subr.mxu0 0.0
    %95 = vmatpush2.msra.mxu0 0.0
    %96 = vmatprep.subr.mxu0 0.0
    %97 = vmatpush2.msra.mxu0 0.0
    %98 = vmatprep.subr.mxu0 0.0
    %99 = vmatpush2.msra.mxu0 0.0
    %100 = vmatprep.subr.mxu0 0.0
    %101 = vmatpush2.msra.mxu0 0.0
    %102 = vmatprep.subr.mxu0 0.0
    %103 = vmatpush2.msra.mxu0 0.0
    %104 = vmatprep.mubr.f32.mxu0 0.0
    %105 = vmatmul.mubr.f32.gmra.mxu0 %v15
    %v106 = vpop.f32.mrf.mxu0
    %v107 = vadd.f32 %v38, %v106
    %v108 = vpop.f32.mrf.mxu0
    %109 = vmatprep.mubr.f32.mxu0 0.0
    %110 = vmatmul.mubr.f32.gmra.mxu0 %v16
    %v111 = vpop.f32.mrf.mxu0
    %v112 = vadd.f32 %v38, %v111
    %v113 = vpop.f32.mrf.mxu0
    %114 = vdwg.mxu0
    %115 = vst [vmem:[#allocation2] sm:$0xff] %v107
    %116 = vst [vmem:[#allocation2 + $0x8] sm:$0xff] %v112
    // Predicated region
    $region14: #{attention_pallas.5} parent=1 // pred_check
      _
    $region15: #{attention_pallas.5} parent=1 // pred_check_branch
      %118 = sbr.rel (0) target = $region17
    $region16: #{attention_pallas.5} parent=1 // pred_region
      %s120 = ssub.s32 256, 256
      %121 = vsyncadd [#allocation3], %s120
      %s122 = sshll.u32 [#allocation2], 4
      %s123 = int_to_ptr.vmem [resolvable:$true] %s122
      %128 = dma.vmem_to_hbm [thread:$0]  %s123, 256, %s3, [#allocation3], 128, 128, 8
    $region17: #{attention_pallas.5} parent=1 // pred_fallthru
      _
    // Predicated region
    $region18: #{attention_pallas.5} parent=1 // pred_check
      _
    $region19: #{attention_pallas.5} parent=1 // pred_check_branch
      %130 = sbr.rel (0) target = $region21
    $region20: #{attention_pallas.5} parent=1 // pred_region
      %131 = dma.done [#allocation3], 256
    $region21: #{attention_pallas.5} parent=1 // pred_fallthru
      _
    %132 = vsyncpa [#allocation3], 1

// kernel: attention_pallas.3
$region0: #{attention_pallas.3}
  #allocation0 [shape = 'u32[]', space=smem, size = 0x4, offset = 0x4, fixed_abs, tag = 'smem constant byte address 0x4 - core index']
  #allocation1 [shape = 'u32[144,128]{1,0:T(1,128)}', space=vmem, size = 0x12000, scoped, tag = 'internal scratch']
  %s0 = inlined_call_operand.hbm [shape: f32[16,128], index: 0, kind: input, shape index: {}]
  %s1 = inlined_call_operand.hbm [shape: f32[128,384], index: 1, kind: input, shape index: {}]
  %s2 = inlined_call_operand.vmem [shape: f32[1,384], index: 2, kind: input, shape index: {}]
  %s3 = inlined_call_operand.vmem [shape: f32[16,384], index: 3, kind: output, shape index: {}]
  %s4 = sld [smem:[#allocation0]]
  $region30: #{attention_pallas.3} parent=0
    _
  %s6 = ssub.s32 1, %s4
  %s7 = scalar_select 0, %s6, %s4
  $region1: #{attention_pallas.3} parent=0
    #allocation2 [shape = 'u8[8192]{0}', space=vmem, size = 0x2000, scoped, tag = 'input window, operand 0, single buffered']
    #allocation3 [shape = 's32[1]{0}', space=sflag, size = 0x4, scoped, tag = 'scoped memory for attention_pallas.3']
    #allocation4 [shape = 'u8[196608]{0}', space=vmem, size = 0x30000, scoped, tag = 'input window, operand 1, single buffered']
    #allocation5 [shape = 's32[1]{0}', space=sflag, size = 0x4, scoped, tag = 'scoped memory for attention_pallas.3']
    %8 = vsyncpa [#allocation3], 0
    %9 = vsyncpa [#allocation5], 0
    // Predicated region
    $region2: #{attention_pallas.3} parent=1 // pred_check
      _
    $region3: #{attention_pallas.3} parent=1 // pred_check_branch
      %11 = sbr.rel (0) target = $region5
    $region4: #{attention_pallas.3} parent=1 // pred_region
      %s13 = ssub.s32 256, 256
      %14 = vsyncadd [#allocation3], %s13
      %s15 = sshll.u32 [#allocation2], 4
      %s16 = int_to_ptr.vmem [resolvable:$true] %s15
      %21 = dma.hbm_to_vmem [thread:$0]  %s0, 256, %s16, [#allocation3], 128, 128, 8
    $region5: #{attention_pallas.3} parent=1 // pred_fallthru
      _
    // Predicated region
    $region6: #{attention_pallas.3} parent=1 // pred_check
      _
    $region7: #{attention_pallas.3} parent=1 // pred_check_branch
      %23 = sbr.rel (0) target = $region9
    $region8: #{attention_pallas.3} parent=1 // pred_region
      %s25 = ssub.s32 6144, 6144
      %26 = vsyncadd [#allocation5], %s25
      %s27 = sshll.u32 [#allocation4], 4
      %s28 = int_to_ptr.vmem [resolvable:$true] %s27
      %33 = dma.hbm_to_vmem [thread:$0]  %s1, 6144, %s28, [#allocation5], 384, 384, 24
    $region9: #{attention_pallas.3} parent=1 // pred_fallthru
      _
    // Predicated region
    $region10: #{attention_pallas.3} parent=1 // pred_check
      _
    $region11: #{attention_pallas.3} parent=1 // pred_check_branch
      %35 = sbr.rel (0) target = $region13
    $region12: #{attention_pallas.3} parent=1 // pred_region
      _
    $region13: #{attention_pallas.3} parent=1 // pred_fallthru
      _
    // Predicated region
    $region14: #{attention_pallas.3} parent=1 // pred_check
      _
    $region15: #{attention_pallas.3} parent=1 // pred_check_branch
      %37 = sbr.rel (0) target = $region17
    $region16: #{attention_pallas.3} parent=1 // pred_region
      %38 = dma.done [#allocation3], 256
    $region17: #{attention_pallas.3} parent=1 // pred_fallthru
      _
    // Predicated region
    $region18: #{attention_pallas.3} parent=1 // pred_check
      _
    $region19: #{attention_pallas.3} parent=1 // pred_check_branch
      %40 = sbr.rel (0) target = $region21
    $region20: #{attention_pallas.3} parent=1 // pred_region
      %41 = dma.done [#allocation5], 6144
    $region21: #{attention_pallas.3} parent=1 // pred_fallthru
      _
    %v42 = vld [vmem:[#allocation2] sm:$0xff]
    %v43 = vld [vmem:[#allocation2 + $0x8] sm:$0xff]
    %v44 = vld [vmem:[#allocation4] sm:$0xff]
    %v45 = vld [vmem:[#allocation4 + $0x8] sm:$0xff]
    %v46 = vld [vmem:[#allocation4 + $0x10] sm:$0xff]
    %v47 = vld [vmem:[#allocation4 + $0x18] sm:$0xff]
    %v48 = vld [vmem:[#allocation4 + $0x20] sm:$0xff]
    %v49 = vld [vmem:[#allocation4 + $0x28] sm:$0xff]
    %v50 = vld [vmem:[#allocation4 + $0x30] sm:$0xff]
    %v51 = vld [vmem:[#allocation4 + $0x38] sm:$0xff]
    %v52 = vld [vmem:[#allocation4 + $0x40] sm:$0xff]
    %v53 = vld [vmem:[#allocation4 + $0x48] sm:$0xff]
    %v54 = vld [vmem:[#allocation4 + $0x50] sm:$0xff]
    %v55 = vld [vmem:[#allocation4 + $0x58] sm:$0xff]
    %v56 = vld [vmem:[#allocation4 + $0x60] sm:$0xff]
    %v57 = vld [vmem:[#allocation4 + $0x68] sm:$0xff]
    %v58 = vld [vmem:[#allocation4 + $0x70] sm:$0xff]
    %v59 = vld [vmem:[#allocation4 + $0x78] sm:$0xff]
    %v60 = vld [vmem:[#allocation4 + $0x80] sm:$0xff]
    %v61 = vld [vmem:[#allocation4 + $0x88] sm:$0xff]
    %v62 = vld [vmem:[#allocation4 + $0x90] sm:$0xff]
    %v63 = vld [vmem:[#allocation4 + $0x98] sm:$0xff]
    %v64 = vld [vmem:[#allocation4 + $0xa0] sm:$0xff]
    %v65 = vld [vmem:[#allocation4 + $0xa8] sm:$0xff]
    %v66 = vld [vmem:[#allocation4 + $0xb0] sm:$0xff]
    %v67 = vld [vmem:[#allocation4 + $0xb8] sm:$0xff]
    %v68 = vld [vmem:[#allocation4 + $0xc0] sm:$0xff]
    %v69 = vld [vmem:[#allocation4 + $0xc8] sm:$0xff]
    %v70 = vld [vmem:[#allocation4 + $0xd0] sm:$0xff]
    %v71 = vld [vmem:[#allocation4 + $0xd8] sm:$0xff]
    %v72 = vld [vmem:[#allocation4 + $0xe0] sm:$0xff]
    %v73 = vld [vmem:[#allocation4 + $0xe8] sm:$0xff]
    %v74 = vld [vmem:[#allocation4 + $0xf0] sm:$0xff]
    %v75 = vld [vmem:[#allocation4 + $0xf8] sm:$0xff]
    %v76 = vld [vmem:[#allocation4 + $0x100] sm:$0xff]
    %v77 = vld [vmem:[#allocation4 + $0x108] sm:$0xff]
    %v78 = vld [vmem:[#allocation4 + $0x110] sm:$0xff]
    %v79 = vld [vmem:[#allocation4 + $0x118] sm:$0xff]
    %v80 = vld [vmem:[#allocation4 + $0x120] sm:$0xff]
    %v81 = vld [vmem:[#allocation4 + $0x128] sm:$0xff]
    %v82 = vld [vmem:[#allocation4 + $0x130] sm:$0xff]
    %v83 = vld [vmem:[#allocation4 + $0x138] sm:$0xff]
    %v84 = vld [vmem:[#allocation4 + $0x140] sm:$0xff]
    %v85 = vld [vmem:[#allocation4 + $0x148] sm:$0xff]
    %v86 = vld [vmem:[#allocation4 + $0x150] sm:$0xff]
    %v87 = vld [vmem:[#allocation4 + $0x158] sm:$0xff]
    %v88 = vld [vmem:[#allocation4 + $0x160] sm:$0xff]
    %v89 = vld [vmem:[#allocation4 + $0x168] sm:$0xff]
    %v90 = vld [vmem:[#allocation4 + $0x170] sm:$0xff]
    %v91 = vld [vmem:[#allocation4 + $0x178] sm:$0xff]
    %v92 = vld [vmem:[%s2] sm:$0x7]
    %v94 = vlaneseq
    %v95 = vshrl.u32 %v94, 7
    %v96 = vsub.s32 0, %v95
    %v97 = vrot.slane %v92, %v96
    %v98 = vlaneseq
    %v99 = vshrl.u32 %v98, 7
    %v100 = vsub.s32 1, %v99
    %v101 = vrot.slane %v92, %v100
    %v102 = vlaneseq
    %v103 = vshrl.u32 %v102, 7
    %v104 = vsub.s32 2, %v103
    %v105 = vrot.slane %v92, %v104
    %109 = vmatprep.subr.mxu0 %v90
    %110 = vmatpush1.msra.mxu0 %v89
    %111 = vmatprep.subr.mxu0 %v87
    %112 = vmatpush1.msra.mxu0 %v86
    %113 = vmatprep.subr.mxu0 %v84
    %114 = vmatpush1.msra.mxu0 %v83
    %115 = vmatprep.subr.mxu0 %v81
    %116 = vmatpush1.msra.mxu0 %v80
    %117 = vmatprep.subr.mxu0 %v78
    %118 = vmatpush1.msra.mxu0 %v77
    %119 = vmatprep.subr.mxu0 %v75
    %120 = vmatpush1.msra.mxu0 %v74
    %121 = vmatprep.subr.mxu0 %v72
    %122 = vmatpush1.msra.mxu0 %v71
    %123 = vmatprep.subr.mxu0 %v69
    %124 = vmatpush1.msra.mxu0 %v68
    %125 = vmatprep.subr.mxu0 %v66
    %126 = vmatpush1.msra.mxu0 %v65
    %127 = vmatprep.subr.mxu0 %v63
    %128 = vmatpush1.msra.mxu0 %v62
    %129 = vmatprep.subr.mxu0 %v60
    %130 = vmatpush1.msra.mxu0 %v59
    %131 = vmatprep.subr.mxu0 %v57
    %132 = vmatpush1.msra.mxu0 %v56
    %133 = vmatprep.subr.mxu0 %v54
    %134 = vmatpush1.msra.mxu0 %v53
    %135 = vmatprep.subr.mxu0 %v51
    %136 = vmatpush1.msra.mxu0 %v50
    %137 = vmatprep.subr.mxu0 %v48
    %138 = vmatpush1.msra.mxu0 %v47
    %139 = vmatprep.subr.mxu0 %v45
    %140 = vmatpush1.msra.mxu0 %v44
    %141 = vmatprep.subr.mxu0 0.0
    %142 = vmatpush2.msra.mxu0 0.0
    %143 = vmatprep.subr.mxu0 0.0
    %144 = vmatpush2.msra.mxu0 0.0
    %145 = vmatprep.subr.mxu0 0.0
    %146 = vmatpush2.msra.mxu0 0.0
    %147 = vmatprep.subr.mxu0 0.0
    %148 = vmatpush2.msra.mxu0 0.0
    %149 = vmatprep.subr.mxu0 0.0
    %150 = vmatpush2.msra.mxu0 0.0
    %151 = vmatprep.subr.mxu0 0.0
    %152 = vmatpush2.msra.mxu0 0.0
    %153 = vmatprep.subr.mxu0 0.0
    %154 = vmatpush2.msra.mxu0 0.0
    %155 = vmatprep.subr.mxu0 0.0
    %156 = vmatpush2.msra.mxu0 0.0
    %157 = vmatprep.subr.mxu0 0.0
    %158 = vmatpush2.msra.mxu0 0.0
    %159 = vmatprep.subr.mxu0 0.0
    %160 = vmatpush2.msra.mxu0 0.0
    %161 = vmatprep.subr.mxu0 0.0
    %162 = vmatpush2.msra.mxu0 0.0
    %163 = vmatprep.subr.mxu0 0.0
    %164 = vmatpush2.msra.mxu0 0.0
    %165 = vmatprep.subr.mxu0 0.0
    %166 = vmatpush2.msra.mxu0 0.0
    %167 = vmatprep.subr.mxu0 0.0
    %168 = vmatpush2.msra.mxu0 0.0
    %169 = vmatprep.subr.mxu0 0.0
    %170 = vmatpush2.msra.mxu0 0.0
    %171 = vmatprep.subr.mxu0 0.0
    %172 = vmatpush2.msra.mxu0 0.0
    %173 = vmatprep.mubr.f32.mxu0 0.0
    %174 = vmatmul.mubr.f32.gmra.mxu0 %v42
    %v175 = vpop.f32.mrf.mxu0
    %v176 = vadd.f32 %v97, %v175
    %v177 = vpop.f32.mrf.mxu0
    %v178 = vadd.f32 %v101, %v177
    %179 = vmatprep.mubr.f32.mxu0 0.0
    %180 = vmatmul.mubr.f32.gmra.mxu0 %v43
    %v181 = vpop.f32.mrf.mxu0
    %v182 = vadd.f32 %v97, %v181
    %v183 = vpop.f32.mrf.mxu0
    %v184 = vadd.f32 %v101, %v183
    %185 = vdwg.mxu0
    %186 = vmatprep.subr.mxu0 0.0
    %187 = vmatpush1.msra.mxu0 %v91
    %188 = vmatprep.subr.mxu0 0.0
    %189 = vmatpush1.msra.mxu0 %v88
    %190 = vmatprep.subr.mxu0 0.0
    %191 = vmatpush1.msra.mxu0 %v85
    %192 = vmatprep.subr.mxu0 0.0
    %193 = vmatpush1.msra.mxu0 %v82
    %194 = vmatprep.subr.mxu0 0.0
    %195 = vmatpush1.msra.mxu0 %v79
    %196 = vmatprep.subr.mxu0 0.0
    %197 = vmatpush1.msra.mxu0 %v76
    %198 = vmatprep.subr.mxu0 0.0
    %199 = vmatpush1.msra.mxu0 %v73
    %200 = vmatprep.subr.mxu0 0.0
    %201 = vmatpush1.msra.mxu0 %v70
    %202 = vmatprep.subr.mxu0 0.0
    %203 = vmatpush1.msra.mxu0 %v67
    %204 = vmatprep.subr.mxu0 0.0
    %205 = vmatpush1.msra.mxu0 %v64
    %206 = vmatprep.subr.mxu0 0.0
    %207 = vmatpush1.msra.mxu0 %v61
    %208 = vmatprep.subr.mxu0 0.0
    %209 = vmatpush1.msra.mxu0 %v58
    %210 = vmatprep.subr.mxu0 0.0
    %211 = vmatpush1.msra.mxu0 %v55
    %212 = vmatprep.subr.mxu0 0.0
    %213 = vmatpush1.msra.mxu0 %v52
    %214 = vmatprep.subr.mxu0 0.0
    %215 = vmatpush1.msra.mxu0 %v49
    %216 = vmatprep.subr.mxu0 0.0
    %217 = vmatpush1.msra.mxu0 %v46
    %218 = vmatprep.subr.mxu0 0.0
    %219 = vmatpush2.msra.mxu0 0.0
    %220 = vmatprep.subr.mxu0 0.0
    %221 = vmatpush2.msra.mxu0 0.0
    %222 = vmatprep.subr.mxu0 0.0
    %223 = vmatpush2.msra.mxu0 0.0
    %224 = vmatprep.subr.mxu0 0.0
    %225 = vmatpush2.msra.mxu0 0.0
    %226 = vmatprep.subr.mxu0 0.0
    %227 = vmatpush2.msra.mxu0 0.0
    %228 = vmatprep.subr.mxu0 0.0
    %229 = vmatpush2.msra.mxu0 0.0
    %230 = vmatprep.subr.mxu0 0.0
    %231 = vmatpush2.msra.mxu0 0.0
    %232 = vmatprep.subr.mxu0 0.0
    %233 = vmatpush2.msra.mxu0 0.0
    %234 = vmatprep.subr.mxu0 0.0
    %235 = vmatpush2.msra.mxu0 0.0
    %236 = vmatprep.subr.mxu0 0.0
    %237 = vmatpush2.msra.mxu0 0.0
    %238 = vmatprep.subr.mxu0 0.0
    %239 = vmatpush2.msra.mxu0 0.0
    %240 = vmatprep.subr.mxu0 0.0
    %241 = vmatpush2.msra.mxu0 0.0
    %242 = vmatprep.subr.mxu0 0.0
    %243 = vmatpush2.msra.mxu0 0.0
    %244 = vmatprep.subr.mxu0 0.0
    %245 = vmatpush2.msra.mxu0 0.0
    %246 = vmatprep.subr.mxu0 0.0
    %247 = vmatpush2.msra.mxu0 0.0
    %248 = vmatprep.subr.mxu0 0.0
    %249 = vmatpush2.msra.mxu0 0.0
    %250 = vmatprep.mubr.f32.mxu0 0.0
    %251 = vmatmul.mubr.f32.gmra.mxu0 %v42
    %v252 = vpop.f32.mrf.mxu0
    %v253 = vadd.f32 %v105, %v252
    %v254 = vpop.f32.mrf.mxu0
    %255 = vmatprep.mubr.f32.mxu0 0.0
    %256 = vmatmul.mubr.f32.gmra.mxu0 %v43
    %v257 = vpop.f32.mrf.mxu0
    %v258 = vadd.f32 %v105, %v257
    %v259 = vpop.f32.mrf.mxu0
    %260 = vdwg.mxu0
    %261 = vst [vmem:[%s3] sm:$0xff] %v176
    %262 = vst [vmem:[%s3 + $0x8] sm:$0xff] %v178
    %263 = vst [vmem:[%s3 + $0x10] sm:$0xff] %v253
    %264 = vst [vmem:[%s3 + $0x18] sm:$0xff] %v182
    %265 = vst [vmem:[%s3 + $0x20] sm:$0xff] %v184
    %266 = vst [vmem:[%s3 + $0x28] sm:$0xff] %v258
    // Predicated region
    $region22: #{attention_pallas.3} parent=1 // pred_check
      _
    $region23: #{attention_pallas.3} parent=1 // pred_check_branch
      %268 = sbr.rel (0) target = $region25
    $region24: #{attention_pallas.3} parent=1 // pred_region
      _
    $region25: #{attention_pallas.3} parent=1 // pred_fallthru
      _
    // Predicated region
    $region26: #{attention_pallas.3} parent=1 // pred_check
      _
    $region27: #{attention_pallas.3} parent=1 // pred_check_branch
      %270 = sbr.rel (0) target = $region29
    $region28: #{attention_pallas.3} parent=1 // pred_region
      _
    $region29: #{attention_pallas.3} parent=1 // pred_fallthru
      _
    %271 = vsyncpa [#allocation3], 1
    %272 = vsyncpa [#allocation5], 1

// kernel: attention_pallas.4
$region0: #{attention_pallas.4}
  #allocation0 [shape = 'u32[]', space=smem, size = 0x4, offset = 0x4, fixed_abs, tag = 'smem constant byte address 0x4 - core index']
  #allocation1 [shape = 'u32[144,128]{1,0:T(1,128)}', space=vmem, size = 0x12000, scoped, tag = 'internal scratch']
  #allocation2 [shape = 'f32[8,8]{1,0:T(8,128)}', space=vmem, size = 0x1000, scoped, tag = 'scratch operand']
  #allocation3 [shape = 'f32[8,8]{1,0:T(8,128)}', space=vmem, size = 0x1000, scoped, tag = 'scratch operand']
  #allocation4 [shape = 'f32[8,128]{1,0:T(8,128)}', space=vmem, size = 0x1000, scoped, tag = 'scratch operand']
  %s0 = inlined_call_operand.vmem [shape: f32[2,8,384], index: 0, kind: input, shape index: {}, may-alias: {0,1,2}]
  %s1 = inlined_call_operand.vmem [shape: f32[2,8,384], index: 1, kind: input, shape index: {}, may-alias: {0,1,2}]
  %s2 = inlined_call_operand.vmem [shape: f32[2,8,384], index: 2, kind: input, shape index: {}, may-alias: {0,1,2}]
  %s3 = inlined_call_operand.vmem [shape: f32[2,8,128], index: 3, kind: output, shape index: {}]
  %s4 = sld [smem:[#allocation0]]
  $region53: #{attention_pallas.4} parent=0
    _
  %s6 = ssub.s32 1, %s4
  %s7 = scalar_select 0, %s6, %s4
  loop: start=0, step=1, limit=4
  $region2: #{attention_pallas.4} parent=0 // loop_pre_header
    _
  $region3: #{attention_pallas.4} parent=0 // loop_header
    %s9 = sphi 0, %s13
    %p10 = scmp.ge.s32.totalorder %s9, 4
    %s16 = sphi 0, %s35
    %s17 = sphi 0, %s31
    %s18 = sphi 0, %s27
    %s19 = sphi 0, %s16
    %s20 = sphi 0, %s17
    %s21 = sphi 0, %s18
    %s22 = sphi 0, %s19
    %s23 = sphi 0, %s20
    %s24 = sphi 0, %s21
    %s40 = sphi 0, %s42
    %s43 = sphi 0, %s40
    %s44 = sphi 0, %s43
    %s60 = sphi 0, %s44
    %s68 = sphi 0, %s70
    %s71 = sphi 0, %s68
    %s72 = sphi 0, %s71
    %s88 = sphi 0, %s72
    %s96 = sphi 0, %s98
    %s99 = sphi 0, %s96
    %s100 = sphi 0, %s99
    %s116 = sphi 0, %s100
    %s124 = sphi 0, %s126
    %s127 = sphi 0, %s124
    %s128 = sphi 0, %s127
    %s144 = sphi 0, %s128
  $region4: #{attention_pallas.4} parent=0 // loop_header_branch
    %12 = sbr.rel (%p10) target = $region8
  $region5: #{attention_pallas.4} parent=0 // loop_body
    %s14 = ssub.s32 %s9, 1
    %s15 = ssub.s32 %s9, 2
    %s25 = sadd.s32 1, %s18
    %p26 = scmp.ge.s32.totalorder %s25, 1
    %s27 = scalar_select %p26, 0, %s25
    %s28 = sadd.s32 1, %s17
    %s29 = scalar_select %p26, %s28, %s17
    %p30 = scmp.ge.s32.totalorder %s29, 1
    %s31 = scalar_select %p30, 0, %s29
    %s32 = sadd.s32 1, %s16
    %s33 = scalar_select %p30, %s32, %s16
    %p34 = scmp.ge.s32.totalorder %s33, 2
    %s35 = scalar_select %p34, 0, %s33
    %s36 = ssub.s32 %s16, %s35
    %s37 = ssub.s32 %s17, %s31
    %s38 = sor.u32 %s36, %s37
    %p39 = scmp.eq.s32.totalorder %s38, 0
    %s41 = sadd.s32 %s40, 1
    %s42 = scalar_select %p39, %s40, %s41
    %p45 = pneg %p39
    %p46 = scmp.eq.s32.totalorder %s9, 1
    %p47 = por %p45, %p46
    %p48 = scmp.ne.s32.totalorder %s40, %s43
    %p49 = scmp.eq.s32.totalorder %s9, 0
    %p50 = por %p48, %p49
    %p51 = scmp.ne.s32.totalorder %s40, %s43
    %p52 = scmp.eq.s32.totalorder %s14, 1
    %p53 = por %p51, %p52
    %p54 = scmp.ne.s32.totalorder %s43, %s44
    %p55 = scmp.eq.s32.totalorder %s14, 0
    %p56 = por %p54, %p55
    %p57 = scmp.ne.s32.totalorder %s43, %s44
    %p58 = scmp.eq.s32.totalorder %s15, 1
    %p59 = por %p57, %p58
    %p61 = scmp.ne.s32.totalorder %s44, %s60
    %p62 = scmp.eq.s32.totalorder %s15, 0
    %p63 = por %p61, %p62
    %s64 = ssub.s32 %s16, %s35
    %s65 = ssub.s32 %s18, %s27
    %s66 = sor.u32 %s64, %s65
    %p67 = scmp.eq.s32.totalorder %s66, 0
    %s69 = sadd.s32 %s68, 1
    %s70 = scalar_select %p67, %s68, %s69
    %p73 = pneg %p67
    %p74 = scmp.eq.s32.totalorder %s9, 1
    %p75 = por %p73, %p74
    %p76 = scmp.ne.s32.totalorder %s68, %s71
    %p77 = scmp.eq.s32.totalorder %s9, 0
    %p78 = por %p76, %p77
    %p79 = scmp.ne.s32.totalorder %s68, %s71
    %p80 = scmp.eq.s32.totalorder %s14, 1
    %p81 = por %p79, %p80
    %p82 = scmp.ne.s32.totalorder %s71, %s72
    %p83 = scmp.eq.s32.totalorder %s14, 0
    %p84 = por %p82, %p83
    %p85 = scmp.ne.s32.totalorder %s71, %s72
    %p86 = scmp.eq.s32.totalorder %s15, 1
    %p87 = por %p85, %p86
    %p89 = scmp.ne.s32.totalorder %s72, %s88
    %p90 = scmp.eq.s32.totalorder %s15, 0
    %p91 = por %p89, %p90
    %s92 = ssub.s32 %s16, %s35
    %s93 = ssub.s32 %s18, %s27
    %s94 = sor.u32 %s92, %s93
    %p95 = scmp.eq.s32.totalorder %s94, 0
    %s97 = sadd.s32 %s96, 1
    %s98 = scalar_select %p95, %s96, %s97
    %p101 = pneg %p95
    %p102 = scmp.eq.s32.totalorder %s9, 1
    %p103 = por %p101, %p102
    %p104 = scmp.ne.s32.totalorder %s96, %s99
    %p105 = scmp.eq.s32.totalorder %s9, 0
    %p106 = por %p104, %p105
    %p107 = scmp.ne.s32.totalorder %s96, %s99
    %p108 = scmp.eq.s32.totalorder %s14, 1
    %p109 = por %p107, %p108
    %p110 = scmp.ne.s32.totalorder %s99, %s100
    %p111 = scmp.eq.s32.totalorder %s14, 0
    %p112 = por %p110, %p111
    %p113 = scmp.ne.s32.totalorder %s99, %s100
    %p114 = scmp.eq.s32.totalorder %s15, 1
    %p115 = por %p113, %p114
    %p117 = scmp.ne.s32.totalorder %s100, %s116
    %p118 = scmp.eq.s32.totalorder %s15, 0
    %p119 = por %p117, %p118
    %s120 = ssub.s32 %s16, %s35
    %s121 = ssub.s32 %s17, %s31
    %s122 = sor.u32 %s120, %s121
    %p123 = scmp.eq.s32.totalorder %s122, 0
    %s125 = sadd.s32 %s124, 1
    %s126 = scalar_select %p123, %s124, %s125
    %p129 = pneg %p123
    %p130 = scmp.eq.s32.totalorder %s9, 1
    %p131 = por %p129, %p130
    %p132 = scmp.ne.s32.totalorder %s124, %s127
    %p133 = scmp.eq.s32.totalorder %s9, 0
    %p134 = por %p132, %p133
    %p135 = scmp.ne.s32.totalorder %s124, %s127
    %p136 = scmp.eq.s32.totalorder %s14, 1
    %p137 = por %p135, %p136
    %p138 = scmp.ne.s32.totalorder %s127, %s128
    %p139 = scmp.eq.s32.totalorder %s14, 0
    %p140 = por %p138, %p139
    %p141 = scmp.ne.s32.totalorder %s127, %s128
    %p142 = scmp.eq.s32.totalorder %s15, 1
    %p143 = por %p141, %p142
    %p145 = scmp.ne.s32.totalorder %s128, %s144
    %p146 = scmp.eq.s32.totalorder %s15, 0
    %p147 = por %p145, %p146
    %p148 = scmp.le.s32.totalorder 1, %s9
    %p149 = scmp.lt.s32.totalorder %s9, 3
    %p150 = pnand %p148, %p149
    %p151 = pneg %p150
    // Predicated region
    $region9: #{attention_pallas.4} parent=5 // pred_check
      _
    $region10: #{attention_pallas.4} parent=5 // pred_check_branch
      %153 = sbr.rel (%p150) target = $region12
    $region11: #{attention_pallas.4} parent=5 // pred_region
      %s154 = ssub.s32 %s9, 1
    $region12: #{attention_pallas.4} parent=5 // pred_fallthru
      _
    %p155 = scmp.lt.s32.totalorder %s9, 2
    // Predicated region
    $region13: #{attention_pallas.4} parent=5 // pred_check
      %p156 = pneg %p155
    $region14: #{attention_pallas.4} parent=5 // pred_check_branch
      %158 = sbr.rel (%p156) target = $region16
    $region15: #{attention_pallas.4} parent=5 // pred_region
      // Predicated region
      $region17: #{attention_pallas.4} parent=15 // pred_check
        %p159 = pneg %p50
      $region18: #{attention_pallas.4} parent=15 // pred_check_branch
        %161 = sbr.rel (%p159) target = $region20
      $region19: #{attention_pallas.4} parent=15 // pred_region
        %p162 = scmp.lt.s32.totalorder %s16, 1
        %s163 = scalar_select %p162, %s16, 1
        %p164 = scmp.lt.s32.totalorder %s17, 0
        %s165 = scalar_select %p164, %s17, 0
        %s166 = smul.addr %s165, 3
        %s167 = smul.addr %s163, 3
        %s168 = sadd.s32 %s166, %s167
        %s169 = smul.addr %s168, 8
        %s170 = scalar_lea.vmem %s0, %s169
      $region20: #{attention_pallas.4} parent=15 // pred_fallthru
        _
      // Predicated region
      $region21: #{attention_pallas.4} parent=15 // pred_check
        %p171 = pneg %p78
      $region22: #{attention_pallas.4} parent=15 // pred_check_branch
        %173 = sbr.rel (%p171) target = $region24
      $region23: #{attention_pallas.4} parent=15 // pred_region
        %p174 = scmp.lt.s32.totalorder %s16, 1
        %s175 = scalar_select %p174, %s16, 1
        %p176 = scmp.lt.s32.totalorder %s18, 0
        %s177 = scalar_select %p176, %s18, 0
        %s178 = smul.addr %s177, 3
        %s179 = sadd.s32 1, %s178
        %s180 = smul.addr %s175, 3
        %s181 = sadd.s32 %s179, %s180
        %s182 = smul.addr %s181, 8
        %s183 = scalar_lea.vmem %s1, %s182
      $region24: #{attention_pallas.4} parent=15 // pred_fallthru
        _
      // Predicated region
      $region25: #{attention_pallas.4} parent=15 // pred_check
        %p184 = pneg %p106
      $region26: #{attention_pallas.4} parent=15 // pred_check_branch
        %186 = sbr.rel (%p184) target = $region28
      $region27: #{attention_pallas.4} parent=15 // pred_region
        %p187 = scmp.lt.s32.totalorder %s16, 1
        %s188 = scalar_select %p187, %s16, 1
        %p189 = scmp.lt.s32.totalorder %s18, 0
        %s190 = scalar_select %p189, %s18, 0
        %s191 = smul.addr %s190, 3
        %s192 = sadd.s32 2, %s191
        %s193 = smul.addr %s188, 3
        %s194 = sadd.s32 %s192, %s193
        %s195 = smul.addr %s194, 8
        %s196 = scalar_lea.vmem %s2, %s195
      $region28: #{attention_pallas.4} parent=15 // pred_fallthru
        _
    $region16: #{attention_pallas.4} parent=5 // pred_fallthru
      _
    %p197 = scmp.le.s32.totalorder 1, %s9
    %p198 = scmp.lt.s32.totalorder %s9, 3
    %p199 = pnand %p197, %p198
    %p200 = pneg %p199
    // Predicated region
    $region29: #{attention_pallas.4} parent=5 // pred_check
      _
    $region30: #{attention_pallas.4} parent=5 // pred_check_branch
      %202 = sbr.rel (%p199) target = $region32
    $region31: #{attention_pallas.4} parent=5 // pred_region
      %s203 = ssub.s32 %s9, 1
      %p204 = scmp.lt.s32.totalorder %s19, 1
      %s205 = scalar_select %p204, %s19, 1
      %p206 = scmp.lt.s32.totalorder %s20, 0
      %s207 = scalar_select %p206, %s20, 0
      %s208 = smul.addr %s207, 3
      %s209 = smul.addr %s205, 3
      %s210 = sadd.s32 %s208, %s209
      %s211 = smul.addr %s210, 8
      %s212 = scalar_lea.vmem %s0, %s211
      %p213 = pneg %p56
      %p214 = pneg %p53
      %p215 = scmp.lt.s32.totalorder %s19, 1
      %s216 = scalar_select %p215, %s19, 1
      %p217 = scmp.lt.s32.totalorder %s21, 0
      %s218 = scalar_select %p217, %s21, 0
      %s219 = smul.addr %s218, 3
      %s220 = sadd.s32 1, %s219
      %s221 = smul.addr %s216, 3
      %s222 = sadd.s32 %s220, %s221
      %s223 = smul.addr %s222, 8
      %s224 = scalar_lea.vmem %s1, %s223
      %p225 = pneg %p84
      %p226 = pneg %p81
      %p227 = scmp.lt.s32.totalorder %s19, 1
      %s228 = scalar_select %p227, %s19, 1
      %p229 = scmp.lt.s32.totalorder %s21, 0
      %s230 = scalar_select %p229, %s21, 0
      %s231 = smul.addr %s230, 3
      %s232 = sadd.s32 2, %s231
      %s233 = smul.addr %s228, 3
      %s234 = sadd.s32 %s232, %s233
      %s235 = smul.addr %s234, 8
      %s236 = scalar_lea.vmem %s2, %s235
      %p237 = pneg %p112
      %p238 = pneg %p109
      %p239 = pneg %p140
      %p240 = pneg %p137
      %p241 = scmp.lt.s32.totalorder %s19, 1
      %s242 = scalar_select %p241, %s19, 1
      %p243 = scmp.lt.s32.totalorder %s20, 0
      %s244 = scalar_select %p243, %s20, 0
      %s245 = sadd.s32 %s244, %s242
      %s246 = smul.addr %s245, 8
      %s247 = scalar_lea.vmem %s3, %s246
      %p248 = scmp.lt.s32.totalorder %s19, 1
      %s249 = scalar_select %p248, %s19, 1
      %p250 = scmp.lt.s32.totalorder %s20, 0
      %s251 = scalar_select %p250, %s20, 0
      %s252 = smul.addr %s251, 3
      %s253 = smul.addr %s249, 3
      %s254 = sadd.s32 %s252, %s253
      %s255 = smul.addr %s254, 8
      %s256 = scalar_lea.vmem %s0, %s255
      %p257 = scmp.lt.s32.totalorder %s19, 1
      %s258 = scalar_select %p257, %s19, 1
      %p259 = scmp.lt.s32.totalorder %s21, 0
      %s260 = scalar_select %p259, %s21, 0
      %s261 = smul.addr %s260, 3
      %s262 = sadd.s32 1, %s261
      %s263 = smul.addr %s258, 3
      %s264 = sadd.s32 %s262, %s263
      %s265 = smul.addr %s264, 8
      %s266 = scalar_lea.vmem %s1, %s265
      %p267 = scmp.lt.s32.totalorder %s19, 1
      %s268 = scalar_select %p267, %s19, 1
      %p269 = scmp.lt.s32.totalorder %s21, 0
      %s270 = scalar_select %p269, %s21, 0
      %s271 = smul.addr %s270, 3
      %s272 = sadd.s32 2, %s271
      %s273 = smul.addr %s268, 3
      %s274 = sadd.s32 %s272, %s273
      %s275 = smul.addr %s274, 8
      %s276 = scalar_lea.vmem %s2, %s275
      %p277 = scmp.lt.s32.totalorder %s19, 1
      %s278 = scalar_select %p277, %s19, 1
      %p279 = scmp.lt.s32.totalorder %s20, 0
      %s280 = scalar_select %p279, %s20, 0
      %s281 = sadd.s32 %s280, %s278
      %s282 = smul.addr %s281, 8
      %s283 = scalar_lea.vmem %s3, %s282
      %p284 = scmp.eq.s32.totalorder %s21, 0
      // Predicated region
      $region33: #{attention_pallas.4} parent=31 // pred_check
        %p285 = pneg %p284
      $region34: #{attention_pallas.4} parent=31 // pred_check_branch
        %287 = sbr.rel (%p285) target = $region36
      $region35: #{attention_pallas.4} parent=31 // pred_region
        %vm288 = vcmask 64512
        %289 = vst.msk [vmem:[#allocation2] sm:$0xff] %vm288, -inf
        %290 = vst.msk [vmem:[#allocation3] sm:$0xff] %vm288, 0.0
        %291 = vst [vmem:[#allocation4] sm:$0xff] 0.0
      $region36: #{attention_pallas.4} parent=31 // pred_fallthru
        _
      %v292 = vld [vmem:[%s256] sm:$0xff]
      %v293 = vld [vmem:[%s266] sm:$0xff]
      %v294 = vld [vmem:[%s276] sm:$0xff]
      %vm295 = vcmask 130048
      %v297 = vsel %vm295, %v292, 0
      %v300 = vsel %vm295, %v293, 0
      %302 = vmatprep.subr.mxu0 0.0
      %303 = vmatpush1.xpose.msra.mxu0 0.0
      %304 = vmatprep.subr.mxu0 0.0
      %305 = vmatpush1.xpose.msra.mxu0 0.0
      %306 = vmatprep.subr.mxu0 0.0
      %307 = vmatpush1.xpose.msra.mxu0 0.0
      %308 = vmatprep.subr.mxu0 0.0
      %309 = vmatpush1.xpose.msra.mxu0 0.0
      %310 = vmatprep.subr.mxu0 0.0
      %311 = vmatpush1.xpose.msra.mxu0 0.0
      %312 = vmatprep.subr.mxu0 0.0
      %313 = vmatpush1.xpose.msra.mxu0 0.0
      %314 = vmatprep.subr.mxu0 0.0
      %315 = vmatpush1.xpose.msra.mxu0 0.0
      %316 = vmatprep.subr.mxu0 0.0
      %317 = vmatpush1.xpose.msra.mxu0 0.0
      %318 = vmatprep.subr.mxu0 0.0
      %319 = vmatpush1.xpose.msra.mxu0 0.0
      %320 = vmatprep.subr.mxu0 0.0
      %321 = vmatpush1.xpose.msra.mxu0 0.0
      %322 = vmatprep.subr.mxu0 0.0
      %323 = vmatpush1.xpose.msra.mxu0 0.0
      %324 = vmatprep.subr.mxu0 0.0
      %325 = vmatpush1.xpose.msra.mxu0 0.0
      %326 = vmatprep.subr.mxu0 0.0
      %327 = vmatpush1.xpose.msra.mxu0 0.0
      %328 = vmatprep.subr.mxu0 0.0
      %329 = vmatpush1.xpose.msra.mxu0 0.0
      %330 = vmatprep.subr.mxu0 0.0
      %331 = vmatpush1.xpose.msra.mxu0 0.0
      %332 = vmatprep.subr.mxu0 0.0
      %333 = vmatpush1.xpose.msra.mxu0 %v300
      %334 = vmatprep.subr.mxu0 0.0
      %335 = vmatpush2.xpose.msra.mxu0 0.0
      %336 = vmatprep.subr.mxu0 0.0
      %337 = vmatpush2.xpose.msra.mxu0 0.0
      %338 = vmatprep.subr.mxu0 0.0
      %339 = vmatpush2.xpose.msra.mxu0 0.0
      %340 = vmatprep.subr.mxu0 0.0
      %341 = vmatpush2.xpose.msra.mxu0 0.0
      %342 = vmatprep.subr.mxu0 0.0
      %343 = vmatpush2.xpose.msra.mxu0 0.0
      %344 = vmatprep.subr.mxu0 0.0
      %345 = vmatpush2.xpose.msra.mxu0 0.0
      %346 = vmatprep.subr.mxu0 0.0
      %347 = vmatpush2.xpose.msra.mxu0 0.0
      %348 = vmatprep.subr.mxu0 0.0
      %349 = vmatpush2.xpose.msra.mxu0 0.0
      %350 = vmatprep.subr.mxu0 0.0
      %351 = vmatpush2.xpose.msra.mxu0 0.0
      %352 = vmatprep.subr.mxu0 0.0
      %353 = vmatpush2.xpose.msra.mxu0 0.0
      %354 = vmatprep.subr.mxu0 0.0
      %355 = vmatpush2.xpose.msra.mxu0 0.0
      %356 = vmatprep.subr.mxu0 0.0
      %357 = vmatpush2.xpose.msra.mxu0 0.0
      %358 = vmatprep.subr.mxu0 0.0
      %359 = vmatpush2.xpose.msra.mxu0 0.0
      %360 = vmatprep.subr.mxu0 0.0
      %361 = vmatpush2.xpose.msra.mxu0 0.0
      %362 = vmatprep.subr.mxu0 0.0
      %363 = vmatpush2.xpose.msra.mxu0 0.0
      %364 = vmatprep.subr.mxu0 0.0
      %365 = vmatpush2.xpose.msra.mxu0 0.0
      %366 = vmatprep.mubr.f32.mxu0 0.0
      %367 = vmatmul.mubr.f32.gmra.mxu0 %v297
      %v368 = vpop.f32.mrf.mxu0
      %v369 = vadd.f32 0.0, %v368
      %v370 = vpop.f32.mrf.mxu0
      %371 = vdwg.mxu0
      %v372 = vmul.f32 %v369, 0.25
      %v373 = vld [vmem:[#allocation2] sm:$0xff]
      %vm374 = vcmask 64512
      %v375 = vsel %vm374, %v372, -inf
      %376 = vmax.xlane.f32.xlu0 %v375
      %v377 = vpop.xlane.xlu0 %376
      %v378 = vmax.f32 %v373, %v377
      %v379 = vsub.f32 %v373, %v378
      %v380 = vmul.f32 %v379, 1.442695
      %v381 = vpow.pop %v380
      %383 = vset.pattern.permute.xlu0 0
      %384 = vperm.xlu0 %383, %v378
      %v385 = vpop.permute.xlu0 %384
      %v387 = vsub.f32 %v372, %v385
      %v388 = vmul.f32 %v387, 1.442695
      %v389 = vpow.pop %v388
      %v390 = vld [vmem:[#allocation3] sm:$0xff]
      %v391 = vmul.f32 %v381, %v390
      %v392 = vsel %vm374, %v389, 0.0
      %393 = vadd.xlane.f32.xlu0 %v392
      %v394 = vpop.xlane.xlu0 %393
      %v395 = vadd.f32 %v391, %v394
      %vm396 = vcmask 7168
      %397 = vst.msk [vmem:[#allocation3] sm:$0xff] %vm396, %v395
      %v398 = vld [vmem:[#allocation4] sm:$0xff]
      %400 = vset.pattern.permute.xlu0 0
      %401 = vperm.xlu0 %400, %v381
      %v402 = vpop.permute.xlu0 %401
      %v404 = vmul.f32 %v402, %v398
      %v406 = vsel %vm374, %v389, 0
      %408 = vmatprep.subr.mxu0 0.0
      %409 = vmatpush1.msra.mxu0 0.0
      %410 = vmatprep.subr.mxu0 0.0
      %411 = vmatpush1.msra.mxu0 0.0
      %412 = vmatprep.subr.mxu0 0.0
      %413 = vmatpush1.msra.mxu0 0.0
      %414 = vmatprep.subr.mxu0 0.0
      %415 = vmatpush1.msra.mxu0 0.0
      %416 = vmatprep.subr.mxu0 0.0
      %417 = vmatpush1.msra.mxu0 0.0
      %418 = vmatprep.subr.mxu0 0.0
      %419 = vmatpush1.msra.mxu0 0.0
      %420 = vmatprep.subr.mxu0 0.0
      %421 = vmatpush1.msra.mxu0 0.0
      %422 = vmatprep.subr.mxu0 0.0
      %423 = vmatpush1.msra.mxu0 0.0
      %424 = vmatprep.subr.mxu0 0.0
      %425 = vmatpush1.msra.mxu0 0.0
      %426 = vmatprep.subr.mxu0 0.0
      %427 = vmatpush1.msra.mxu0 0.0
      %428 = vmatprep.subr.mxu0 0.0
      %429 = vmatpush1.msra.mxu0 0.0
      %430 = vmatprep.subr.mxu0 0.0
      %431 = vmatpush1.msra.mxu0 0.0
      %432 = vmatprep.subr.mxu0 0.0
      %433 = vmatpush1.msra.mxu0 0.0
      %434 = vmatprep.subr.mxu0 0.0
      %435 = vmatpush1.msra.mxu0 0.0
      %436 = vmatprep.subr.mxu0 0.0
      %437 = vmatpush1.msra.mxu0 0.0
      %438 = vmatprep.subr.mxu0 0.0
      %439 = vmatpush1.msra.mxu0 %v294
      %440 = vmatprep.subr.mxu0 0.0
      %441 = vmatpush2.msra.mxu0 0.0
      %442 = vmatprep.subr.mxu0 0.0
      %443 = vmatpush2.msra.mxu0 0.0
      %444 = vmatprep.subr.mxu0 0.0
      %445 = vmatpush2.msra.mxu0 0.0
      %446 = vmatprep.subr.mxu0 0.0
      %447 = vmatpush2.msra.mxu0 0.0
      %448 = vmatprep.subr.mxu0 0.0
      %449 = vmatpush2.msra.mxu0 0.0
      %450 = vmatprep.subr.mxu0 0.0
      %451 = vmatpush2.msra.mxu0 0.0
      %452 = vmatprep.subr.mxu0 0.0
      %453 = vmatpush2.msra.mxu0 0.0
      %454 = vmatprep.subr.mxu0 0.0
      %455 = vmatpush2.msra.mxu0 0.0
      %456 = vmatprep.subr.mxu0 0.0
      %457 = vmatpush2.msra.mxu0 0.0
      %458 = vmatprep.subr.mxu0 0.0
      %459 = vmatpush2.msra.mxu0 0.0
      %460 = vmatprep.subr.mxu0 0.0
      %461 = vmatpush2.msra.mxu0 0.0
      %462 = vmatprep.subr.mxu0 0.0
      %463 = vmatpush2.msra.mxu0 0.0
      %464 = vmatprep.subr.mxu0 0.0
      %465 = vmatpush2.msra.mxu0 0.0
      %466 = vmatprep.subr.mxu0 0.0
      %467 = vmatpush2.msra.mxu0 0.0
      %468 = vmatprep.subr.mxu0 0.0
      %469 = vmatpush2.msra.mxu0 0.0
      %470 = vmatprep.subr.mxu0 0.0
      %471 = vmatpush2.msra.mxu0 0.0
      %472 = vmatprep.mubr.f32.mxu0 0.0
      %473 = vmatmul.mubr.f32.gmra.mxu0 %v406
      %v474 = vpop.f32.mrf.mxu0
      %v475 = vadd.f32 0.0, %v474
      %v476 = vpop.f32.mrf.mxu0
      %477 = vdwg.mxu0
      %v478 = vadd.f32 %v404, %v475
      %479 = vst.msk [vmem:[#allocation4] sm:$0xff] %vm295, %v478
      %480 = vst.msk [vmem:[#allocation2] sm:$0xff] %vm396, %v378
      %481 = vrot.lane.b32.xlu0 %v292, 112
      %v482 = vpop.permute.xlu0 %481
      %483 = vrot.lane.b32.xlu0 %v293, 112
      %v484 = vpop.permute.xlu0 %483
      %v485 = vsel %vm295, %v482, 0
      %v487 = vsel %vm295, %v484, 0
      %489 = vmatprep.subr.mxu0 0.0
      %490 = vmatpush1.xpose.msra.mxu0 0.0
      %491 = vmatprep.subr.mxu0 0.0
      %492 = vmatpush1.xpose.msra.mxu0 0.0
      %493 = vmatprep.subr.mxu0 0.0
      %494 = vmatpush1.xpose.msra.mxu0 0.0
      %495 = vmatprep.subr.mxu0 0.0
      %496 = vmatpush1.xpose.msra.mxu0 0.0
      %497 = vmatprep.subr.mxu0 0.0
      %498 = vmatpush1.xpose.msra.mxu0 0.0
      %499 = vmatprep.subr.mxu0 0.0
      %500 = vmatpush1.xpose.msra.mxu0 0.0
      %501 = vmatprep.subr.mxu0 0.0
      %502 = vmatpush1.xpose.msra.mxu0 0.0
      %503 = vmatprep.subr.mxu0 0.0
      %504 = vmatpush1.xpose.msra.mxu0 0.0
      %505 = vmatprep.subr.mxu0 0.0
      %506 = vmatpush1.xpose.msra.mxu0 0.0
      %507 = vmatprep.subr.mxu0 0.0
      %508 = vmatpush1.xpose.msra.mxu0 0.0
      %509 = vmatprep.subr.mxu0 0.0
      %510 = vmatpush1.xpose.msra.mxu0 0.0
      %511 = vmatprep.subr.mxu0 0.0
      %512 = vmatpush1.xpose.msra.mxu0 0.0
      %513 = vmatprep.subr.mxu0 0.0
      %514 = vmatpush1.xpose.msra.mxu0 0.0
      %515 = vmatprep.subr.mxu0 0.0
      %516 = vmatpush1.xpose.msra.mxu0 0.0
      %517 = vmatprep.subr.mxu0 0.0
      %518 = vmatpush1.xpose.msra.mxu0 0.0
      %519 = vmatprep.subr.mxu0 0.0
      %520 = vmatpush1.xpose.msra.mxu0 %v487
      %521 = vmatprep.subr.mxu0 0.0
      %522 = vmatpush2.xpose.msra.mxu0 0.0
      %523 = vmatprep.subr.mxu0 0.0
      %524 = vmatpush2.xpose.msra.mxu0 0.0
      %525 = vmatprep.subr.mxu0 0.0
      %526 = vmatpush2.xpose.msra.mxu0 0.0
      %527 = vmatprep.subr.mxu0 0.0
      %528 = vmatpush2.xpose.msra.mxu0 0.0
      %529 = vmatprep.subr.mxu0 0.0
      %530 = vmatpush2.xpose.msra.mxu0 0.0
      %531 = vmatprep.subr.mxu0 0.0
      %532 = vmatpush2.xpose.msra.mxu0 0.0
      %533 = vmatprep.subr.mxu0 0.0
      %534 = vmatpush2.xpose.msra.mxu0 0.0
      %535 = vmatprep.subr.mxu0 0.0
      %536 = vmatpush2.xpose.msra.mxu0 0.0
      %537 = vmatprep.subr.mxu0 0.0
      %538 = vmatpush2.xpose.msra.mxu0 0.0
      %539 = vmatprep.subr.mxu0 0.0
      %540 = vmatpush2.xpose.msra.mxu0 0.0
      %541 = vmatprep.subr.mxu0 0.0
      %542 = vmatpush2.xpose.msra.mxu0 0.0
      %543 = vmatprep.subr.mxu0 0.0
      %544 = vmatpush2.xpose.msra.mxu0 0.0
      %545 = vmatprep.subr.mxu0 0.0
      %546 = vmatpush2.xpose.msra.mxu0 0.0
      %547 = vmatprep.subr.mxu0 0.0
      %548 = vmatpush2.xpose.msra.mxu0 0.0
      %549 = vmatprep.subr.mxu0 0.0
      %550 = vmatpush2.xpose.msra.mxu0 0.0
      %551 = vmatprep.subr.mxu0 0.0
      %552 = vmatpush2.xpose.msra.mxu0 0.0
      %553 = vmatprep.mubr.f32.mxu0 0.0
      %554 = vmatmul.mubr.f32.gmra.mxu0 %v485
      %v555 = vpop.f32.mrf.mxu0
      %v556 = vadd.f32 0.0, %v555
      %v557 = vpop.f32.mrf.mxu0
      %558 = vdwg.mxu0
      %v559 = vmul.f32 %v556, 0.25
      %v560 = vld [vmem:[#allocation2] sm:$0xff]
      %v561 = vsel %vm374, %v559, -inf
      %562 = vmax.xlane.f32.xlu0 %v561
      %v563 = vpop.xlane.xlu0 %562
      %v564 = vmax.f32 %v560, %v563
      %v565 = vsub.f32 %v560, %v564
      %v566 = vmul.f32 %v565, 1.442695
      %v567 = vpow.pop %v566
      %569 = vset.pattern.permute.xlu0 1
      %570 = vperm.xlu0 %569, %v564
      %v571 = vpop.permute.xlu0 %570
      %v573 = vsub.f32 %v559, %v571
      %v574 = vmul.f32 %v573, 1.442695
      %v575 = vpow.pop %v574
      %v576 = vld [vmem:[#allocation3] sm:$0xff]
      %v577 = vmul.f32 %v567, %v576
      %v578 = vsel %vm374, %v575, 0.0
      %579 = vadd.xlane.f32.xlu0 %v578
      %v580 = vpop.xlane.xlu0 %579
      %v581 = vadd.f32 %v577, %v580
      %vm582 = vcmask 15368
      %583 = vst.msk [vmem:[#allocation3] sm:$0xff] %vm582, %v581
      %v584 = vld [vmem:[#allocation4] sm:$0xff]
      %586 = vset.pattern.permute.xlu0 1
      %587 = vperm.xlu0 %586, %v567
      %v588 = vpop.permute.xlu0 %587
      %v590 = vmul.f32 %v588, %v584
      %592 = vrot.lane.b32.xlu0 %v294, 112
      %v593 = vpop.permute.xlu0 %592
      %v596 = vsel %vm374, %v575, 0
      %598 = vmatprep.subr.mxu0 0.0
      %599 = vmatpush1.msra.mxu0 0.0
      %600 = vmatprep.subr.mxu0 0.0
      %601 = vmatpush1.msra.mxu0 0.0
      %602 = vmatprep.subr.mxu0 0.0
      %603 = vmatpush1.msra.mxu0 0.0
      %604 = vmatprep.subr.mxu0 0.0
      %605 = vmatpush1.msra.mxu0 0.0
      %606 = vmatprep.subr.mxu0 0.0
      %607 = vmatpush1.msra.mxu0 0.0
      %608 = vmatprep.subr.mxu0 0.0
      %609 = vmatpush1.msra.mxu0 0.0
      %610 = vmatprep.subr.mxu0 0.0
      %611 = vmatpush1.msra.mxu0 0.0
      %612 = vmatprep.subr.mxu0 0.0
      %613 = vmatpush1.msra.mxu0 0.0
      %614 = vmatprep.subr.mxu0 0.0
      %615 = vmatpush1.msra.mxu0 0.0
      %616 = vmatprep.subr.mxu0 0.0
      %617 = vmatpush1.msra.mxu0 0.0
      %618 = vmatprep.subr.mxu0 0.0
      %619 = vmatpush1.msra.mxu0 0.0
      %620 = vmatprep.subr.mxu0 0.0
      %621 = vmatpush1.msra.mxu0 0.0
      %622 = vmatprep.subr.mxu0 0.0
      %623 = vmatpush1.msra.mxu0 0.0
      %624 = vmatprep.subr.mxu0 0.0
      %625 = vmatpush1.msra.mxu0 0.0
      %626 = vmatprep.subr.mxu0 0.0
      %627 = vmatpush1.msra.mxu0 0.0
      %628 = vmatprep.subr.mxu0 0.0
      %629 = vmatpush1.msra.mxu0 %v593
      %630 = vmatprep.subr.mxu0 0.0
      %631 = vmatpush2.msra.mxu0 0.0
      %632 = vmatprep.subr.mxu0 0.0
      %633 = vmatpush2.msra.mxu0 0.0
      %634 = vmatprep.subr.mxu0 0.0
      %635 = vmatpush2.msra.mxu0 0.0
      %636 = vmatprep.subr.mxu0 0.0
      %637 = vmatpush2.msra.mxu0 0.0
      %638 = vmatprep.subr.mxu0 0.0
      %639 = vmatpush2.msra.mxu0 0.0
      %640 = vmatprep.subr.mxu0 0.0
      %641 = vmatpush2.msra.mxu0 0.0
      %642 = vmatprep.subr.mxu0 0.0
      %643 = vmatpush2.msra.mxu0 0.0
      %644 = vmatprep.subr.mxu0 0.0
      %645 = vmatpush2.msra.mxu0 0.0
      %646 = vmatprep.subr.mxu0 0.0
      %647 = vmatpush2.msra.mxu0 0.0
      %648 = vmatprep.subr.mxu0 0.0
      %649 = vmatpush2.msra.mxu0 0.0
      %650 = vmatprep.subr.mxu0 0.0
      %651 = vmatpush2.msra.mxu0 0.0
      %652 = vmatprep.subr.mxu0 0.0
      %653 = vmatpush2.msra.mxu0 0.0
      %654 = vmatprep.subr.mxu0 0.0
      %655 = vmatpush2.msra.mxu0 0.0
      %656 = vmatprep.subr.mxu0 0.0
      %657 = vmatpush2.msra.mxu0 0.0
      %658 = vmatprep.subr.mxu0 0.0
      %659 = vmatpush2.msra.mxu0 0.0
      %660 = vmatprep.subr.mxu0 0.0
      %661 = vmatpush2.msra.mxu0 0.0
      %662 = vmatprep.mubr.f32.mxu0 0.0
      %663 = vmatmul.mubr.f32.gmra.mxu0 %v596
      %v664 = vpop.f32.mrf.mxu0
      %v665 = vadd.f32 0.0, %v664
      %v666 = vpop.f32.mrf.mxu0
      %667 = vdwg.mxu0
      %669 = vrot.lane.b32.xlu0 %v665, 16
      %v670 = vpop.permute.xlu0 %669
      %v672 = vadd.f32 %v590, %v670
      %vm673 = vcmask 261248
      %674 = vst.msk [vmem:[#allocation4] sm:$0xff] %vm673, %v672
      %675 = vst.msk [vmem:[#allocation2] sm:$0xff] %vm582, %v564
      %676 = vrot.lane.b32.xlu0 %v292, 96
      %v677 = vpop.permute.xlu0 %676
      %678 = vrot.lane.b32.xlu0 %v293, 96
      %v679 = vpop.permute.xlu0 %678
      %v680 = vsel %vm295, %v677, 0
      %v682 = vsel %vm295, %v679, 0
      %684 = vmatprep.subr.mxu0 0.0
      %685 = vmatpush1.xpose.msra.mxu0 0.0
      %686 = vmatprep.subr.mxu0 0.0
      %687 = vmatpush1.xpose.msra.mxu0 0.0
      %688 = vmatprep.subr.mxu0 0.0
      %689 = vmatpush1.xpose.msra.mxu0 0.0
      %690 = vmatprep.subr.mxu0 0.0
      %691 = vmatpush1.xpose.msra.mxu0 0.0
      %692 = vmatprep.subr.mxu0 0.0
      %693 = vmatpush1.xpose.msra.mxu0 0.0
      %694 = vmatprep.subr.mxu0 0.0
      %695 = vmatpush1.xpose.msra.mxu0 0.0
      %696 = vmatprep.subr.mxu0 0.0
      %697 = vmatpush1.xpose.msra.mxu0 0.0
      %698 = vmatprep.subr.mxu0 0.0
      %699 = vmatpush1.xpose.msra.mxu0 0.0
      %700 = vmatprep.subr.mxu0 0.0
      %701 = vmatpush1.xpose.msra.mxu0 0.0
      %702 = vmatprep.subr.mxu0 0.0
      %703 = vmatpush1.xpose.msra.mxu0 0.0
      %704 = vmatprep.subr.mxu0 0.0
      %705 = vmatpush1.xpose.msra.mxu0 0.0
      %706 = vmatprep.subr.mxu0 0.0
      %707 = vmatpush1.xpose.msra.mxu0 0.0
      %708 = vmatprep.subr.mxu0 0.0
      %709 = vmatpush1.xpose.msra.mxu0 0.0
      %710 = vmatprep.subr.mxu0 0.0
      %711 = vmatpush1.xpose.msra.mxu0 0.0
      %712 = vmatprep.subr.mxu0 0.0
      %713 = vmatpush1.xpose.msra.mxu0 0.0
      %714 = vmatprep.subr.mxu0 0.0
      %715 = vmatpush1.xpose.msra.mxu0 %v682
      %716 = vmatprep.subr.mxu0 0.0
      %717 = vmatpush2.xpose.msra.mxu0 0.0
      %718 = vmatprep.subr.mxu0 0.0
      %719 = vmatpush2.xpose.msra.mxu0 0.0
      %720 = vmatprep.subr.mxu0 0.0
      %721 = vmatpush2.xpose.msra.mxu0 0.0
      %722 = vmatprep.subr.mxu0 0.0
      %723 = vmatpush2.xpose.msra.mxu0 0.0
      %724 = vmatprep.subr.mxu0 0.0
      %725 = vmatpush2.xpose.msra.mxu0 0.0
      %726 = vmatprep.subr.mxu0 0.0
      %727 = vmatpush2.xpose.msra.mxu0 0.0
      %728 = vmatprep.subr.mxu0 0.0
      %729 = vmatpush2.xpose.msra.mxu0 0.0
      %730 = vmatprep.subr.mxu0 0.0
      %731 = vmatpush2.xpose.msra.mxu0 0.0
      %732 = vmatprep.subr.mxu0 0.0
      %733 = vmatpush2.xpose.msra.mxu0 0.0
      %734 = vmatprep.subr.mxu0 0.0
      %735 = vmatpush2.xpose.msra.mxu0 0.0
      %736 = vmatprep.subr.mxu0 0.0
      %737 = vmatpush2.xpose.msra.mxu0 0.0
      %738 = vmatprep.subr.mxu0 0.0
      %739 = vmatpush2.xpose.msra.mxu0 0.0
      %740 = vmatprep.subr.mxu0 0.0
      %741 = vmatpush2.xpose.msra.mxu0 0.0
      %742 = vmatprep.subr.mxu0 0.0
      %743 = vmatpush2.xpose.msra.mxu0 0.0
      %744 = vmatprep.subr.mxu0 0.0
      %745 = vmatpush2.xpose.msra.mxu0 0.0
      %746 = vmatprep.subr.mxu0 0.0
      %747 = vmatpush2.xpose.msra.mxu0 0.0
      %748 = vmatprep.mubr.f32.mxu0 0.0
      %749 = vmatmul.mubr.f32.gmra.mxu0 %v680
      %v750 = vpop.f32.mrf.mxu0
      %v751 = vadd.f32 0.0, %v750
      %v752 = vpop.f32.mrf.mxu0
      %753 = vdwg.mxu0
      %v754 = vmul.f32 %v751, 0.25
      %v755 = vld [vmem:[#allocation2] sm:$0xff]
      %v756 = vsel %vm374, %v754, -inf
      %757 = vmax.xlane.f32.xlu0 %v756
      %v758 = vpop.xlane.xlu0 %757
      %v759 = vmax.f32 %v755, %v758
      %v760 = vsub.f32 %v755, %v759
      %v761 = vmul.f32 %v760, 1.442695
      %v762 = vpow.pop %v761
      %764 = vset.pattern.permute.xlu0 2
      %765 = vperm.xlu0 %764, %v759
      %v766 = vpop.permute.xlu0 %765
      %v768 = vsub.f32 %v754, %v766
      %v769 = vmul.f32 %v768, 1.442695
      %v770 = vpow.pop %v769
      %v771 = vld [vmem:[#allocation3] sm:$0xff]
      %v772 = vmul.f32 %v762, %v771
      %v773 = vsel %vm374, %v770, 0.0
      %774 = vadd.xlane.f32.xlu0 %v773
      %v775 = vpop.xlane.xlu0 %774
      %v776 = vadd.f32 %v772, %v775
      %vm777 = vcmask 23568
      %778 = vst.msk [vmem:[#allocation3] sm:$0xff] %vm777, %v776
      %v779 = vld [vmem:[#allocation4] sm:$0xff]
      %781 = vset.pattern.permute.xlu0 2
      %782 = vperm.xlu0 %781, %v762
      %v783 = vpop.permute.xlu0 %782
      %v785 = vmul.f32 %v783, %v779
      %786 = vrot.lane.b32.xlu0 %v294, 96
      %v787 = vpop.permute.xlu0 %786
      %v790 = vsel %vm374, %v770, 0
      %792 = vmatprep.subr.mxu0 0.0
      %793 = vmatpush1.msra.mxu0 0.0
      %794 = vmatprep.subr.mxu0 0.0
      %795 = vmatpush1.msra.mxu0 0.0
      %796 = vmatprep.subr.mxu0 0.0
      %797 = vmatpush1.msra.mxu0 0.0
      %798 = vmatprep.subr.mxu0 0.0
      %799 = vmatpush1.msra.mxu0 0.0
      %800 = vmatprep.subr.mxu0 0.0
      %801 = vmatpush1.msra.mxu0 0.0
      %802 = vmatprep.subr.mxu0 0.0
      %803 = vmatpush1.msra.mxu0 0.0
      %804 = vmatprep.subr.mxu0 0.0
      %805 = vmatpush1.msra.mxu0 0.0
      %806 = vmatprep.subr.mxu0 0.0
      %807 = vmatpush1.msra.mxu0 0.0
      %808 = vmatprep.subr.mxu0 0.0
      %809 = vmatpush1.msra.mxu0 0.0
      %810 = vmatprep.subr.mxu0 0.0
      %811 = vmatpush1.msra.mxu0 0.0
      %812 = vmatprep.subr.mxu0 0.0
      %813 = vmatpush1.msra.mxu0 0.0
      %814 = vmatprep.subr.mxu0 0.0
      %815 = vmatpush1.msra.mxu0 0.0
      %816 = vmatprep.subr.mxu0 0.0
      %817 = vmatpush1.msra.mxu0 0.0
      %818 = vmatprep.subr.mxu0 0.0
      %819 = vmatpush1.msra.mxu0 0.0
      %820 = vmatprep.subr.mxu0 0.0
      %821 = vmatpush1.msra.mxu0 0.0
      %822 = vmatprep.subr.mxu0 0.0
      %823 = vmatpush1.msra.mxu0 %v787
      %824 = vmatprep.subr.mxu0 0.0
      %825 = vmatpush2.msra.mxu0 0.0
      %826 = vmatprep.subr.mxu0 0.0
      %827 = vmatpush2.msra.mxu0 0.0
      %828 = vmatprep.subr.mxu0 0.0
      %829 = vmatpush2.msra.mxu0 0.0
      %830 = vmatprep.subr.mxu0 0.0
      %831 = vmatpush2.msra.mxu0 0.0
      %832 = vmatprep.subr.mxu0 0.0
      %833 = vmatpush2.msra.mxu0 0.0
      %834 = vmatprep.subr.mxu0 0.0
      %835 = vmatpush2.msra.mxu0 0.0
      %836 = vmatprep.subr.mxu0 0.0
      %837 = vmatpush2.msra.mxu0 0.0
      %838 = vmatprep.subr.mxu0 0.0
      %839 = vmatpush2.msra.mxu0 0.0
      %840 = vmatprep.subr.mxu0 0.0
      %841 = vmatpush2.msra.mxu0 0.0
      %842 = vmatprep.subr.mxu0 0.0
      %843 = vmatpush2.msra.mxu0 0.0
      %844 = vmatprep.subr.mxu0 0.0
      %845 = vmatpush2.msra.mxu0 0.0
      %846 = vmatprep.subr.mxu0 0.0
      %847 = vmatpush2.msra.mxu0 0.0
      %848 = vmatprep.subr.mxu0 0.0
      %849 = vmatpush2.msra.mxu0 0.0
      %850 = vmatprep.subr.mxu0 0.0
      %851 = vmatpush2.msra.mxu0 0.0
      %852 = vmatprep.subr.mxu0 0.0
      %853 = vmatpush2.msra.mxu0 0.0
      %854 = vmatprep.subr.mxu0 0.0
      %855 = vmatpush2.msra.mxu0 0.0
      %856 = vmatprep.mubr.f32.mxu0 0.0
      %857 = vmatmul.mubr.f32.gmra.mxu0 %v790
      %v858 = vpop.f32.mrf.mxu0
      %v859 = vadd.f32 0.0, %v858
      %v860 = vpop.f32.mrf.mxu0
      %861 = vdwg.mxu0
      %863 = vrot.lane.b32.xlu0 %v859, 32
      %v864 = vpop.permute.xlu0 %863
      %v866 = vadd.f32 %v785, %v864
      %vm867 = vcmask 392448
      %868 = vst.msk [vmem:[#allocation4] sm:$0xff] %vm867, %v866
      %869 = vst.msk [vmem:[#allocation2] sm:$0xff] %vm777, %v759
      %870 = vrot.lane.b32.xlu0 %v292, 80
      %v871 = vpop.permute.xlu0 %870
      %872 = vrot.lane.b32.xlu0 %v293, 80
      %v873 = vpop.permute.xlu0 %872
      %v874 = vsel %vm295, %v871, 0
      %v876 = vsel %vm295, %v873, 0
      %878 = vmatprep.subr.mxu0 0.0
      %879 = vmatpush1.xpose.msra.mxu0 0.0
      %880 = vmatprep.subr.mxu0 0.0
      %881 = vmatpush1.xpose.msra.mxu0 0.0
      %882 = vmatprep.subr.mxu0 0.0
      %883 = vmatpush1.xpose.msra.mxu0 0.0
      %884 = vmatprep.subr.mxu0 0.0
      %885 = vmatpush1.xpose.msra.mxu0 0.0
      %886 = vmatprep.subr.mxu0 0.0
      %887 = vmatpush1.xpose.msra.mxu0 0.0
      %888 = vmatprep.subr.mxu0 0.0
      %889 = vmatpush1.xpose.msra.mxu0 0.0
      %890 = vmatprep.subr.mxu0 0.0
      %891 = vmatpush1.xpose.msra.mxu0 0.0
      %892 = vmatprep.subr.mxu0 0.0
      %893 = vmatpush1.xpose.msra.mxu0 0.0
      %894 = vmatprep.subr.mxu0 0.0
      %895 = vmatpush1.xpose.msra.mxu0 0.0
      %896 = vmatprep.subr.mxu0 0.0
      %897 = vmatpush1.xpose.msra.mxu0 0.0
      %898 = vmatprep.subr.mxu0 0.0
      %899 = vmatpush1.xpose.msra.mxu0 0.0
      %900 = vmatprep.subr.mxu0 0.0
      %901 = vmatpush1.xpose.msra.mxu0 0.0
      %902 = vmatprep.subr.mxu0 0.0
      %903 = vmatpush1.xpose.msra.mxu0 0.0
      %904 = vmatprep.subr.mxu0 0.0
      %905 = vmatpush1.xpose.msra.mxu0 0.0
      %906 = vmatprep.subr.mxu0 0.0
      %907 = vmatpush1.xpose.msra.mxu0 0.0
      %908 = vmatprep.subr.mxu0 0.0
      %909 = vmatpush1.xpose.msra.mxu0 %v876
      %910 = vmatprep.subr.mxu0 0.0
      %911 = vmatpush2.xpose.msra.mxu0 0.0
      %912 = vmatprep.subr.mxu0 0.0
      %913 = vmatpush2.xpose.msra.mxu0 0.0
      %914 = vmatprep.subr.mxu0 0.0
      %915 = vmatpush2.xpose.msra.mxu0 0.0
      %916 = vmatprep.subr.mxu0 0.0
      %917 = vmatpush2.xpose.msra.mxu0 0.0
      %918 = vmatprep.subr.mxu0 0.0
      %919 = vmatpush2.xpose.msra.mxu0 0.0
      %920 = vmatprep.subr.mxu0 0.0
      %921 = vmatpush2.xpose.msra.mxu0 0.0
      %922 = vmatprep.subr.mxu0 0.0
      %923 = vmatpush2.xpose.msra.mxu0 0.0
      %924 = vmatprep.subr.mxu0 0.0
      %925 = vmatpush2.xpose.msra.mxu0 0.0
      %926 = vmatprep.subr.mxu0 0.0
      %927 = vmatpush2.xpose.msra.mxu0 0.0
      %928 = vmatprep.subr.mxu0 0.0
      %929 = vmatpush2.xpose.msra.mxu0 0.0
      %930 = vmatprep.subr.mxu0 0.0
      %931 = vmatpush2.xpose.msra.mxu0 0.0
      %932 = vmatprep.subr.mxu0 0.0
      %933 = vmatpush2.xpose.msra.mxu0 0.0
      %934 = vmatprep.subr.mxu0 0.0
      %935 = vmatpush2.xpose.msra.mxu0 0.0
      %936 = vmatprep.subr.mxu0 0.0
      %937 = vmatpush2.xpose.msra.mxu0 0.0
      %938 = vmatprep.subr.mxu0 0.0
      %939 = vmatpush2.xpose.msra.mxu0 0.0
      %940 = vmatprep.subr.mxu0 0.0
      %941 = vmatpush2.xpose.msra.mxu0 0.0
      %942 = vmatprep.mubr.f32.mxu0 0.0
      %943 = vmatmul.mubr.f32.gmra.mxu0 %v874
      %v944 = vpop.f32.mrf.mxu0
      %v945 = vadd.f32 0.0, %v944
      %v946 = vpop.f32.mrf.mxu0
      %947 = vdwg.mxu0
      %v948 = vmul.f32 %v945, 0.25
      %v949 = vld [vmem:[#allocation2] sm:$0xff]
      %v950 = vsel %vm374, %v948, -inf
      %951 = vmax.xlane.f32.xlu0 %v950
      %v952 = vpop.xlane.xlu0 %951
      %v953 = vmax.f32 %v949, %v952
      %v954 = vsub.f32 %v949, %v953
      %v955 = vmul.f32 %v954, 1.442695
      %v956 = vpow.pop %v955
      %958 = vset.pattern.permute.xlu0 3
      %959 = vperm.xlu0 %958, %v953
      %v960 = vpop.permute.xlu0 %959
      %v962 = vsub.f32 %v948, %v960
      %v963 = vmul.f32 %v962, 1.442695
      %v964 = vpow.pop %v963
      %v965 = vld [vmem:[#allocation3] sm:$0xff]
      %v966 = vmul.f32 %v956, %v965
      %v967 = vsel %vm374, %v964, 0.0
      %968 = vadd.xlane.f32.xlu0 %v967
      %v969 = vpop.xlane.xlu0 %968
      %v970 = vadd.f32 %v966, %v969
      %vm971 = vcmask 31768
      %972 = vst.msk [vmem:[#allocation3] sm:$0xff] %vm971, %v970
      %v973 = vld [vmem:[#allocation4] sm:$0xff]
      %975 = vset.pattern.permute.xlu0 3
      %976 = vperm.xlu0 %975, %v956
      %v977 = vpop.permute.xlu0 %976
      %v979 = vmul.f32 %v977, %v973
      %980 = vrot.lane.b32.xlu0 %v294, 80
      %v981 = vpop.permute.xlu0 %980
      %v984 = vsel %vm374, %v964, 0
      %986 = vmatprep.subr.mxu0 0.0
      %987 = vmatpush1.msra.mxu0 0.0
      %988 = vmatprep.subr.mxu0 0.0
      %989 = vmatpush1.msra.mxu0 0.0
      %990 = vmatprep.subr.mxu0 0.0
      %991 = vmatpush1.msra.mxu0 0.0
      %992 = vmatprep.subr.mxu0 0.0
      %993 = vmatpush1.msra.mxu0 0.0
      %994 = vmatprep.subr.mxu0 0.0
      %995 = vmatpush1.msra.mxu0 0.0
      %996 = vmatprep.subr.mxu0 0.0
      %997 = vmatpush1.msra.mxu0 0.0
      %998 = vmatprep.subr.mxu0 0.0
      %999 = vmatpush1.msra.mxu0 0.0
      %1000 = vmatprep.subr.mxu0 0.0
      %1001 = vmatpush1.msra.mxu0 0.0
      %1002 = vmatprep.subr.mxu0 0.0
      %1003 = vmatpush1.msra.mxu0 0.0
      %1004 = vmatprep.subr.mxu0 0.0
      %1005 = vmatpush1.msra.mxu0 0.0
      %1006 = vmatprep.subr.mxu0 0.0
      %1007 = vmatpush1.msra.mxu0 0.0
      %1008 = vmatprep.subr.mxu0 0.0
      %1009 = vmatpush1.msra.mxu0 0.0
      %1010 = vmatprep.subr.mxu0 0.0
      %1011 = vmatpush1.msra.mxu0 0.0
      %1012 = vmatprep.subr.mxu0 0.0
      %1013 = vmatpush1.msra.mxu0 0.0
      %1014 = vmatprep.subr.mxu0 0.0
      %1015 = vmatpush1.msra.mxu0 0.0
      %1016 = vmatprep.subr.mxu0 0.0
      %1017 = vmatpush1.msra.mxu0 %v981
      %1018 = vmatprep.subr.mxu0 0.0
      %1019 = vmatpush2.msra.mxu0 0.0
      %1020 = vmatprep.subr.mxu0 0.0
      %1021 = vmatpush2.msra.mxu0 0.0
      %1022 = vmatprep.subr.mxu0 0.0
      %1023 = vmatpush2.msra.mxu0 0.0
      %1024 = vmatprep.subr.mxu0 0.0
      %1025 = vmatpush2.msra.mxu0 0.0
      %1026 = vmatprep.subr.mxu0 0.0
      %1027 = vmatpush2.msra.mxu0 0.0
      %1028 = vmatprep.subr.mxu0 0.0
      %1029 = vmatpush2.msra.mxu0 0.0
      %1030 = vmatprep.subr.mxu0 0.0
      %1031 = vmatpush2.msra.mxu0 0.0
      %1032 = vmatprep.subr.mxu0 0.0
      %1033 = vmatpush2.msra.mxu0 0.0
      %1034 = vmatprep.subr.mxu0 0.0
      %1035 = vmatpush2.msra.mxu0 0.0
      %1036 = vmatprep.subr.mxu0 0.0
      %1037 = vmatpush2.msra.mxu0 0.0
      %1038 = vmatprep.subr.mxu0 0.0
      %1039 = vmatpush2.msra.mxu0 0.0
      %1040 = vmatprep.subr.mxu0 0.0
      %1041 = vmatpush2.msra.mxu0 0.0
      %1042 = vmatprep.subr.mxu0 0.0
      %1043 = vmatpush2.msra.mxu0 0.0
      %1044 = vmatprep.subr.mxu0 0.0
      %1045 = vmatpush2.msra.mxu0 0.0
      %1046 = vmatprep.subr.mxu0 0.0
      %1047 = vmatpush2.msra.mxu0 0.0
      %1048 = vmatprep.subr.mxu0 0.0
      %1049 = vmatpush2.msra.mxu0 0.0
      %1050 = vmatprep.mubr.f32.mxu0 0.0
      %1051 = vmatmul.mubr.f32.gmra.mxu0 %v984
      %v1052 = vpop.f32.mrf.mxu0
      %v1053 = vadd.f32 0.0, %v1052
      %v1054 = vpop.f32.mrf.mxu0
      %1055 = vdwg.mxu0
      %1057 = vrot.lane.b32.xlu0 %v1053, 48
      %v1058 = vpop.permute.xlu0 %1057
      %v1060 = vadd.f32 %v979, %v1058
      %vm1061 = vcmask 523648
      %1062 = vst.msk [vmem:[#allocation4] sm:$0xff] %vm1061, %v1060
      %1063 = vst.msk [vmem:[#allocation2] sm:$0xff] %vm971, %v953
      %1064 = vrot.lane.b32.xlu0 %v292, 64
      %v1065 = vpop.permute.xlu0 %1064
      %1066 = vrot.lane.b32.xlu0 %v293, 64
      %v1067 = vpop.permute.xlu0 %1066
      %v1068 = vsel %vm295, %v1065, 0
      %v1070 = vsel %vm295, %v1067, 0
      %1072 = vmatprep.subr.mxu0 0.0
      %1073 = vmatpush1.xpose.msra.mxu0 0.0
      %1074 = vmatprep.subr.mxu0 0.0
      %1075 = vmatpush1.xpose.msra.mxu0 0.0
      %1076 = vmatprep.subr.mxu0 0.0
      %1077 = vmatpush1.xpose.msra.mxu0 0.0
      %1078 = vmatprep.subr.mxu0 0.0
      %1079 = vmatpush1.xpose.msra.mxu0 0.0
      %1080 = vmatprep.subr.mxu0 0.0
      %1081 = vmatpush1.xpose.msra.mxu0 0.0
      %1082 = vmatprep.subr.mxu0 0.0
      %1083 = vmatpush1.xpose.msra.mxu0 0.0
      %1084 = vmatprep.subr.mxu0 0.0
      %1085 = vmatpush1.xpose.msra.mxu0 0.0
      %1086 = vmatprep.subr.mxu0 0.0
      %1087 = vmatpush1.xpose.msra.mxu0 0.0
      %1088 = vmatprep.subr.mxu0 0.0
      %1089 = vmatpush1.xpose.msra.mxu0 0.0
      %1090 = vmatprep.subr.mxu0 0.0
      %1091 = vmatpush1.xpose.msra.mxu0 0.0
      %1092 = vmatprep.subr.mxu0 0.0
      %1093 = vmatpush1.xpose.msra.mxu0 0.0
      %1094 = vmatprep.subr.mxu0 0.0
      %1095 = vmatpush1.xpose.msra.mxu0 0.0
      %1096 = vmatprep.subr.mxu0 0.0
      %1097 = vmatpush1.xpose.msra.mxu0 0.0
      %1098 = vmatprep.subr.mxu0 0.0
      %1099 = vmatpush1.xpose.msra.mxu0 0.0
      %1100 = vmatprep.subr.mxu0 0.0
      %1101 = vmatpush1.xpose.msra.mxu0 0.0
      %1102 = vmatprep.subr.mxu0 0.0
      %1103 = vmatpush1.xpose.msra.mxu0 %v1070
      %1104 = vmatprep.subr.mxu0 0.0
      %1105 = vmatpush2.xpose.msra.mxu0 0.0
      %1106 = vmatprep.subr.mxu0 0.0
      %1107 = vmatpush2.xpose.msra.mxu0 0.0
      %1108 = vmatprep.subr.mxu0 0.0
      %1109 = vmatpush2.xpose.msra.mxu0 0.0
      %1110 = vmatprep.subr.mxu0 0.0
      %1111 = vmatpush2.xpose.msra.mxu0 0.0
      %1112 = vmatprep.subr.mxu0 0.0
      %1113 = vmatpush2.xpose.msra.mxu0 0.0
      %1114 = vmatprep.subr.mxu0 0.0
      %1115 = vmatpush2.xpose.msra.mxu0 0.0
      %1116 = vmatprep.subr.mxu0 0.0
      %1117 = vmatpush2.xpose.msra.mxu0 0.0
      %1118 = vmatprep.subr.mxu0 0.0
      %1119 = vmatpush2.xpose.msra.mxu0 0.0
      %1120 = vmatprep.subr.mxu0 0.0
      %1121 = vmatpush2.xpose.msra.mxu0 0.0
      %1122 = vmatprep.subr.mxu0 0.0
      %1123 = vmatpush2.xpose.msra.mxu0 0.0
      %1124 = vmatprep.subr.mxu0 0.0
      %1125 = vmatpush2.xpose.msra.mxu0 0.0
      %1126 = vmatprep.subr.mxu0 0.0
      %1127 = vmatpush2.xpose.msra.mxu0 0.0
      %1128 = vmatprep.subr.mxu0 0.0
      %1129 = vmatpush2.xpose.msra.mxu0 0.0
      %1130 = vmatprep.subr.mxu0 0.0
      %1131 = vmatpush2.xpose.msra.mxu0 0.0
      %1132 = vmatprep.subr.mxu0 0.0
      %1133 = vmatpush2.xpose.msra.mxu0 0.0
      %1134 = vmatprep.subr.mxu0 0.0
      %1135 = vmatpush2.xpose.msra.mxu0 0.0
      %1136 = vmatprep.mubr.f32.mxu0 0.0
      %1137 = vmatmul.mubr.f32.gmra.mxu0 %v1068
      %v1138 = vpop.f32.mrf.mxu0
      %v1139 = vadd.f32 0.0, %v1138
      %v1140 = vpop.f32.mrf.mxu0
      %1141 = vdwg.mxu0
      %v1142 = vmul.f32 %v1139, 0.25
      %v1143 = vld [vmem:[#allocation2] sm:$0xff]
      %v1144 = vsel %vm374, %v1142, -inf
      %1145 = vmax.xlane.f32.xlu0 %v1144
      %v1146 = vpop.xlane.xlu0 %1145
      %v1147 = vmax.f32 %v1143, %v1146
      %v1148 = vsub.f32 %v1143, %v1147
      %v1149 = vmul.f32 %v1148, 1.442695
      %v1150 = vpow.pop %v1149
      %1152 = vset.pattern.permute.xlu0 4
      %1153 = vperm.xlu0 %1152, %v1147
      %v1154 = vpop.permute.xlu0 %1153
      %v1156 = vsub.f32 %v1142, %v1154
      %v1157 = vmul.f32 %v1156, 1.442695
      %v1158 = vpow.pop %v1157
      %v1159 = vld [vmem:[#allocation3] sm:$0xff]
      %v1160 = vmul.f32 %v1150, %v1159
      %v1161 = vsel %vm374, %v1158, 0.0
      %1162 = vadd.xlane.f32.xlu0 %v1161
      %v1163 = vpop.xlane.xlu0 %1162
      %v1164 = vadd.f32 %v1160, %v1163
      %vm1165 = vcmask 39968
      %1166 = vst.msk [vmem:[#allocation3] sm:$0xff] %vm1165, %v1164
      %v1167 = vld [vmem:[#allocation4] sm:$0xff]
      %1169 = vset.pattern.permute.xlu0 4
      %1170 = vperm.xlu0 %1169, %v1150
      %v1171 = vpop.permute.xlu0 %1170
      %v1173 = vmul.f32 %v1171, %v1167
      %1174 = vrot.lane.b32.xlu0 %v294, 64
      %v1175 = vpop.permute.xlu0 %1174
      %v1178 = vsel %vm374, %v1158, 0
      %1180 = vmatprep.subr.mxu0 0.0
      %1181 = vmatpush1.msra.mxu0 0.0
      %1182 = vmatprep.subr.mxu0 0.0
      %1183 = vmatpush1.msra.mxu0 0.0
      %1184 = vmatprep.subr.mxu0 0.0
      %1185 = vmatpush1.msra.mxu0 0.0
      %1186 = vmatprep.subr.mxu0 0.0
      %1187 = vmatpush1.msra.mxu0 0.0
      %1188 = vmatprep.subr.mxu0 0.0
      %1189 = vmatpush1.msra.mxu0 0.0
      %1190 = vmatprep.subr.mxu0 0.0
      %1191 = vmatpush1.msra.mxu0 0.0
      %1192 = vmatprep.subr.mxu0 0.0
      %1193 = vmatpush1.msra.mxu0 0.0
      %1194 = vmatprep.subr.mxu0 0.0
      %1195 = vmatpush1.msra.mxu0 0.0
      %1196 = vmatprep.subr.mxu0 0.0
      %1197 = vmatpush1.msra.mxu0 0.0
      %1198 = vmatprep.subr.mxu0 0.0
      %1199 = vmatpush1.msra.mxu0 0.0
      %1200 = vmatprep.subr.mxu0 0.0
      %1201 = vmatpush1.msra.mxu0 0.0
      %1202 = vmatprep.subr.mxu0 0.0
      %1203 = vmatpush1.msra.mxu0 0.0
      %1204 = vmatprep.subr.mxu0 0.0
      %1205 = vmatpush1.msra.mxu0 0.0
      %1206 = vmatprep.subr.mxu0 0.0
      %1207 = vmatpush1.msra.mxu0 0.0
      %1208 = vmatprep.subr.mxu0 0.0
      %1209 = vmatpush1.msra.mxu0 0.0
      %1210 = vmatprep.subr.mxu0 0.0
      %1211 = vmatpush1.msra.mxu0 %v1175
      %1212 = vmatprep.subr.mxu0 0.0
      %1213 = vmatpush2.msra.mxu0 0.0
      %1214 = vmatprep.subr.mxu0 0.0
      %1215 = vmatpush2.msra.mxu0 0.0
      %1216 = vmatprep.subr.mxu0 0.0
      %1217 = vmatpush2.msra.mxu0 0.0
      %1218 = vmatprep.subr.mxu0 0.0
      %1219 = vmatpush2.msra.mxu0 0.0
      %1220 = vmatprep.subr.mxu0 0.0
      %1221 = vmatpush2.msra.mxu0 0.0
      %1222 = vmatprep.subr.mxu0 0.0
      %1223 = vmatpush2.msra.mxu0 0.0
      %1224 = vmatprep.subr.mxu0 0.0
      %1225 = vmatpush2.msra.mxu0 0.0
      %1226 = vmatprep.subr.mxu0 0.0
      %1227 = vmatpush2.msra.mxu0 0.0
      %1228 = vmatprep.subr.mxu0 0.0
      %1229 = vmatpush2.msra.mxu0 0.0
      %1230 = vmatprep.subr.mxu0 0.0
      %1231 = vmatpush2.msra.mxu0 0.0
      %1232 = vmatprep.subr.mxu0 0.0
      %1233 = vmatpush2.msra.mxu0 0.0
      %1234 = vmatprep.subr.mxu0 0.0
      %1235 = vmatpush2.msra.mxu0 0.0
      %1236 = vmatprep.subr.mxu0 0.0
      %1237 = vmatpush2.msra.mxu0 0.0
      %1238 = vmatprep.subr.mxu0 0.0
      %1239 = vmatpush2.msra.mxu0 0.0
      %1240 = vmatprep.subr.mxu0 0.0
      %1241 = vmatpush2.msra.mxu0 0.0
      %1242 = vmatprep.subr.mxu0 0.0
      %1243 = vmatpush2.msra.mxu0 0.0
      %1244 = vmatprep.mubr.f32.mxu0 0.0
      %1245 = vmatmul.mubr.f32.gmra.mxu0 %v1178
      %v1246 = vpop.f32.mrf.mxu0
      %v1247 = vadd.f32 0.0, %v1246
      %v1248 = vpop.f32.mrf.mxu0
      %1249 = vdwg.mxu0
      %1251 = vrot.lane.b32.xlu0 %v1247, 64
      %v1252 = vpop.permute.xlu0 %1251
      %v1254 = vadd.f32 %v1173, %v1252
      %vm1255 = vcmask 654848
      %1256 = vst.msk [vmem:[#allocation4] sm:$0xff] %vm1255, %v1254
      %1257 = vst.msk [vmem:[#allocation2] sm:$0xff] %vm1165, %v1147
      %1258 = vrot.lane.b32.xlu0 %v292, 48
      %v1259 = vpop.permute.xlu0 %1258
      %1260 = vrot.lane.b32.xlu0 %v293, 48
      %v1261 = vpop.permute.xlu0 %1260
      %v1262 = vsel %vm295, %v1259, 0
      %v1264 = vsel %vm295, %v1261, 0
      %1266 = vmatprep.subr.mxu0 0.0
      %1267 = vmatpush1.xpose.msra.mxu0 0.0
      %1268 = vmatprep.subr.mxu0 0.0
      %1269 = vmatpush1.xpose.msra.mxu0 0.0
      %1270 = vmatprep.subr.mxu0 0.0
      %1271 = vmatpush1.xpose.msra.mxu0 0.0
      %1272 = vmatprep.subr.mxu0 0.0
      %1273 = vmatpush1.xpose.msra.mxu0 0.0
      %1274 = vmatprep.subr.mxu0 0.0
      %1275 = vmatpush1.xpose.msra.mxu0 0.0
      %1276 = vmatprep.subr.mxu0 0.0
      %1277 = vmatpush1.xpose.msra.mxu0 0.0
      %1278 = vmatprep.subr.mxu0 0.0
      %1279 = vmatpush1.xpose.msra.mxu0 0.0
      %1280 = vmatprep.subr.mxu0 0.0
      %1281 = vmatpush1.xpose.msra.mxu0 0.0
      %1282 = vmatprep.subr.mxu0 0.0
      %1283 = vmatpush1.xpose.msra.mxu0 0.0
      %1284 = vmatprep.subr.mxu0 0.0
      %1285 = vmatpush1.xpose.msra.mxu0 0.0
      %1286 = vmatprep.subr.mxu0 0.0
      %1287 = vmatpush1.xpose.msra.mxu0 0.0
      %1288 = vmatprep.subr.mxu0 0.0
      %1289 = vmatpush1.xpose.msra.mxu0 0.0
      %1290 = vmatprep.subr.mxu0 0.0
      %1291 = vmatpush1.xpose.msra.mxu0 0.0
      %1292 = vmatprep.subr.mxu0 0.0
      %1293 = vmatpush1.xpose.msra.mxu0 0.0
      %1294 = vmatprep.subr.mxu0 0.0
      %1295 = vmatpush1.xpose.msra.mxu0 0.0
      %1296 = vmatprep.subr.mxu0 0.0
      %1297 = vmatpush1.xpose.msra.mxu0 %v1264
      %1298 = vmatprep.subr.mxu0 0.0
      %1299 = vmatpush2.xpose.msra.mxu0 0.0
      %1300 = vmatprep.subr.mxu0 0.0
      %1301 = vmatpush2.xpose.msra.mxu0 0.0
      %1302 = vmatprep.subr.mxu0 0.0
      %1303 = vmatpush2.xpose.msra.mxu0 0.0
      %1304 = vmatprep.subr.mxu0 0.0
      %1305 = vmatpush2.xpose.msra.mxu0 0.0
      %1306 = vmatprep.subr.mxu0 0.0
      %1307 = vmatpush2.xpose.msra.mxu0 0.0
      %1308 = vmatprep.subr.mxu0 0.0
      %1309 = vmatpush2.xpose.msra.mxu0 0.0
      %1310 = vmatprep.subr.mxu0 0.0
      %1311 = vmatpush2.xpose.msra.mxu0 0.0
      %1312 = vmatprep.subr.mxu0 0.0
      %1313 = vmatpush2.xpose.msra.mxu0 0.0
      %1314 = vmatprep.subr.mxu0 0.0
      %1315 = vmatpush2.xpose.msra.mxu0 0.0
      %1316 = vmatprep.subr.mxu0 0.0
      %1317 = vmatpush2.xpose.msra.mxu0 0.0
      %1318 = vmatprep.subr.mxu0 0.0
      %1319 = vmatpush2.xpose.msra.mxu0 0.0
      %1320 = vmatprep.subr.mxu0 0.0
      %1321 = vmatpush2.xpose.msra.mxu0 0.0
      %1322 = vmatprep.subr.mxu0 0.0
      %1323 = vmatpush2.xpose.msra.mxu0 0.0
      %1324 = vmatprep.subr.mxu0 0.0
      %1325 = vmatpush2.xpose.msra.mxu0 0.0
      %1326 = vmatprep.subr.mxu0 0.0
      %1327 = vmatpush2.xpose.msra.mxu0 0.0
      %1328 = vmatprep.subr.mxu0 0.0
      %1329 = vmatpush2.xpose.msra.mxu0 0.0
      %1330 = vmatprep.mubr.f32.mxu0 0.0
      %1331 = vmatmul.mubr.f32.gmra.mxu0 %v1262
      %v1332 = vpop.f32.mrf.mxu0
      %v1333 = vadd.f32 0.0, %v1332
      %v1334 = vpop.f32.mrf.mxu0
      %1335 = vdwg.mxu0
      %v1336 = vmul.f32 %v1333, 0.25
      %v1337 = vld [vmem:[#allocation2] sm:$0xff]
      %v1338 = vsel %vm374, %v1336, -inf
      %1339 = vmax.xlane.f32.xlu0 %v1338
      %v1340 = vpop.xlane.xlu0 %1339
      %v1341 = vmax.f32 %v1337, %v1340
      %v1342 = vsub.f32 %v1337, %v1341
      %v1343 = vmul.f32 %v1342, 1.442695
      %v1344 = vpow.pop %v1343
      %1346 = vset.pattern.permute.xlu0 5
      %1347 = vperm.xlu0 %1346, %v1341
      %v1348 = vpop.permute.xlu0 %1347
      %v1350 = vsub.f32 %v1336, %v1348
      %v1351 = vmul.f32 %v1350, 1.442695
      %v1352 = vpow.pop %v1351
      %v1353 = vld [vmem:[#allocation3] sm:$0xff]
      %v1354 = vmul.f32 %v1344, %v1353
      %v1355 = vsel %vm374, %v1352, 0.0
      %1356 = vadd.xlane.f32.xlu0 %v1355
      %v1357 = vpop.xlane.xlu0 %1356
      %v1358 = vadd.f32 %v1354, %v1357
      %vm1359 = vcmask 48168
      %1360 = vst.msk [vmem:[#allocation3] sm:$0xff] %vm1359, %v1358
      %v1361 = vld [vmem:[#allocation4] sm:$0xff]
      %1363 = vset.pattern.permute.xlu0 5
      %1364 = vperm.xlu0 %1363, %v1344
      %v1365 = vpop.permute.xlu0 %1364
      %v1367 = vmul.f32 %v1365, %v1361
      %1368 = vrot.lane.b32.xlu0 %v294, 48
      %v1369 = vpop.permute.xlu0 %1368
      %v1372 = vsel %vm374, %v1352, 0
      %1374 = vmatprep.subr.mxu0 0.0
      %1375 = vmatpush1.msra.mxu0 0.0
      %1376 = vmatprep.subr.mxu0 0.0
      %1377 = vmatpush1.msra.mxu0 0.0
      %1378 = vmatprep.subr.mxu0 0.0
      %1379 = vmatpush1.msra.mxu0 0.0
      %1380 = vmatprep.subr.mxu0 0.0
      %1381 = vmatpush1.msra.mxu0 0.0
      %1382 = vmatprep.subr.mxu0 0.0
      %1383 = vmatpush1.msra.mxu0 0.0
      %1384 = vmatprep.subr.mxu0 0.0
      %1385 = vmatpush1.msra.mxu0 0.0
      %1386 = vmatprep.subr.mxu0 0.0
      %1387 = vmatpush1.msra.mxu0 0.0
      %1388 = vmatprep.subr.mxu0 0.0
      %1389 = vmatpush1.msra.mxu0 0.0
      %1390 = vmatprep.subr.mxu0 0.0
      %1391 = vmatpush1.msra.mxu0 0.0
      %1392 = vmatprep.subr.mxu0 0.0
      %1393 = vmatpush1.msra.mxu0 0.0
      %1394 = vmatprep.subr.mxu0 0.0
      %1395 = vmatpush1.msra.mxu0 0.0
      %1396 = vmatprep.subr.mxu0 0.0
      %1397 = vmatpush1.msra.mxu0 0.0
      %1398 = vmatprep.subr.mxu0 0.0
      %1399 = vmatpush1.msra.mxu0 0.0
      %1400 = vmatprep.subr.mxu0 0.0
      %1401 = vmatpush1.msra.mxu0 0.0
      %1402 = vmatprep.subr.mxu0 0.0
      %1403 = vmatpush1.msra.mxu0 0.0
      %1404 = vmatprep.subr.mxu0 0.0
      %1405 = vmatpush1.msra.mxu0 %v1369
      %1406 = vmatprep.subr.mxu0 0.0
      %1407 = vmatpush2.msra.mxu0 0.0
      %1408 = vmatprep.subr.mxu0 0.0
      %1409 = vmatpush2.msra.mxu0 0.0
      %1410 = vmatprep.subr.mxu0 0.0
      %1411 = vmatpush2.msra.mxu0 0.0
      %1412 = vmatprep.subr.mxu0 0.0
      %1413 = vmatpush2.msra.mxu0 0.0
      %1414 = vmatprep.subr.mxu0 0.0
      %1415 = vmatpush2.msra.mxu0 0.0
      %1416 = vmatprep.subr.mxu0 0.0
      %1417 = vmatpush2.msra.mxu0 0.0
      %1418 = vmatprep.subr.mxu0 0.0
      %1419 = vmatpush2.msra.mxu0 0.0
      %1420 = vmatprep.subr.mxu0 0.0
      %1421 = vmatpush2.msra.mxu0 0.0
      %1422 = vmatprep.subr.mxu0 0.0
      %1423 = vmatpush2.msra.mxu0 0.0
      %1424 = vmatprep.subr.mxu0 0.0
      %1425 = vmatpush2.msra.mxu0 0.0
      %1426 = vmatprep.subr.mxu0 0.0
      %1427 = vmatpush2.msra.mxu0 0.0
      %1428 = vmatprep.subr.mxu0 0.0
      %1429 = vmatpush2.msra.mxu0 0.0
      %1430 = vmatprep.subr.mxu0 0.0
      %1431 = vmatpush2.msra.mxu0 0.0
      %1432 = vmatprep.subr.mxu0 0.0
      %1433 = vmatpush2.msra.mxu0 0.0
      %1434 = vmatprep.subr.mxu0 0.0
      %1435 = vmatpush2.msra.mxu0 0.0
      %1436 = vmatprep.subr.mxu0 0.0
      %1437 = vmatpush2.msra.mxu0 0.0
      %1438 = vmatprep.mubr.f32.mxu0 0.0
      %1439 = vmatmul.mubr.f32.gmra.mxu0 %v1372
      %v1440 = vpop.f32.mrf.mxu0
      %v1441 = vadd.f32 0.0, %v1440
      %v1442 = vpop.f32.mrf.mxu0
      %1443 = vdwg.mxu0
      %1445 = vrot.lane.b32.xlu0 %v1441, 80
      %v1446 = vpop.permute.xlu0 %1445
      %v1448 = vadd.f32 %v1367, %v1446
      %vm1449 = vcmask 786048
      %1450 = vst.msk [vmem:[#allocation4] sm:$0xff] %vm1449, %v1448
      %1451 = vst.msk [vmem:[#allocation2] sm:$0xff] %vm1359, %v1341
      %1452 = vrot.lane.b32.xlu0 %v292, 32
      %v1453 = vpop.permute.xlu0 %1452
      %1454 = vrot.lane.b32.xlu0 %v293, 32
      %v1455 = vpop.permute.xlu0 %1454
      %v1456 = vsel %vm295, %v1453, 0
      %v1458 = vsel %vm295, %v1455, 0
      %1460 = vmatprep.subr.mxu0 0.0
      %1461 = vmatpush1.xpose.msra.mxu0 0.0
      %1462 = vmatprep.subr.mxu0 0.0
      %1463 = vmatpush1.xpose.msra.mxu0 0.0
      %1464 = vmatprep.subr.mxu0 0.0
      %1465 = vmatpush1.xpose.msra.mxu0 0.0
      %1466 = vmatprep.subr.mxu0 0.0
      %1467 = vmatpush1.xpose.msra.mxu0 0.0
      %1468 = vmatprep.subr.mxu0 0.0
      %1469 = vmatpush1.xpose.msra.mxu0 0.0
      %1470 = vmatprep.subr.mxu0 0.0
      %1471 = vmatpush1.xpose.msra.mxu0 0.0
      %1472 = vmatprep.subr.mxu0 0.0
      %1473 = vmatpush1.xpose.msra.mxu0 0.0
      %1474 = vmatprep.subr.mxu0 0.0
      %1475 = vmatpush1.xpose.msra.mxu0 0.0
      %1476 = vmatprep.subr.mxu0 0.0
      %1477 = vmatpush1.xpose.msra.mxu0 0.0
      %1478 = vmatprep.subr.mxu0 0.0
      %1479 = vmatpush1.xpose.msra.mxu0 0.0
      %1480 = vmatprep.subr.mxu0 0.0
      %1481 = vmatpush1.xpose.msra.mxu0 0.0
      %1482 = vmatprep.subr.mxu0 0.0
      %1483 = vmatpush1.xpose.msra.mxu0 0.0
      %1484 = vmatprep.subr.mxu0 0.0
      %1485 = vmatpush1.xpose.msra.mxu0 0.0
      %1486 = vmatprep.subr.mxu0 0.0
      %1487 = vmatpush1.xpose.msra.mxu0 0.0
      %1488 = vmatprep.subr.mxu0 0.0
      %1489 = vmatpush1.xpose.msra.mxu0 0.0
      %1490 = vmatprep.subr.mxu0 0.0
      %1491 = vmatpush1.xpose.msra.mxu0 %v1458
      %1492 = vmatprep.subr.mxu0 0.0
      %1493 = vmatpush2.xpose.msra.mxu0 0.0
      %1494 = vmatprep.subr.mxu0 0.0
      %1495 = vmatpush2.xpose.msra.mxu0 0.0
      %1496 = vmatprep.subr.mxu0 0.0
      %1497 = vmatpush2.xpose.msra.mxu0 0.0
      %1498 = vmatprep.subr.mxu0 0.0
      %1499 = vmatpush2.xpose.msra.mxu0 0.0
      %1500 = vmatprep.subr.mxu0 0.0
      %1501 = vmatpush2.xpose.msra.mxu0 0.0
      %1502 = vmatprep.subr.mxu0 0.0
      %1503 = vmatpush2.xpose.msra.mxu0 0.0
      %1504 = vmatprep.subr.mxu0 0.0
      %1505 = vmatpush2.xpose.msra.mxu0 0.0
      %1506 = vmatprep.subr.mxu0 0.0
      %1507 = vmatpush2.xpose.msra.mxu0 0.0
      %1508 = vmatprep.subr.mxu0 0.0
      %1509 = vmatpush2.xpose.msra.mxu0 0.0
      %1510 = vmatprep.subr.mxu0 0.0
      %1511 = vmatpush2.xpose.msra.mxu0 0.0
      %1512 = vmatprep.subr.mxu0 0.0
      %1513 = vmatpush2.xpose.msra.mxu0 0.0
      %1514 = vmatprep.subr.mxu0 0.0
      %1515 = vmatpush2.xpose.msra.mxu0 0.0
      %1516 = vmatprep.subr.mxu0 0.0
      %1517 = vmatpush2.xpose.msra.mxu0 0.0
      %1518 = vmatprep.subr.mxu0 0.0
      %1519 = vmatpush2.xpose.msra.mxu0 0.0
      %1520 = vmatprep.subr.mxu0 0.0
      %1521 = vmatpush2.xpose.msra.mxu0 0.0
      %1522 = vmatprep.subr.mxu0 0.0
      %1523 = vmatpush2.xpose.msra.mxu0 0.0
      %1524 = vmatprep.mubr.f32.mxu0 0.0
      %1525 = vmatmul.mubr.f32.gmra.mxu0 %v1456
      %v1526 = vpop.f32.mrf.mxu0
      %v1527 = vadd.f32 0.0, %v1526
      %v1528 = vpop.f32.mrf.mxu0
      %1529 = vdwg.mxu0
      %v1530 = vmul.f32 %v1527, 0.25
      %v1531 = vld [vmem:[#allocation2] sm:$0xff]
      %v1532 = vsel %vm374, %v1530, -inf
      %1533 = vmax.xlane.f32.xlu0 %v1532
      %v1534 = vpop.xlane.xlu0 %1533
      %v1535 = vmax.f32 %v1531, %v1534
      %v1536 = vsub.f32 %v1531, %v1535
      %v1537 = vmul.f32 %v1536, 1.442695
      %v1538 = vpow.pop %v1537
      %1540 = vset.pattern.permute.xlu0 6
      %1541 = vperm.xlu0 %1540, %v1535
      %v1542 = vpop.permute.xlu0 %1541
      %v1544 = vsub.f32 %v1530, %v1542
      %v1545 = vmul.f32 %v1544, 1.442695
      %v1546 = vpow.pop %v1545
      %v1547 = vld [vmem:[#allocation3] sm:$0xff]
      %v1548 = vmul.f32 %v1538, %v1547
      %v1549 = vsel %vm374, %v1546, 0.0
      %1550 = vadd.xlane.f32.xlu0 %v1549
      %v1551 = vpop.xlane.xlu0 %1550
      %v1552 = vadd.f32 %v1548, %v1551
      %vm1553 = vcmask 56368
      %1554 = vst.msk [vmem:[#allocation3] sm:$0xff] %vm1553, %v1552
      %v1555 = vld [vmem:[#allocation4] sm:$0xff]
      %1557 = vset.pattern.permute.xlu0 6
      %1558 = vperm.xlu0 %1557, %v1538
      %v1559 = vpop.permute.xlu0 %1558
      %v1561 = vmul.f32 %v1559, %v1555
      %1562 = vrot.lane.b32.xlu0 %v294, 32
      %v1563 = vpop.permute.xlu0 %1562
      %v1566 = vsel %vm374, %v1546, 0
      %1568 = vmatprep.subr.mxu0 0.0
      %1569 = vmatpush1.msra.mxu0 0.0
      %1570 = vmatprep.subr.mxu0 0.0
      %1571 = vmatpush1.msra.mxu0 0.0
      %1572 = vmatprep.subr.mxu0 0.0
      %1573 = vmatpush1.msra.mxu0 0.0
      %1574 = vmatprep.subr.mxu0 0.0
      %1575 = vmatpush1.msra.mxu0 0.0
      %1576 = vmatprep.subr.mxu0 0.0
      %1577 = vmatpush1.msra.mxu0 0.0
      %1578 = vmatprep.subr.mxu0 0.0
      %1579 = vmatpush1.msra.mxu0 0.0
      %1580 = vmatprep.subr.mxu0 0.0
      %1581 = vmatpush1.msra.mxu0 0.0
      %1582 = vmatprep.subr.mxu0 0.0
      %1583 = vmatpush1.msra.mxu0 0.0
      %1584 = vmatprep.subr.mxu0 0.0
      %1585 = vmatpush1.msra.mxu0 0.0
      %1586 = vmatprep.subr.mxu0 0.0
      %1587 = vmatpush1.msra.mxu0 0.0
      %1588 = vmatprep.subr.mxu0 0.0
      %1589 = vmatpush1.msra.mxu0 0.0
      %1590 = vmatprep.subr.mxu0 0.0
      %1591 = vmatpush1.msra.mxu0 0.0
      %1592 = vmatprep.subr.mxu0 0.0
      %1593 = vmatpush1.msra.mxu0 0.0
      %1594 = vmatprep.subr.mxu0 0.0
      %1595 = vmatpush1.msra.mxu0 0.0
      %1596 = vmatprep.subr.mxu0 0.0
      %1597 = vmatpush1.msra.mxu0 0.0
      %1598 = vmatprep.subr.mxu0 0.0
      %1599 = vmatpush1.msra.mxu0 %v1563
      %1600 = vmatprep.subr.mxu0 0.0
      %1601 = vmatpush2.msra.mxu0 0.0
      %1602 = vmatprep.subr.mxu0 0.0
      %1603 = vmatpush2.msra.mxu0 0.0
      %1604 = vmatprep.subr.mxu0 0.0
      %1605 = vmatpush2.msra.mxu0 0.0
      %1606 = vmatprep.subr.mxu0 0.0
      %1607 = vmatpush2.msra.mxu0 0.0
      %1608 = vmatprep.subr.mxu0 0.0
      %1609 = vmatpush2.msra.mxu0 0.0
      %1610 = vmatprep.subr.mxu0 0.0
      %1611 = vmatpush2.msra.mxu0 0.0
      %1612 = vmatprep.subr.mxu0 0.0
      %1613 = vmatpush2.msra.mxu0 0.0
      %1614 = vmatprep.subr.mxu0 0.0
      %1615 = vmatpush2.msra.mxu0 0.0
      %1616 = vmatprep.subr.mxu0 0.0
      %1617 = vmatpush2.msra.mxu0 0.0
      %1618 = vmatprep.subr.mxu0 0.0
      %1619 = vmatpush2.msra.mxu0 0.0
      %1620 = vmatprep.subr.mxu0 0.0
      %1621 = vmatpush2.msra.mxu0 0.0
      %1622 = vmatprep.subr.mxu0 0.0
      %1623 = vmatpush2.msra.mxu0 0.0
      %1624 = vmatprep.subr.mxu0 0.0
      %1625 = vmatpush2.msra.mxu0 0.0
      %1626 = vmatprep.subr.mxu0 0.0
      %1627 = vmatpush2.msra.mxu0 0.0
      %1628 = vmatprep.subr.mxu0 0.0
      %1629 = vmatpush2.msra.mxu0 0.0
      %1630 = vmatprep.subr.mxu0 0.0
      %1631 = vmatpush2.msra.mxu0 0.0
      %1632 = vmatprep.mubr.f32.mxu0 0.0
      %1633 = vmatmul.mubr.f32.gmra.mxu0 %v1566
      %v1634 = vpop.f32.mrf.mxu0
      %v1635 = vadd.f32 0.0, %v1634
      %v1636 = vpop.f32.mrf.mxu0
      %1637 = vdwg.mxu0
      %1639 = vrot.lane.b32.xlu0 %v1635, 96
      %v1640 = vpop.permute.xlu0 %1639
      %v1642 = vadd.f32 %v1561, %v1640
      %vm1643 = vcmask 917248
      %1644 = vst.msk [vmem:[#allocation4] sm:$0xff] %vm1643, %v1642
      %1645 = vst.msk [vmem:[#allocation2] sm:$0xff] %vm1553, %v1535
      %1646 = vrot.lane.b32.xlu0 %v292, 16
      %v1647 = vpop.permute.xlu0 %1646
      %1648 = vrot.lane.b32.xlu0 %v293, 16
      %v1649 = vpop.permute.xlu0 %1648
      %v1650 = vsel %vm295, %v1647, 0
      %v1652 = vsel %vm295, %v1649, 0
      %1654 = vmatprep.subr.mxu0 0.0
      %1655 = vmatpush1.xpose.msra.mxu0 0.0
      %1656 = vmatprep.subr.mxu0 0.0
      %1657 = vmatpush1.xpose.msra.mxu0 0.0
      %1658 = vmatprep.subr.mxu0 0.0
      %1659 = vmatpush1.xpose.msra.mxu0 0.0
      %1660 = vmatprep.subr.mxu0 0.0
      %1661 = vmatpush1.xpose.msra.mxu0 0.0
      %1662 = vmatprep.subr.mxu0 0.0
      %1663 = vmatpush1.xpose.msra.mxu0 0.0
      %1664 = vmatprep.subr.mxu0 0.0
      %1665 = vmatpush1.xpose.msra.mxu0 0.0
      %1666 = vmatprep.subr.mxu0 0.0
      %1667 = vmatpush1.xpose.msra.mxu0 0.0
      %1668 = vmatprep.subr.mxu0 0.0
      %1669 = vmatpush1.xpose.msra.mxu0 0.0
      %1670 = vmatprep.subr.mxu0 0.0
      %1671 = vmatpush1.xpose.msra.mxu0 0.0
      %1672 = vmatprep.subr.mxu0 0.0
      %1673 = vmatpush1.xpose.msra.mxu0 0.0
      %1674 = vmatprep.subr.mxu0 0.0
      %1675 = vmatpush1.xpose.msra.mxu0 0.0
      %1676 = vmatprep.subr.mxu0 0.0
      %1677 = vmatpush1.xpose.msra.mxu0 0.0
      %1678 = vmatprep.subr.mxu0 0.0
      %1679 = vmatpush1.xpose.msra.mxu0 0.0
      %1680 = vmatprep.subr.mxu0 0.0
      %1681 = vmatpush1.xpose.msra.mxu0 0.0
      %1682 = vmatprep.subr.mxu0 0.0
      %1683 = vmatpush1.xpose.msra.mxu0 0.0
      %1684 = vmatprep.subr.mxu0 0.0
      %1685 = vmatpush1.xpose.msra.mxu0 %v1652
      %1686 = vmatprep.subr.mxu0 0.0
      %1687 = vmatpush2.xpose.msra.mxu0 0.0
      %1688 = vmatprep.subr.mxu0 0.0
      %1689 = vmatpush2.xpose.msra.mxu0 0.0
      %1690 = vmatprep.subr.mxu0 0.0
      %1691 = vmatpush2.xpose.msra.mxu0 0.0
      %1692 = vmatprep.subr.mxu0 0.0
      %1693 = vmatpush2.xpose.msra.mxu0 0.0
      %1694 = vmatprep.subr.mxu0 0.0
      %1695 = vmatpush2.xpose.msra.mxu0 0.0
      %1696 = vmatprep.subr.mxu0 0.0
      %1697 = vmatpush2.xpose.msra.mxu0 0.0
      %1698 = vmatprep.subr.mxu0 0.0
      %1699 = vmatpush2.xpose.msra.mxu0 0.0
      %1700 = vmatprep.subr.mxu0 0.0
      %1701 = vmatpush2.xpose.msra.mxu0 0.0
      %1702 = vmatprep.subr.mxu0 0.0
      %1703 = vmatpush2.xpose.msra.mxu0 0.0
      %1704 = vmatprep.subr.mxu0 0.0
      %1705 = vmatpush2.xpose.msra.mxu0 0.0
      %1706 = vmatprep.subr.mxu0 0.0
      %1707 = vmatpush2.xpose.msra.mxu0 0.0
      %1708 = vmatprep.subr.mxu0 0.0
      %1709 = vmatpush2.xpose.msra.mxu0 0.0
      %1710 = vmatprep.subr.mxu0 0.0
      %1711 = vmatpush2.xpose.msra.mxu0 0.0
      %1712 = vmatprep.subr.mxu0 0.0
      %1713 = vmatpush2.xpose.msra.mxu0 0.0
      %1714 = vmatprep.subr.mxu0 0.0
      %1715 = vmatpush2.xpose.msra.mxu0 0.0
      %1716 = vmatprep.subr.mxu0 0.0
      %1717 = vmatpush2.xpose.msra.mxu0 0.0
      %1718 = vmatprep.mubr.f32.mxu0 0.0
      %1719 = vmatmul.mubr.f32.gmra.mxu0 %v1650
      %v1720 = vpop.f32.mrf.mxu0
      %v1721 = vadd.f32 0.0, %v1720
      %v1722 = vpop.f32.mrf.mxu0
      %1723 = vdwg.mxu0
      %v1724 = vmul.f32 %v1721, 0.25
      %v1725 = vld [vmem:[#allocation2] sm:$0xff]
      %v1726 = vsel %vm374, %v1724, -inf
      %1727 = vmax.xlane.f32.xlu0 %v1726
      %v1728 = vpop.xlane.xlu0 %1727
      %v1729 = vmax.f32 %v1725, %v1728
      %v1730 = vsub.f32 %v1725, %v1729
      %v1731 = vmul.f32 %v1730, 1.442695
      %v1732 = vpow.pop %v1731
      %1734 = vset.pattern.permute.xlu0 7
      %1735 = vperm.xlu0 %1734, %v1729
      %v1736 = vpop.permute.xlu0 %1735
      %v1738 = vsub.f32 %v1724, %v1736
      %v1739 = vmul.f32 %v1738, 1.442695
      %v1740 = vpow.pop %v1739
      %v1741 = vld [vmem:[#allocation3] sm:$0xff]
      %v1742 = vmul.f32 %v1732, %v1741
      %v1743 = vsel %vm374, %v1740, 0.0
      %1744 = vadd.xlane.f32.xlu0 %v1743
      %v1745 = vpop.xlane.xlu0 %1744
      %v1746 = vadd.f32 %v1742, %v1745
      %vm1747 = vcmask 64568
      %1748 = vst.msk [vmem:[#allocation3] sm:$0xff] %vm1747, %v1746
      %v1749 = vld [vmem:[#allocation4] sm:$0xff]
      %1751 = vset.pattern.permute.xlu0 7
      %1752 = vperm.xlu0 %1751, %v1732
      %v1753 = vpop.permute.xlu0 %1752
      %v1755 = vmul.f32 %v1753, %v1749
      %1756 = vrot.lane.b32.xlu0 %v294, 16
      %v1757 = vpop.permute.xlu0 %1756
      %v1760 = vsel %vm374, %v1740, 0
      %1762 = vmatprep.subr.mxu0 0.0
      %1763 = vmatpush1.msra.mxu0 0.0
      %1764 = vmatprep.subr.mxu0 0.0
      %1765 = vmatpush1.msra.mxu0 0.0
      %1766 = vmatprep.subr.mxu0 0.0
      %1767 = vmatpush1.msra.mxu0 0.0
      %1768 = vmatprep.subr.mxu0 0.0
      %1769 = vmatpush1.msra.mxu0 0.0
      %1770 = vmatprep.subr.mxu0 0.0
      %1771 = vmatpush1.msra.mxu0 0.0
      %1772 = vmatprep.subr.mxu0 0.0
      %1773 = vmatpush1.msra.mxu0 0.0
      %1774 = vmatprep.subr.mxu0 0.0
      %1775 = vmatpush1.msra.mxu0 0.0
      %1776 = vmatprep.subr.mxu0 0.0
      %1777 = vmatpush1.msra.mxu0 0.0
      %1778 = vmatprep.subr.mxu0 0.0
      %1779 = vmatpush1.msra.mxu0 0.0
      %1780 = vmatprep.subr.mxu0 0.0
      %1781 = vmatpush1.msra.mxu0 0.0
      %1782 = vmatprep.subr.mxu0 0.0
      %1783 = vmatpush1.msra.mxu0 0.0
      %1784 = vmatprep.subr.mxu0 0.0
      %1785 = vmatpush1.msra.mxu0 0.0
      %1786 = vmatprep.subr.mxu0 0.0
      %1787 = vmatpush1.msra.mxu0 0.0
      %1788 = vmatprep.subr.mxu0 0.0
      %1789 = vmatpush1.msra.mxu0 0.0
      %1790 = vmatprep.subr.mxu0 0.0
      %1791 = vmatpush1.msra.mxu0 0.0
      %1792 = vmatprep.subr.mxu0 0.0
      %1793 = vmatpush1.msra.mxu0 %v1757
      %1794 = vmatprep.subr.mxu0 0.0
      %1795 = vmatpush2.msra.mxu0 0.0
      %1796 = vmatprep.subr.mxu0 0.0
      %1797 = vmatpush2.msra.mxu0 0.0
      %1798 = vmatprep.subr.mxu0 0.0
      %1799 = vmatpush2.msra.mxu0 0.0
      %1800 = vmatprep.subr.mxu0 0.0
      %1801 = vmatpush2.msra.mxu0 0.0
      %1802 = vmatprep.subr.mxu0 0.0
      %1803 = vmatpush2.msra.mxu0 0.0
      %1804 = vmatprep.subr.mxu0 0.0
      %1805 = vmatpush2.msra.mxu0 0.0
      %1806 = vmatprep.subr.mxu0 0.0
      %1807 = vmatpush2.msra.mxu0 0.0
      %1808 = vmatprep.subr.mxu0 0.0
      %1809 = vmatpush2.msra.mxu0 0.0
      %1810 = vmatprep.subr.mxu0 0.0
      %1811 = vmatpush2.msra.mxu0 0.0
      %1812 = vmatprep.subr.mxu0 0.0
      %1813 = vmatpush2.msra.mxu0 0.0
      %1814 = vmatprep.subr.mxu0 0.0
      %1815 = vmatpush2.msra.mxu0 0.0
      %1816 = vmatprep.subr.mxu0 0.0
      %1817 = vmatpush2.msra.mxu0 0.0
      %1818 = vmatprep.subr.mxu0 0.0
      %1819 = vmatpush2.msra.mxu0 0.0
      %1820 = vmatprep.subr.mxu0 0.0
      %1821 = vmatpush2.msra.mxu0 0.0
      %1822 = vmatprep.subr.mxu0 0.0
      %1823 = vmatpush2.msra.mxu0 0.0
      %1824 = vmatprep.subr.mxu0 0.0
      %1825 = vmatpush2.msra.mxu0 0.0
      %1826 = vmatprep.mubr.f32.mxu0 0.0
      %1827 = vmatmul.mubr.f32.gmra.mxu0 %v1760
      %v1828 = vpop.f32.mrf.mxu0
      %v1829 = vadd.f32 0.0, %v1828
      %v1830 = vpop.f32.mrf.mxu0
      %1831 = vdwg.mxu0
      %1833 = vrot.lane.b32.xlu0 %v1829, 112
      %v1834 = vpop.permute.xlu0 %1833
      %v1836 = vadd.f32 %v1755, %v1834
      %vm1837 = vcmask 1048448
      %1838 = vst.msk [vmem:[#allocation4] sm:$0xff] %vm1837, %v1836
      %1839 = vst.msk [vmem:[#allocation2] sm:$0xff] %vm1747, %v1729
      // Predicated region
      $region37: #{attention_pallas.4} parent=31 // pred_check
        %p1840 = pneg %p284
      $region38: #{attention_pallas.4} parent=31 // pred_check_branch
        %1842 = sbr.rel (%p1840) target = $region40
      $region39: #{attention_pallas.4} parent=31 // pred_region
        %v1843 = vld [vmem:[#allocation3] sm:$0xff]
        %v1844 = vrcp.pop %v1843
        %v1845 = vld [vmem:[#allocation4] sm:$0xff]
        %1847 = vset.pattern.permute.xlu0 0
        %1848 = vperm.xlu0 %1847, %v1844
        %v1849 = vpop.permute.xlu0 %1848
        %v1851 = vmul.f32 %v1845, %v1849
        %1852 = vst.msk [vmem:[#allocation4] sm:$0xff] %vm295, %v1851
        %v1853 = vld [vmem:[#allocation3] sm:$0xff]
        %v1854 = vrcp.pop %v1853
        %v1855 = vld [vmem:[#allocation4] sm:$0xff]
        %1857 = vset.pattern.permute.xlu0 1
        %1858 = vperm.xlu0 %1857, %v1854
        %v1859 = vpop.permute.xlu0 %1858
        %v1861 = vmul.f32 %v1855, %v1859
        %1862 = vst.msk [vmem:[#allocation4] sm:$0xff] %vm673, %v1861
        %v1863 = vld [vmem:[#allocation3] sm:$0xff]
        %v1864 = vrcp.pop %v1863
        %v1865 = vld [vmem:[#allocation4] sm:$0xff]
        %1867 = vset.pattern.permute.xlu0 2
        %1868 = vperm.xlu0 %1867, %v1864
        %v1869 = vpop.permute.xlu0 %1868
        %v1871 = vmul.f32 %v1865, %v1869
        %1872 = vst.msk [vmem:[#allocation4] sm:$0xff] %vm867, %v1871
        %v1873 = vld [vmem:[#allocation3] sm:$0xff]
        %v1874 = vrcp.pop %v1873
        %v1875 = vld [vmem:[#allocation4] sm:$0xff]
        %1877 = vset.pattern.permute.xlu0 3
        %1878 = vperm.xlu0 %1877, %v1874
        %v1879 = vpop.permute.xlu0 %1878
        %v1881 = vmul.f32 %v1875, %v1879
        %1882 = vst.msk [vmem:[#allocation4] sm:$0xff] %vm1061, %v1881
        %v1883 = vld [vmem:[#allocation3] sm:$0xff]
        %v1884 = vrcp.pop %v1883
        %v1885 = vld [vmem:[#allocation4] sm:$0xff]
        %1887 = vset.pattern.permute.xlu0 4
        %1888 = vperm.xlu0 %1887, %v1884
        %v1889 = vpop.permute.xlu0 %1888
        %v1891 = vmul.f32 %v1885, %v1889
        %1892 = vst.msk [vmem:[#allocation4] sm:$0xff] %vm1255, %v1891
        %v1893 = vld [vmem:[#allocation3] sm:$0xff]
        %v1894 = vrcp.pop %v1893
        %v1895 = vld [vmem:[#allocation4] sm:$0xff]
        %1897 = vset.pattern.permute.xlu0 5
        %1898 = vperm.xlu0 %1897, %v1894
        %v1899 = vpop.permute.xlu0 %1898
        %v1901 = vmul.f32 %v1895, %v1899
        %1902 = vst.msk [vmem:[#allocation4] sm:$0xff] %vm1449, %v1901
        %v1903 = vld [vmem:[#allocation3] sm:$0xff]
        %v1904 = vrcp.pop %v1903
        %v1905 = vld [vmem:[#allocation4] sm:$0xff]
        %1907 = vset.pattern.permute.xlu0 6
        %1908 = vperm.xlu0 %1907, %v1904
        %v1909 = vpop.permute.xlu0 %1908
        %v1911 = vmul.f32 %v1905, %v1909
        %1912 = vst.msk [vmem:[#allocation4] sm:$0xff] %vm1643, %v1911
        %v1913 = vld [vmem:[#allocation3] sm:$0xff]
        %v1914 = vrcp.pop %v1913
        %v1915 = vld [vmem:[#allocation4] sm:$0xff]
        %1917 = vset.pattern.permute.xlu0 7
        %1918 = vperm.xlu0 %1917, %v1914
        %v1919 = vpop.permute.xlu0 %1918
        %v1921 = vmul.f32 %v1915, %v1919
        %1922 = vst.msk [vmem:[#allocation4] sm:$0xff] %vm1837, %v1921
        %v1923 = vld [vmem:[#allocation4] sm:$0xff]
        %1924 = vst [vmem:[%s283] sm:$0xff] %v1923
      $region40: #{attention_pallas.4} parent=31 // pred_fallthru
        _
      %p1925 = scmp.lt.s32.totalorder %s19, 1
      %s1926 = scalar_select %p1925, %s19, 1
      %p1927 = scmp.lt.s32.totalorder %s20, 0
      %s1928 = scalar_select %p1927, %s20, 0
      %s1929 = sadd.s32 %s1928, %s1926
      %s1930 = smul.addr %s1929, 8
      %s1931 = scalar_lea.vmem %s3, %s1930
      // Predicated region
      $region41: #{attention_pallas.4} parent=31 // pred_check
        %p1932 = pneg %p137
      $region42: #{attention_pallas.4} parent=31 // pred_check_branch
        %1934 = sbr.rel (%p1932) target = $region44
      $region43: #{attention_pallas.4} parent=31 // pred_region
        _
      $region44: #{attention_pallas.4} parent=31 // pred_fallthru
        _
    $region32: #{attention_pallas.4} parent=5 // pred_fallthru
      _
    %p1935 = scmp.le.s32.totalorder 2, %s9
    // Predicated region
    $region45: #{attention_pallas.4} parent=5 // pred_check
      %p1936 = pneg %p1935
    $region46: #{attention_pallas.4} parent=5 // pred_check_branch
      %1938 = sbr.rel (%p1936) target = $region48
    $region47: #{attention_pallas.4} parent=5 // pred_region
      %s1939 = ssub.s32 %s9, 2
      // Predicated region
      $region49: #{attention_pallas.4} parent=47 // pred_check
        %p1940 = pneg %p143
      $region50: #{attention_pallas.4} parent=47 // pred_check_branch
        %1942 = sbr.rel (%p1940) target = $region52
      $region51: #{attention_pallas.4} parent=47 // pred_region
        %p1943 = scmp.lt.s32.totalorder %s22, 1
        %s1944 = scalar_select %p1943, %s22, 1
        %p1945 = scmp.lt.s32.totalorder %s23, 0
        %s1946 = scalar_select %p1945, %s23, 0
        %s1947 = sadd.s32 %s1946, %s1944
        %s1948 = smul.addr %s1947, 8
        %s1949 = scalar_lea.vmem %s3, %s1948
      $region52: #{attention_pallas.4} parent=47 // pred_fallthru
        _
    $region48: #{attention_pallas.4} parent=5 // pred_fallthru
      _
  $region6: #{attention_pallas.4} parent=0 // loop_footer
    %s13 = sadd.s32 1, %s9
  $region7: #{attention_pallas.4} parent=0 // loop_footer_branch
    %8 = sbr.rel target = $region3
  $region8: #{attention_pallas.4} parent=0 // loop_exit
    _

</llo_original>
